<compile_context>
chip_gen: v7x
topology: tpu7x:2x2x1
jax: 0.10.0
libtpu: 0.0.40
codegen_flags: <defaults>
</compile_context>

<pallas_src>
import functools

import jax
import jax.numpy as jnp
from jax.experimental import pallas as pl
from jax.experimental.pallas import tpu as pltpu


def _round_up(x, m):
    return ((x + m - 1) // m) * m


def _tpu_defaults():
    """(row_tile, vmem_limit_bytes) tuned per TPU generation."""
    kind = ""
    try:
        kind = (getattr(jax.devices()[0], "device_kind", "") or "").lower()
    except Exception:
        pass
    if "v5" in kind or "v6" in kind:
        # 128 MiB VMEM: big row tiles, generous scoped limit.
        return 1024, 100 * 1024 * 1024
    if "v7" in kind:
        # 64 MiB physical VMEM per TensorCore: leave Mosaic-scratch headroom.
        return 512, 56 * 1024 * 1024
    return 512, 48 * 1024 * 1024


def _const_block_spec(shape, index_map):
    """BlockSpec for a grid-invariant operand; single-buffered when supported."""
    buffered = getattr(pl, "Buffered", None)
    if buffered is not None:
        try:
            return pl.BlockSpec(shape, index_map, pipeline_mode=buffered(1))
        except TypeError:  # older jax without pipeline_mode kwarg
            pass
    return pl.BlockSpec(shape, index_map)


def _pad2d_bf16(a, rows, cols):
    r, c = a.shape
    if a.dtype != jnp.bfloat16:
        a = a.astype(jnp.bfloat16)
    if rows == r and cols == c:
        return a
    return jnp.pad(a, ((0, rows - r), (0, cols - c)))


# ---------------------------------------------------------------------------
# Fused 1x1-conv matmul kernel (used for conv1 and conv3 [+ shortcut]).
# ---------------------------------------------------------------------------
def _fused_kernel(*refs, relu, has_shortcut):
    """out_tile = act(x_tile @ w [+ xs_tile @ wd] + bias)."""
    if has_shortcut:
        x_ref, w_ref, xs_ref, wd_ref, b_ref, o_ref = refs
    else:
        x_ref, w_ref, b_ref, o_ref = refs
    acc = jnp.dot(x_ref[...], w_ref[...], preferred_element_type=jnp.float32)
    if has_shortcut:
        acc = acc + jnp.dot(xs_ref[...], wd_ref[...],
                            preferred_element_type=jnp.float32)
    acc = acc + b_ref[...]
    if relu:
        acc = jnp.maximum(acc, 0.0)
    o_ref[...] = acc.astype(o_ref.dtype)


def _fused_matmul(x2d, w, bias, *, relu, out_dtype, shortcut=None,
                  tm=None, vmem_limit=None):
    """act(x2d @ w [+ xs @ wd] + bias), row-tiled on the MXU.

    x2d: (M, K), w: (K, N), bias: (N,) f32.  K/Kd/N are padded to multiples of
    128 (lane-dense output, full MXU tiles); M is padded to the row tile.
    """
    if tm is None or vmem_limit is None:
        d_tm, d_vmem = _tpu_defaults()
        tm = tm or d_tm
        vmem_limit = vmem_limit or d_vmem

    M, K = x2d.shape
    N = w.shape[1]
    K_pad = _round_up(K, 128)
    N_pad = _round_up(N, 128)

    tm_eff = min(tm, _round_up(M, 8))
    # Guarantee >= 2 grid steps when possible: v7x shards the parallel grid
    # across its 2 TensorCores; a grid of 1 would idle one core.
    if M > 8 and -(-M // tm_eff) < 2:
        tm_eff = _round_up(-(-M // 2), 8)
    M_pad = _round_up(M, tm_eff)

    xp = _pad2d_bf16(x2d, M_pad, K_pad)
    wp = _pad2d_bf16(w, K_pad, N_pad)
    bp = bias.reshape(1, N).astype(jnp.float32)
    if N_pad != N:
        bp = jnp.pad(bp, ((0, 0), (0, N_pad - N)))

    args = [xp, wp]
    in_specs = [
        pl.BlockSpec((tm_eff, K_pad), lambda i: (i, 0)),        # x rows (pipelined)
        _const_block_spec((K_pad, N_pad), lambda i: (0, 0)),    # folded weight
    ]
    has_shortcut = shortcut is not None
    if has_shortcut:
        xs2d, wd = shortcut
        Kd = xs2d.shape[1]
        Kd_pad = _round_up(Kd, 128)
        args += [_pad2d_bf16(xs2d, M_pad, Kd_pad),
                 _pad2d_bf16(wd, Kd_pad, N_pad)]
        in_specs += [
            pl.BlockSpec((tm_eff, Kd_pad), lambda i: (i, 0)),       # shortcut rows
            _const_block_spec((Kd_pad, N_pad), lambda i: (0, 0)),   # projection w
        ]
    args.append(bp)
    in_specs.append(_const_block_spec((1, N_pad), lambda i: (0, 0)))  # bias

    out = pl.pallas_call(
        functools.partial(_fused_kernel, relu=relu, has_shortcut=has_shortcut),
        out_shape=jax.ShapeDtypeStruct((M_pad, N_pad), out_dtype),
        grid=(M_pad // tm_eff,),
        in_specs=in_specs,
        out_specs=pl.BlockSpec((tm_eff, N_pad), lambda i: (i, 0)),
        compiler_params=pltpu.CompilerParams(
            dimension_semantics=("parallel",),
            vmem_limit_bytes=vmem_limit,
        ),
    )(*args)
    if M_pad == M and N_pad == N:
        return out
    return out[:M, :N]


# ---------------------------------------------------------------------------
# conv2: 3x3 / stride conv as an in-kernel 9-tap accumulation (no im2col).
# ---------------------------------------------------------------------------
def _conv3x3_kernel(x_ref, w_ref, b_ref, o_ref, *, stride, Ho, Wo, Wf):
    # x_ref: (phases, L, Cp) flattened padded activation for one image.
    # w_ref: (9, Cp, Cout) folded weights.  b_ref: (1, Cout).
    # o_ref: (Ho, Wo, Cout).
    cout = o_ref.shape[-1]
    rows = Ho * Wf
    acc = jnp.zeros((rows, cout), jnp.float32)
    for kh in range(3):
        for kw in range(3):
            p = (kh % stride) * stride + (kw % stride)       # phase index
            off = (kh // stride) * Wf + (kw // stride)       # flat row offset
            win = x_ref[p, pl.ds(off, rows), :]              # (rows, Cp) slice
            acc = acc + jnp.dot(win, w_ref[kh * 3 + kw],
                                preferred_element_type=jnp.float32)
    acc = jnp.maximum(acc + b_ref[...], 0.0)
    # Columns [Wo, Wf) are wrap-around garbage by construction; drop on store.
    o_ref[...] = acc.reshape(Ho, Wf, cout)[:, :Wo, :].astype(o_ref.dtype)


def _conv2_3x3(y1, w2p, b2p, stride, *, vmem_limit):
    """3x3 stride-s conv + BN + ReLU, one Pallas kernel invocation per image.

    y1: (N, H, W, Cp) bf16 channel-padded.  w2p: (9, Cp, Cp) bf16 (BN folded).
    b2p: (1, Cp) f32.  Returns (N, Ho, Wo, Cp) bf16.
    """
    if stride not in (1, 2):
        raise NotImplementedError("conv2 supports stride 1 or 2")
    N, H, W, Cp = y1.shape
    Ho = (H - 1) // stride + 1
    Wo = (W - 1) // stride + 1

    if stride == 1:
        Hp, Wp = H + 2, W + 2
        Wf = _round_up(Wp, 8)
        # Zero pad=1 spatially; +1 extra bottom row so every shifted tap window
        # stays inside the flattened buffer; pad width to a sublane multiple.
        xp = jnp.pad(y1, ((0, 0), (1, Hp - H), (1, Wf - W - 1), (0, 0)))
        phases = 1
        xk = xp.reshape(N, (Hp + 1) * Wf, Cp)
    else:
        Hp = _round_up(H + 2, 2)
        Wp = _round_up(W + 2, 2)
        xp = jnp.pad(y1, ((0, 0), (1, Hp - H - 1), (1, Wp - W - 1), (0, 0)))
        Hf, Wh = Hp // 2, Wp // 2
        Wf = _round_up(Wh, 8)
        # Even/odd row & column phase split: every tap then reads a unit-stride
        # slice of one phase (no strided sublane access inside the kernel).
        ph = xp.reshape(N, Hf, 2, Wh, 2, Cp).transpose(0, 2, 4, 1, 3, 5)
        ph = jnp.pad(ph, ((0, 0), (0, 0), (0, 0), (0, 1), (0, Wf - Wh), (0, 0)))
        phases = 4
        xk = ph.reshape(N * 4, (Hf + 1) * Wf, Cp)

    L = xk.shape[1]
    out = pl.pallas_call(
        functools.partial(_conv3x3_kernel, stride=stride, Ho=Ho, Wo=Wo, Wf=Wf),
        out_shape=jax.ShapeDtypeStruct((N * Ho, Wo, Cp), jnp.bfloat16),
        grid=(N,),
        in_specs=[
            pl.BlockSpec((phases, L, Cp), lambda n: (n, 0, 0)),   # one image
            _const_block_spec((9, Cp, Cp), lambda n: (0, 0, 0)),  # 9 tap weights
            _const_block_spec((1, Cp), lambda n: (0, 0)),         # bias
        ],
        out_specs=pl.BlockSpec((Ho, Wo, Cp), lambda n: (n, 0, 0)),
        compiler_params=pltpu.CompilerParams(
            dimension_semantics=("parallel",),
            vmem_limit_bytes=vmem_limit,
        ),
    )(xk, w2p, b2p)
    return out.reshape(N, Ho, Wo, Cp)


# ---------------------------------------------------------------------------
# BatchNorm folding (inference) and the block forward.
# ---------------------------------------------------------------------------
def _fold_bn(w, gamma, beta, mean=None, var=None, eps=1e-5):
    """Fold inference BatchNorm into the conv weight / bias.

    y = (conv(x, w) - mean) * gamma / sqrt(var + eps) + beta
      = conv(x, w * scale) + (beta - mean * scale)
    Defaults (mean=0, var=1) match a freshly constructed nn.BatchNorm2d.
    """
    gamma = gamma.astype(jnp.float32)
    beta = beta.astype(jnp.float32)
    c = gamma.shape[0]
    mean = jnp.zeros((c,), jnp.float32) if mean is None else mean.astype(jnp.float32)
    var = jnp.ones((c,), jnp.float32) if var is None else var.astype(jnp.float32)
    scale = gamma / jnp.sqrt(var + eps)
    shape = [1] * w.ndim
    shape[-1] = c
    w_folded = (w.astype(jnp.float32) * scale.reshape(shape)).astype(jnp.bfloat16)
    bias = beta - mean * scale
    return w_folded, bias


def bottleneck_forward(x_nchw, params, stride):
    """Pallas implementation of Bottleneck.forward. Input/output NCHW."""
    tm, vmem_limit = _tpu_defaults()
    # TODO(synk): hoist the NCHW<->NHWC boundary transposes out of the block.
    x = jnp.transpose(x_nchw, (0, 2, 3, 1)).astype(jnp.bfloat16)  # NHWC bf16
    N, H, W, Cin = x.shape
    planes = params["w1"].shape[1]
    out_planes = params["w3"].shape[1]
    Cp = _round_up(planes, 128)

    w1, b1 = _fold_bn(params["w1"], params["g1"], params["be1"])
    w2, b2 = _fold_bn(params["w2"], params["g2"], params["be2"])
    w3, b3 = _fold_bn(params["w3"], params["g3"], params["be3"])
    wd, bd = _fold_bn(params["wd"], params["gd"], params["bed"])

    # Pre-pad output-channel dims to the lane width so the intermediate
    # activations stay channel-aligned end-to-end (no re-pad between convs).
    w1p = jnp.pad(w1, ((0, 0), (0, Cp - planes)))
    b1p = jnp.pad(b1, (0, Cp - planes))
    w2p = jnp.pad(w2, ((0, 0), (0, 0), (0, Cp - planes), (0, Cp - planes))
                  ).reshape(9, Cp, Cp)
    b2p = jnp.pad(b2, (0, Cp - planes)).reshape(1, Cp).astype(jnp.float32)
    w3p = jnp.pad(w3, ((0, Cp - planes), (0, 0)))

    # conv1 (1x1) + bn1 + relu  ->  (N, H, W, Cp) bf16
    y1 = _fused_matmul(x.reshape(N * H * W, Cin), w1p, b1p, relu=True,
                       out_dtype=jnp.bfloat16, tm=tm, vmem_limit=vmem_limit)
    y1 = y1.reshape(N, H, W, Cp)

    # conv2 (3x3, stride, pad=1) + bn2 + relu: in-kernel 9-tap accumulation.
    y2 = _conv2_3x3(y1, w2p, b2p, stride, vmem_limit=vmem_limit)
    _, Ho, Wo, _ = y2.shape

    # conv3 (1x1) + bn3 + projection shortcut + residual add + relu,
    # all fused into a single kernel (two MXU dots per row tile).
    # TODO(synk): replace the XLA strided-slice with an Element index_map.
    xs = x[:, ::stride, ::stride, :].reshape(N * Ho * Wo, Cin)
    y3 = _fused_matmul(y2.reshape(N * Ho * Wo, Cp), w3p, b3 + bd, relu=True,
                       out_dtype=x_nchw.dtype, shortcut=(xs, wd),
                       tm=tm, vmem_limit=vmem_limit)
    y3 = y3.reshape(N, Ho, Wo, out_planes)
    return jnp.transpose(y3, (0, 3, 1, 2))  # -> NCHW


# ---------------------------------------------------------------------------
# Pure-JAX reference and self-test.
# ---------------------------------------------------------------------------
def _reference_forward(x_nchw, params, stride):
    """Pure-JAX reference (lax.conv) mirroring the same bf16/f32 math."""
    x = jnp.transpose(x_nchw, (0, 2, 3, 1)).astype(jnp.bfloat16)
    Cin = params["w1"].shape[0]
    planes = params["w1"].shape[1]
    out_planes = params["w3"].shape[1]

    w1, b1 = _fold_bn(params["w1"], params["g1"], params["be1"])
    w2, b2 = _fold_bn(params["w2"], params["g2"], params["be2"])
    w3, b3 = _fold_bn(params["w3"], params["g3"], params["be3"])
    wd, bd = _fold_bn(params["wd"], params["gd"], params["bed"])

    def conv(x, w_hwio, s, pad):
        return jax.lax.conv_general_dilated(
            x, w_hwio, (s, s), pad,
            dimension_numbers=("NHWC", "HWIO", "NHWC"),
            preferred_element_type=jnp.float32)

    y = jnp.maximum(conv(x, w1.reshape(1, 1, Cin, planes), 1, "SAME") + b1, 0.0)
    y = y.astype(jnp.bfloat16)
    y = jnp.maximum(conv(y, w2, stride, [(1, 1), (1, 1)]) + b2, 0.0)
    y = y.astype(jnp.bfloat16)
    y3 = conv(y, w3.reshape(1, 1, planes, out_planes), 1, "SAME") + b3
    sc = conv(x, wd.reshape(1, 1, Cin, out_planes), stride, "SAME") + bd
    out = jnp.maximum(y3 + sc, 0.0)
    return jnp.transpose(out, (0, 3, 1, 2)).astype(x_nchw.dtype)


def make_params(key, in_planes, planes):
    out_planes = planes * 4
    ks = jax.random.split(key, 12)
    f32 = jnp.float32
    return {
        # conv weights, stored ready for x @ w (cin x cout layouts)
        "w1": jax.random.normal(ks[0], (in_planes, planes), f32) * 0.1,
        "w2": jax.random.normal(ks[1], (3, 3, planes, planes), f32) * 0.1,
        "w3": jax.random.normal(ks[2], (planes, out_planes), f32) * 0.1,
        "wd": jax.random.normal(ks[3], (in_planes, out_planes), f32) * 0.1,
        # batchnorm affine params (running stats default: mean=0, var=1)
        "g1": 1.0 + 0.1 * jax.random.normal(ks[4], (planes,), f32),
        "be1": 0.1 * jax.random.normal(ks[5], (planes,), f32),
        "g2": 1.0 + 0.1 * jax.random.normal(ks[6], (planes,), f32),
        "be2": 0.1 * jax.random.normal(ks[7], (planes,), f32),
        "g3": 1.0 + 0.1 * jax.random.normal(ks[8], (out_planes,), f32),
        "be3": 0.1 * jax.random.normal(ks[9], (out_planes,), f32),
        "gd": 1.0 + 0.1 * jax.random.normal(ks[10], (out_planes,), f32),
        "bed": 0.1 * jax.random.normal(ks[11], (out_planes,), f32),
    }


if __name__ == "__main__":
    # Small shapes: batch=2, in_planes=16, planes=8 (out_planes=32),
    # spatial 16x16.  stride=2 exercises the phase-split conv2 path and the
    # projection downsample; stride=1 exercises the plain padded path.
    key = jax.random.PRNGKey(0)
    kx, kp = jax.random.split(key)
    N, Cin, H, W = 2, 16, 16, 16
    planes = 8

    x = jax.random.normal(kx, (N, Cin, H, W), jnp.float32)  # NCHW like PyTorch
    params = make_params(kp, Cin, planes)

    fwd2 = jax.jit(functools.partial(bottleneck_forward, stride=2))
    out2 = jax.block_until_ready(fwd2(x, params))
    ref2 = _reference_forward(x, params, 2)
    assert out2.shape == (N, planes * 4, H // 2, W // 2), out2.shape
    assert jnp.allclose(out2, ref2, atol=2e-2, rtol=2e-2), "mismatch (stride=2)"

    fwd1 = jax.jit(functools.partial(bottleneck_forward, stride=1))
    out1 = jax.block_until_ready(fwd1(x, params))
    ref1 = _reference_forward(x, params, 1)
    assert out1.shape == (N, planes * 4, H, W), out1.shape
    assert jnp.allclose(out1, ref1, atol=2e-2, rtol=2e-2), "mismatch (stride=1)"

    print("KERNEL_OK")
</pallas_src>

<mosaic_0001>
module attributes {stable_mosaic.version = 11 : i64} {
  func.func @_fused_kernel(%arg0: i32, %arg1: memref<256x128xbf16, #tpu.memory_space<vmem>>, %arg2: memref<128x128xbf16, #tpu.memory_space<vmem>>, %arg3: memref<1x128xf32, #tpu.memory_space<vmem>>, %arg4: memref<256x128xbf16, #tpu.memory_space<vmem>>) attributes {dimension_semantics = [#tpu.dimension_semantics<parallel>], iteration_bounds = array<i64: 2>, scalar_prefetch = 0 : i64, scratch_operands = 0 : i64, tpu.core_type = #tpu.core_type<tc>, window_params = [{transform_indices = @transform_0, window_bounds = array<i64: 256, 128>}, {pipeline_mode = #tpu.pipeline_mode<synchronous>, transform_indices = @transform_1, window_bounds = array<i64: 128, 128>}, {pipeline_mode = #tpu.pipeline_mode<synchronous>, transform_indices = @transform_2, window_bounds = array<i64: 1, 128>}, {transform_indices = @transform_3, window_bounds = array<i64: 256, 128>}]} {
    %c0 = arith.constant 0 : index
    %c0_0 = arith.constant 0 : index
    %0 = vector.load %arg1[%c0, %c0_0] : memref<256x128xbf16, #tpu.memory_space<vmem>>, vector<256x128xbf16>
    %c0_1 = arith.constant 0 : index
    %c0_2 = arith.constant 0 : index
    %1 = vector.load %arg2[%c0_1, %c0_2] : memref<128x128xbf16, #tpu.memory_space<vmem>>, vector<128x128xbf16>
    %cst = arith.constant dense<0.000000e+00> : vector<256x128xf32>
    %2 = tpu.matmul %0, %1, %cst {dimension_numbers = #tpu.dot_dimension_numbers<[1], [0], [0], [1], [0, 0, 1, 1], [], []>} : vector<256x128xbf16>, vector<128x128xbf16>, vector<256x128xf32> -> vector<256x128xf32>
    %c0_3 = arith.constant 0 : index
    %c0_4 = arith.constant 0 : index
    %3 = vector.load %arg3[%c0_3, %c0_4] : memref<1x128xf32, #tpu.memory_space<vmem>>, vector<1x128xf32>
    %4 = vector.broadcast %3 : vector<1x128xf32> to vector<256x128xf32>
    %5 = arith.addf %2, %4 : vector<256x128xf32>
    %cst_5 = arith.constant 0.000000e+00 : f32
    %6 = vector.broadcast %cst_5 : f32 to vector<256x128xf32>
    %7 = arith.maximumf %5, %6 : vector<256x128xf32>
    %8 = arith.truncf %7 : vector<256x128xf32> to vector<256x128xbf16>
    %c0_6 = arith.constant 0 : index
    %c0_7 = arith.constant 0 : index
    %9 = vector.load %arg4[%c0_6, %c0_7] : memref<256x128xbf16, #tpu.memory_space<vmem>>, vector<256x128xbf16>
    tpu.vector_store %arg4[%c0_6, %c0_7], %8 {strides = array<i32>} : memref<256x128xbf16, #tpu.memory_space<vmem>>, vector<256x128xbf16>,
    return
  }
  func.func @transform_0(%arg0: i32) -> (i32, i32) {
    %c0_i32 = arith.constant 0 : i32
    %c0_i32_0 = arith.constant 0 : i32
    return %arg0, %c0_i32 : i32, i32
  }
  func.func @transform_1(%arg0: i32) -> (i32, i32) {
    %c0_i32 = arith.constant 0 : i32
    %c0_i32_0 = arith.constant 0 : i32
    %c0_i32_1 = arith.constant 0 : i32
    return %c0_i32, %c0_i32_0 : i32, i32
  }
  func.func @transform_2(%arg0: i32) -> (i32, i32) {
    %c0_i32 = arith.constant 0 : i32
    %c0_i32_0 = arith.constant 0 : i32
    %c0_i32_1 = arith.constant 0 : i32
    return %c0_i32, %c0_i32_0 : i32, i32
  }
  func.func @transform_3(%arg0: i32) -> (i32, i32) {
    %c0_i32 = arith.constant 0 : i32
    %c0_i32_0 = arith.constant 0 : i32
    return %arg0, %c0_i32 : i32, i32
  }
}

module attributes {stable_mosaic.version = 11 : i64} {
  func.func @_conv3x3_kernel(%arg0: i32, %arg1: memref<4x160x128xbf16, #tpu.memory_space<vmem>>, %arg2: memref<9x128x128xbf16, #tpu.memory_space<vmem>>, %arg3: memref<1x128xf32, #tpu.memory_space<vmem>>, %arg4: memref<8x8x128xbf16, #tpu.memory_space<vmem>>) attributes {dimension_semantics = [#tpu.dimension_semantics<parallel>], iteration_bounds = array<i64: 2>, scalar_prefetch = 0 : i64, scratch_operands = 0 : i64, tpu.core_type = #tpu.core_type<tc>, window_params = [{transform_indices = @transform_0, window_bounds = array<i64: 4, 160, 128>}, {pipeline_mode = #tpu.pipeline_mode<synchronous>, transform_indices = @transform_1, window_bounds = array<i64: 9, 128, 128>}, {pipeline_mode = #tpu.pipeline_mode<synchronous>, transform_indices = @transform_2, window_bounds = array<i64: 1, 128>}, {transform_indices = @transform_3, window_bounds = array<i64: 8, 8, 128>}]} {
    %cst = arith.constant 0.000000e+00 : f32
    %0 = vector.broadcast %cst : f32 to vector<128x128xf32>
    %c0 = arith.constant 0 : index
    %c0_0 = arith.constant 0 : index
    %c0_1 = arith.constant 0 : index
    %1 = vector.load %arg1[%c0, %c0_0, %c0_1] : memref<4x160x128xbf16, #tpu.memory_space<vmem>>, vector<1x128x128xbf16>
    %2 = vector.shape_cast %1 : vector<1x128x128xbf16> to vector<128x128xbf16>
    %c0_2 = arith.constant 0 : index
    %c0_3 = arith.constant 0 : index
    %c0_4 = arith.constant 0 : index
    %3 = vector.load %arg2[%c0_2, %c0_3, %c0_4] : memref<9x128x128xbf16, #tpu.memory_space<vmem>>, vector<1x128x128xbf16>
    %4 = vector.shape_cast %3 : vector<1x128x128xbf16> to vector<128x128xbf16>
    %cst_5 = arith.constant dense<0.000000e+00> : vector<128x128xf32>
    %5 = tpu.matmul %2, %4, %cst_5 {dimension_numbers = #tpu.dot_dimension_numbers<[1], [0], [0], [1], [0, 0, 1, 1], [], []>} : vector<128x128xbf16>, vector<128x128xbf16>, vector<128x128xf32> -> vector<128x128xf32>
    %6 = arith.addf %0, %5 : vector<128x128xf32>
    %c1 = arith.constant 1 : index
    %c0_6 = arith.constant 0 : index
    %c0_7 = arith.constant 0 : index
    %7 = vector.load %arg1[%c1, %c0_6, %c0_7] : memref<4x160x128xbf16, #tpu.memory_space<vmem>>, vector<1x128x128xbf16>
    %8 = vector.shape_cast %7 : vector<1x128x128xbf16> to vector<128x128xbf16>
    %c1_8 = arith.constant 1 : index
    %c0_9 = arith.constant 0 : index
    %c0_10 = arith.constant 0 : index
    %9 = vector.load %arg2[%c1_8, %c0_9, %c0_10] : memref<9x128x128xbf16, #tpu.memory_space<vmem>>, vector<1x128x128xbf16>
    %10 = vector.shape_cast %9 : vector<1x128x128xbf16> to vector<128x128xbf16>
    %cst_11 = arith.constant dense<0.000000e+00> : vector<128x128xf32>
    %11 = tpu.matmul %8, %10, %cst_11 {dimension_numbers = #tpu.dot_dimension_numbers<[1], [0], [0], [1], [0, 0, 1, 1], [], []>} : vector<128x128xbf16>, vector<128x128xbf16>, vector<128x128xf32> -> vector<128x128xf32>
    %12 = arith.addf %6, %11 : vector<128x128xf32>
    %c0_12 = arith.constant 0 : index
    %c1_13 = arith.constant 1 : index
    %c0_14 = arith.constant 0 : index
    %13 = vector.load %arg1[%c0_12, %c1_13, %c0_14] : memref<4x160x128xbf16, #tpu.memory_space<vmem>>, vector<1x128x128xbf16>
    %14 = vector.shape_cast %13 : vector<1x128x128xbf16> to vector<128x128xbf16>
    %c2 = arith.constant 2 : index
    %c0_15 = arith.constant 0 : index
    %c0_16 = arith.constant 0 : index
    %15 = vector.load %arg2[%c2, %c0_15, %c0_16] : memref<9x128x128xbf16, #tpu.memory_space<vmem>>, vector<1x128x128xbf16>
    %16 = vector.shape_cast %15 : vector<1x128x128xbf16> to vector<128x128xbf16>
    %cst_17 = arith.constant dense<0.000000e+00> : vector<128x128xf32>
    %17 = tpu.matmul %14, %16, %cst_17 {dimension_numbers = #tpu.dot_dimension_numbers<[1], [0], [0], [1], [0, 0, 1, 1], [], []>} : vector<128x128xbf16>, vector<128x128xbf16>, vector<128x128xf32> -> vector<128x128xf32>
    %18 = arith.addf %12, %17 : vector<128x128xf32>
    %c2_18 = arith.constant 2 : index
    %c0_19 = arith.constant 0 : index
    %c0_20 = arith.constant 0 : index
    %19 = vector.load %arg1[%c2_18, %c0_19, %c0_20] : memref<4x160x128xbf16, #tpu.memory_space<vmem>>, vector<1x128x128xbf16>
    %20 = vector.shape_cast %19 : vector<1x128x128xbf16> to vector<128x128xbf16>
    %c3 = arith.constant 3 : index
    %c0_21 = arith.constant 0 : index
    %c0_22 = arith.constant 0 : index
    %21 = vector.load %arg2[%c3, %c0_21, %c0_22] : memref<9x128x128xbf16, #tpu.memory_space<vmem>>, vector<1x128x128xbf16>
    %22 = vector.shape_cast %21 : vector<1x128x128xbf16> to vector<128x128xbf16>
    %cst_23 = arith.constant dense<0.000000e+00> : vector<128x128xf32>
    %23 = tpu.matmul %20, %22, %cst_23 {dimension_numbers = #tpu.dot_dimension_numbers<[1], [0], [0], [1], [0, 0, 1, 1], [], []>} : vector<128x128xbf16>, vector<128x128xbf16>, vector<128x128xf32> -> vector<128x128xf32>
    %24 = arith.addf %18, %23 : vector<128x128xf32>
    %c3_24 = arith.constant 3 : index
    %c0_25 = arith.constant 0 : index
    %c0_26 = arith.constant 0 : index
    %25 = vector.load %arg1[%c3_24, %c0_25, %c0_26] : memref<4x160x128xbf16, #tpu.memory_space<vmem>>, vector<1x128x128xbf16>
    %26 = vector.shape_cast %25 : vector<1x128x128xbf16> to vector<128x128xbf16>
    %c4 = arith.constant 4 : index
    %c0_27 = arith.constant 0 : index
    %c0_28 = arith.constant 0 : index
    %27 = vector.load %arg2[%c4, %c0_27, %c0_28] : memref<9x128x128xbf16, #tpu.memory_space<vmem>>, vector<1x128x128xbf16>
    %28 = vector.shape_cast %27 : vector<1x128x128xbf16> to vector<128x128xbf16>
    %cst_29 = arith.constant dense<0.000000e+00> : vector<128x128xf32>
    %29 = tpu.matmul %26, %28, %cst_29 {dimension_numbers = #tpu.dot_dimension_numbers<[1], [0], [0], [1], [0, 0, 1, 1], [], []>} : vector<128x128xbf16>, vector<128x128xbf16>, vector<128x128xf32> -> vector<128x128xf32>
    %30 = arith.addf %24, %29 : vector<128x128xf32>
    %c2_30 = arith.constant 2 : index
    %c1_31 = arith.constant 1 : index
    %c0_32 = arith.constant 0 : index
    %31 = vector.load %arg1[%c2_30, %c1_31, %c0_32] : memref<4x160x128xbf16, #tpu.memory_space<vmem>>, vector<1x128x128xbf16>
    %32 = vector.shape_cast %31 : vector<1x128x128xbf16> to vector<128x128xbf16>
    %c5 = arith.constant 5 : index
    %c0_33 = arith.constant 0 : index
    %c0_34 = arith.constant 0 : index
    %33 = vector.load %arg2[%c5, %c0_33, %c0_34] : memref<9x128x128xbf16, #tpu.memory_space<vmem>>, vector<1x128x128xbf16>
    %34 = vector.shape_cast %33 : vector<1x128x128xbf16> to vector<128x128xbf16>
    %cst_35 = arith.constant dense<0.000000e+00> : vector<128x128xf32>
    %35 = tpu.matmul %32, %34, %cst_35 {dimension_numbers = #tpu.dot_dimension_numbers<[1], [0], [0], [1], [0, 0, 1, 1], [], []>} : vector<128x128xbf16>, vector<128x128xbf16>, vector<128x128xf32> -> vector<128x128xf32>
    %36 = arith.addf %30, %35 : vector<128x128xf32>
    %c0_36 = arith.constant 0 : index
    %c16 = arith.constant 16 : index
    %c0_37 = arith.constant 0 : index
    %37 = vector.load %arg1[%c0_36, %c16, %c0_37] : memref<4x160x128xbf16, #tpu.memory_space<vmem>>, vector<1x128x128xbf16>
    %38 = vector.shape_cast %37 : vector<1x128x128xbf16> to vector<128x128xbf16>
    %c6 = arith.constant 6 : index
    %c0_38 = arith.constant 0 : index
    %c0_39 = arith.constant 0 : index
    %39 = vector.load %arg2[%c6, %c0_38, %c0_39] : memref<9x128x128xbf16, #tpu.memory_space<vmem>>, vector<1x128x128xbf16>
    %40 = vector.shape_cast %39 : vector<1x128x128xbf16> to vector<128x128xbf16>
    %cst_40 = arith.constant dense<0.000000e+00> : vector<128x128xf32>
    %41 = tpu.matmul %38, %40, %cst_40 {dimension_numbers = #tpu.dot_dimension_numbers<[1], [0], [0], [1], [0, 0, 1, 1], [], []>} : vector<128x128xbf16>, vector<128x128xbf16>, vector<128x128xf32> -> vector<128x128xf32>
    %42 = arith.addf %36, %41 : vector<128x128xf32>
    %c1_41 = arith.constant 1 : index
    %c16_42 = arith.constant 16 : index
    %c0_43 = arith.constant 0 : index
    %43 = vector.load %arg1[%c1_41, %c16_42, %c0_43] : memref<4x160x128xbf16, #tpu.memory_space<vmem>>, vector<1x128x128xbf16>
    %44 = vector.shape_cast %43 : vector<1x128x128xbf16> to vector<128x128xbf16>
    %c7 = arith.constant 7 : index
    %c0_44 = arith.constant 0 : index
    %c0_45 = arith.constant 0 : index
    %45 = vector.load %arg2[%c7, %c0_44, %c0_45] : memref<9x128x128xbf16, #tpu.memory_space<vmem>>, vector<1x128x128xbf16>
    %46 = vector.shape_cast %45 : vector<1x128x128xbf16> to vector<128x128xbf16>
    %cst_46 = arith.constant dense<0.000000e+00> : vector<128x128xf32>
    %47 = tpu.matmul %44, %46, %cst_46 {dimension_numbers = #tpu.dot_dimension_numbers<[1], [0], [0], [1], [0, 0, 1, 1], [], []>} : vector<128x128xbf16>, vector<128x128xbf16>, vector<128x128xf32> -> vector<128x128xf32>
    %48 = arith.addf %42, %47 : vector<128x128xf32>
    %c0_47 = arith.constant 0 : index
    %c17 = arith.constant 17 : index
    %c0_48 = arith.constant 0 : index
    %49 = vector.load %arg1[%c0_47, %c17, %c0_48] : memref<4x160x128xbf16, #tpu.memory_space<vmem>>, vector<1x128x128xbf16>
    %50 = vector.shape_cast %49 : vector<1x128x128xbf16> to vector<128x128xbf16>
    %c8 = arith.constant 8 : index
    %c0_49 = arith.constant 0 : index
    %c0_50 = arith.constant 0 : index
    %51 = vector.load %arg2[%c8, %c0_49, %c0_50] : memref<9x128x128xbf16, #tpu.memory_space<vmem>>, vector<1x128x128xbf16>
    %52 = vector.shape_cast %51 : vector<1x128x128xbf16> to vector<128x128xbf16>
    %cst_51 = arith.constant dense<0.000000e+00> : vector<128x128xf32>
    %53 = tpu.matmul %50, %52, %cst_51 {dimension_numbers = #tpu.dot_dimension_numbers<[1], [0], [0], [1], [0, 0, 1, 1], [], []>} : vector<128x128xbf16>, vector<128x128xbf16>, vector<128x128xf32> -> vector<128x128xf32>
    %54 = arith.addf %48, %53 : vector<128x128xf32>
    %c0_52 = arith.constant 0 : index
    %c0_53 = arith.constant 0 : index
    %55 = vector.load %arg3[%c0_52, %c0_53] : memref<1x128xf32, #tpu.memory_space<vmem>>, vector<1x128xf32>
    %56 = vector.broadcast %55 : vector<1x128xf32> to vector<128x128xf32>
    %57 = arith.addf %54, %56 : vector<128x128xf32>
    %cst_54 = arith.constant 0.000000e+00 : f32
    %58 = vector.broadcast %cst_54 : f32 to vector<128x128xf32>
    %59 = arith.maximumf %57, %58 : vector<128x128xf32>
    %60 = vector.shape_cast %59 : vector<128x128xf32> to vector<8x16x128xf32>
    %61 = vector.extract_strided_slice %60 {offsets = [0, 0, 0], sizes = [8, 8, 128], strides = [1, 1, 1]} : vector<8x16x128xf32> to vector<8x8x128xf32>
    %62 = arith.truncf %61 : vector<8x8x128xf32> to vector<8x8x128xbf16>
    %c0_55 = arith.constant 0 : index
    %c0_56 = arith.constant 0 : index
    %c0_57 = arith.constant 0 : index
    %63 = vector.load %arg4[%c0_55, %c0_56, %c0_57] : memref<8x8x128xbf16, #tpu.memory_space<vmem>>, vector<8x8x128xbf16>
    tpu.vector_store %arg4[%c0_55, %c0_56, %c0_57], %62 {strides = array<i32>} : memref<8x8x128xbf16, #tpu.memory_space<vmem>>, vector<8x8x128xbf16>,
    return
  }
  func.func @transform_0(%arg0: i32) -> (i32, i32, i32) {
    %c0_i32 = arith.constant 0 : i32
    %c0_i32_0 = arith.constant 0 : i32
    %c0_i32_1 = arith.constant 0 : i32
    return %arg0, %c0_i32, %c0_i32_0 : i32, i32, i32
  }
  func.func @transform_1(%arg0: i32) -> (i32, i32, i32) {
    %c0_i32 = arith.constant 0 : i32
    %c0_i32_0 = arith.constant 0 : i32
    %c0_i32_1 = arith.constant 0 : i32
    %c0_i32_2 = arith.constant 0 : i32
    return %c0_i32, %c0_i32_0, %c0_i32_1 : i32, i32, i32
  }
  func.func @transform_2(%arg0: i32) -> (i32, i32) {
    %c0_i32 = arith.constant 0 : i32
    %c0_i32_0 = arith.constant 0 : i32
    %c0_i32_1 = arith.constant 0 : i32
    return %c0_i32, %c0_i32_0 : i32, i32
  }
  func.func @transform_3(%arg0: i32) -> (i32, i32, i32) {
    %c0_i32 = arith.constant 0 : i32
    %c0_i32_0 = arith.constant 0 : i32
    %c0_i32_1 = arith.constant 0 : i32
    return %arg0, %c0_i32, %c0_i32_0 : i32, i32, i32
  }
}

module attributes {stable_mosaic.version = 11 : i64} {
  func.func @_fused_kernel(%arg0: i32, %arg1: memref<64x128xbf16, #tpu.memory_space<vmem>>, %arg2: memref<128x128xbf16, #tpu.memory_space<vmem>>, %arg3: memref<64x128xbf16, #tpu.memory_space<vmem>>, %arg4: memref<128x128xbf16, #tpu.memory_space<vmem>>, %arg5: memref<1x128xf32, #tpu.memory_space<vmem>>, %arg6: memref<64x128xf32, #tpu.memory_space<vmem>>) attributes {dimension_semantics = [#tpu.dimension_semantics<parallel>], iteration_bounds = array<i64: 2>, scalar_prefetch = 0 : i64, scratch_operands = 0 : i64, tpu.core_type = #tpu.core_type<tc>, window_params = [{transform_indices = @transform_0, window_bounds = array<i64: 64, 128>}, {pipeline_mode = #tpu.pipeline_mode<synchronous>, transform_indices = @transform_1, window_bounds = array<i64: 128, 128>}, {transform_indices = @transform_2, window_bounds = array<i64: 64, 128>}, {pipeline_mode = #tpu.pipeline_mode<synchronous>, transform_indices = @transform_3, window_bounds = array<i64: 128, 128>}, {pipeline_mode = #tpu.pipeline_mode<synchronous>, transform_indices = @transform_4, window_bounds = array<i64: 1, 128>}, {transform_indices = @transform_5, window_bounds = array<i64: 64, 128>}]} {
    %c0 = arith.constant 0 : index
    %c0_0 = arith.constant 0 : index
    %0 = vector.load %arg1[%c0, %c0_0] : memref<64x128xbf16, #tpu.memory_space<vmem>>, vector<64x128xbf16>
    %c0_1 = arith.constant 0 : index
    %c0_2 = arith.constant 0 : index
    %1 = vector.load %arg2[%c0_1, %c0_2] : memref<128x128xbf16, #tpu.memory_space<vmem>>, vector<128x128xbf16>
    %cst = arith.constant dense<0.000000e+00> : vector<64x128xf32>
    %2 = tpu.matmul %0, %1, %cst {dimension_numbers = #tpu.dot_dimension_numbers<[1], [0], [0], [1], [0, 0, 1, 1], [], []>} : vector<64x128xbf16>, vector<128x128xbf16>, vector<64x128xf32> -> vector<64x128xf32>
    %c0_3 = arith.constant 0 : index
    %c0_4 = arith.constant 0 : index
    %3 = vector.load %arg3[%c0_3, %c0_4] : memref<64x128xbf16, #tpu.memory_space<vmem>>, vector<64x128xbf16>
    %c0_5 = arith.constant 0 : index
    %c0_6 = arith.constant 0 : index
    %4 = vector.load %arg4[%c0_5, %c0_6] : memref<128x128xbf16, #tpu.memory_space<vmem>>, vector<128x128xbf16>
    %cst_7 = arith.constant dense<0.000000e+00> : vector<64x128xf32>
    %5 = tpu.matmul %3, %4, %cst_7 {dimension_numbers = #tpu.dot_dimension_numbers<[1], [0], [0], [1], [0, 0, 1, 1], [], []>} : vector<64x128xbf16>, vector<128x128xbf16>, vector<64x128xf32> -> vector<64x128xf32>
    %6 = arith.addf %2, %5 : vector<64x128xf32>
    %c0_8 = arith.constant 0 : index
    %c0_9 = arith.constant 0 : index
    %7 = vector.load %arg5[%c0_8, %c0_9] : memref<1x128xf32, #tpu.memory_space<vmem>>, vector<1x128xf32>
    %8 = vector.broadcast %7 : vector<1x128xf32> to vector<64x128xf32>
    %9 = arith.addf %6, %8 : vector<64x128xf32>
    %cst_10 = arith.constant 0.000000e+00 : f32
    %10 = vector.broadcast %cst_10 : f32 to vector<64x128xf32>
    %11 = arith.maximumf %9, %10 : vector<64x128xf32>
    %c0_11 = arith.constant 0 : index
    %c0_12 = arith.constant 0 : index
    %12 = vector.load %arg6[%c0_11, %c0_12] : memref<64x128xf32, #tpu.memory_space<vmem>>, vector<64x128xf32>
    tpu.vector_store %arg6[%c0_11, %c0_12], %11 {strides = array<i32>} : memref<64x128xf32, #tpu.memory_space<vmem>>, vector<64x128xf32>,
    return
  }
  func.func @transform_0(%arg0: i32) -> (i32, i32) {
    %c0_i32 = arith.constant 0 : i32
    %c0_i32_0 = arith.constant 0 : i32
    return %arg0, %c0_i32 : i32, i32
  }
  func.func @transform_1(%arg0: i32) -> (i32, i32) {
    %c0_i32 = arith.constant 0 : i32
    %c0_i32_0 = arith.constant 0 : i32
    %c0_i32_1 = arith.constant 0 : i32
    return %c0_i32, %c0_i32_0 : i32, i32
  }
  func.func @transform_2(%arg0: i32) -> (i32, i32) {
    %c0_i32 = arith.constant 0 : i32
    %c0_i32_0 = arith.constant 0 : i32
    return %arg0, %c0_i32 : i32, i32
  }
  func.func @transform_3(%arg0: i32) -> (i32, i32) {
    %c0_i32 = arith.constant 0 : i32
    %c0_i32_0 = arith.constant 0 : i32
    %c0_i32_1 = arith.constant 0 : i32
    return %c0_i32, %c0_i32_0 : i32, i32
  }
  func.func @transform_4(%arg0: i32) -> (i32, i32) {
    %c0_i32 = arith.constant 0 : i32
    %c0_i32_0 = arith.constant 0 : i32
    %c0_i32_1 = arith.constant 0 : i32
    return %c0_i32, %c0_i32_0 : i32, i32
  }
  func.func @transform_5(%arg0: i32) -> (i32, i32) {
    %c0_i32 = arith.constant 0 : i32
    %c0_i32_0 = arith.constant 0 : i32
    return %arg0, %c0_i32 : i32, i32
  }
}

</mosaic_0001>

<llo_original>
// kernel: bottleneck_forward.3
$region0: #{bottleneck_forward.3}
  #allocation0 [shape = 'u32[]', space=smem, size = 0x4, offset = 0x4, fixed_abs, tag = 'smem constant byte address 0x4 - core index']
  #allocation1 [shape = 'u32[144,128]{1,0:T(1,128)}', space=vmem, size = 0x12000, scoped, tag = 'internal scratch']
  %s0 = inlined_call_operand.vmem [shape: bf16[512,128], index: 0, kind: input, shape index: {}]
  %s1 = inlined_call_operand.vmem [shape: bf16[128,128], index: 1, kind: input, shape index: {}]
  %s2 = inlined_call_operand.vmem [shape: f32[1,128], index: 2, kind: input, shape index: {}]
  %s3 = inlined_call_operand.vmem [shape: bf16[512,128], index: 3, kind: output, shape index: {}]
  %s4 = sld [smem:[#allocation0]]
  $region45: #{bottleneck_forward.3} parent=0
    _
  %s6 = ssub.s32 1, %s4
  %s7 = scalar_select 0, %s6, %s4
  loop: start=0, step=1, limit=4
  $region2: #{bottleneck_forward.3} parent=0 // loop_pre_header
    _
  $region3: #{bottleneck_forward.3} parent=0 // loop_header
    %s9 = sphi 0, %s13
    %p10 = scmp.ge.s32.totalorder %s9, 4
    %s19 = sphi 0, %s21
    %s22 = sphi 0, %s19
    %s23 = sphi 0, %s22
    %s39 = sphi 0, %s23
    %s43 = sphi 0, %s43
    %s45 = sphi 0, %s43
    %s46 = sphi 0, %s45
    %s60 = sphi 0, %s46
    %s64 = sphi 0, %s64
    %s66 = sphi 0, %s64
    %s67 = sphi 0, %s66
    %s81 = sphi 0, %s67
    %s87 = sphi 0, %s89
    %s90 = sphi 0, %s87
    %s91 = sphi 0, %s90
    %s107 = sphi 0, %s91
  $region4: #{bottleneck_forward.3} parent=0 // loop_header_branch
    %12 = sbr.rel (%p10) target = $region8
  $region5: #{bottleneck_forward.3} parent=0 // loop_body
    %s14 = ssub.s32 %s9, 1
    %s15 = ssub.s32 %s9, 2
    %s16 = sadd.s32 %s9, 1
    %s17 = ssub.s32 %s9, %s16
    %p18 = scmp.eq.s32.totalorder %s17, 0
    %s20 = sadd.s32 %s19, 1
    %s21 = scalar_select %p18, %s19, %s20
    %p24 = pneg %p18
    %p25 = scmp.eq.s32.totalorder %s9, 1
    %p26 = por %p24, %p25
    %p27 = scmp.ne.s32.totalorder %s19, %s22
    %p28 = scmp.eq.s32.totalorder %s9, 0
    %p29 = por %p27, %p28
    %p30 = scmp.ne.s32.totalorder %s19, %s22
    %p31 = scmp.eq.s32.totalorder %s14, 1
    %p32 = por %p30, %p31
    %p33 = scmp.ne.s32.totalorder %s22, %s23
    %p34 = scmp.eq.s32.totalorder %s14, 0
    %p35 = por %p33, %p34
    %p36 = scmp.ne.s32.totalorder %s22, %s23
    %p37 = scmp.eq.s32.totalorder %s15, 1
    %p38 = por %p36, %p37
    %p40 = scmp.ne.s32.totalorder %s23, %s39
    %p41 = scmp.eq.s32.totalorder %s15, 0
    %p42 = por %p40, %p41
    %s44 = sadd.s32 %s43, 1
    %p47 = scmp.eq.s32.totalorder %s9, 1
    %p48 = scmp.ne.s32.totalorder %s43, %s45
    %p49 = scmp.eq.s32.totalorder %s9, 0
    %p50 = por %p48, %p49
    %p51 = scmp.ne.s32.totalorder %s43, %s45
    %p52 = scmp.eq.s32.totalorder %s14, 1
    %p53 = por %p51, %p52
    %p54 = scmp.ne.s32.totalorder %s45, %s46
    %p55 = scmp.eq.s32.totalorder %s14, 0
    %p56 = por %p54, %p55
    %p57 = scmp.ne.s32.totalorder %s45, %s46
    %p58 = scmp.eq.s32.totalorder %s15, 1
    %p59 = por %p57, %p58
    %p61 = scmp.ne.s32.totalorder %s46, %s60
    %p62 = scmp.eq.s32.totalorder %s15, 0
    %p63 = por %p61, %p62
    %s65 = sadd.s32 %s64, 1
    %p68 = scmp.eq.s32.totalorder %s9, 1
    %p69 = scmp.ne.s32.totalorder %s64, %s66
    %p70 = scmp.eq.s32.totalorder %s9, 0
    %p71 = por %p69, %p70
    %p72 = scmp.ne.s32.totalorder %s64, %s66
    %p73 = scmp.eq.s32.totalorder %s14, 1
    %p74 = por %p72, %p73
    %p75 = scmp.ne.s32.totalorder %s66, %s67
    %p76 = scmp.eq.s32.totalorder %s14, 0
    %p77 = por %p75, %p76
    %p78 = scmp.ne.s32.totalorder %s66, %s67
    %p79 = scmp.eq.s32.totalorder %s15, 1
    %p80 = por %p78, %p79
    %p82 = scmp.ne.s32.totalorder %s67, %s81
    %p83 = scmp.eq.s32.totalorder %s15, 0
    %p84 = por %p82, %p83
    %s85 = ssub.s32 %s9, %s16
    %p86 = scmp.eq.s32.totalorder %s85, 0
    %s88 = sadd.s32 %s87, 1
    %s89 = scalar_select %p86, %s87, %s88
    %p92 = pneg %p86
    %p93 = scmp.eq.s32.totalorder %s9, 1
    %p94 = por %p92, %p93
    %p95 = scmp.ne.s32.totalorder %s87, %s90
    %p96 = scmp.eq.s32.totalorder %s9, 0
    %p97 = por %p95, %p96
    %p98 = scmp.ne.s32.totalorder %s87, %s90
    %p99 = scmp.eq.s32.totalorder %s14, 1
    %p100 = por %p98, %p99
    %p101 = scmp.ne.s32.totalorder %s90, %s91
    %p102 = scmp.eq.s32.totalorder %s14, 0
    %p103 = por %p101, %p102
    %p104 = scmp.ne.s32.totalorder %s90, %s91
    %p105 = scmp.eq.s32.totalorder %s15, 1
    %p106 = por %p104, %p105
    %p108 = scmp.ne.s32.totalorder %s91, %s107
    %p109 = scmp.eq.s32.totalorder %s15, 0
    %p110 = por %p108, %p109
    %p111 = scmp.le.s32.totalorder 1, %s9
    %p112 = scmp.lt.s32.totalorder %s9, 3
    %p113 = pnand %p111, %p112
    %p114 = pneg %p113
    // Predicated region
    $region9: #{bottleneck_forward.3} parent=5 // pred_check
      _
    $region10: #{bottleneck_forward.3} parent=5 // pred_check_branch
      %116 = sbr.rel (%p113) target = $region12
    $region11: #{bottleneck_forward.3} parent=5 // pred_region
      %s117 = ssub.s32 %s9, 1
      // Predicated region
      $region13: #{bottleneck_forward.3} parent=11 // pred_check
        %p118 = pneg %p56
      $region14: #{bottleneck_forward.3} parent=11 // pred_check_branch
        %120 = sbr.rel (%p118) target = $region16
      $region15: #{bottleneck_forward.3} parent=11 // pred_region
        _
      $region16: #{bottleneck_forward.3} parent=11 // pred_fallthru
        _
      // Predicated region
      $region17: #{bottleneck_forward.3} parent=11 // pred_check
        %p121 = pneg %p77
      $region18: #{bottleneck_forward.3} parent=11 // pred_check_branch
        %123 = sbr.rel (%p121) target = $region20
      $region19: #{bottleneck_forward.3} parent=11 // pred_region
        _
      $region20: #{bottleneck_forward.3} parent=11 // pred_fallthru
        _
    $region12: #{bottleneck_forward.3} parent=5 // pred_fallthru
      _
    %p124 = scmp.lt.s32.totalorder %s9, 2
    // Predicated region
    $region21: #{bottleneck_forward.3} parent=5 // pred_check
      %p125 = pneg %p124
    $region22: #{bottleneck_forward.3} parent=5 // pred_check_branch
      %127 = sbr.rel (%p125) target = $region24
    $region23: #{bottleneck_forward.3} parent=5 // pred_region
      // Predicated region
      $region25: #{bottleneck_forward.3} parent=23 // pred_check
        %p128 = pneg %p29
      $region26: #{bottleneck_forward.3} parent=23 // pred_check_branch
        %130 = sbr.rel (%p128) target = $region28
      $region27: #{bottleneck_forward.3} parent=23 // pred_region
        %s131 = smul.u32 32, %s9
        %p132 = scmp.lt.s32.totalorder %s131, 63
        %s133 = scalar_select %p132, %s131, 63
        %s134 = smul.addr %s133, 4
        %s135 = scalar_lea.vmem %s0, %s134
        %s136 = smul.u32 32, %s9
      $region28: #{bottleneck_forward.3} parent=23 // pred_fallthru
        _
    $region24: #{bottleneck_forward.3} parent=5 // pred_fallthru
      _
    %p137 = scmp.le.s32.totalorder 1, %s9
    %p138 = scmp.lt.s32.totalorder %s9, 3
    %p139 = pnand %p137, %p138
    %p140 = pneg %p139
    // Predicated region
    $region29: #{bottleneck_forward.3} parent=5 // pred_check
      _
    $region30: #{bottleneck_forward.3} parent=5 // pred_check_branch
      %142 = sbr.rel (%p139) target = $region32
    $region31: #{bottleneck_forward.3} parent=5 // pred_region
      %s143 = ssub.s32 %s9, 1
      %s144 = smul.u32 32, %s14
      %p145 = scmp.lt.s32.totalorder %s144, 63
      %s146 = scalar_select %p145, %s144, 63
      %s147 = smul.addr %s146, 4
      %s148 = scalar_lea.vmem %s0, %s147
      %p149 = pneg %p35
      %p150 = pneg %p32
      %p151 = pneg %p56
      %p152 = pneg %p53
      %p153 = pneg %p77
      %p154 = pneg %p74
      %p155 = pneg %p103
      %p156 = pneg %p100
      %s157 = smul.u32 32, %s14
      %p158 = scmp.lt.s32.totalorder %s157, 63
      %s159 = scalar_select %p158, %s157, 63
      %s160 = smul.addr %s159, 4
      %s161 = scalar_lea.vmem %s3, %s160
      %s162 = smul.u32 32, %s14
      %p163 = scmp.lt.s32.totalorder %s162, 63
      %s164 = scalar_select %p163, %s162, 63
      %s165 = smul.addr %s164, 4
      %s166 = scalar_lea.vmem %s0, %s165
      %s167 = smul.u32 32, %s14
      %s168 = smul.u32 32, %s14
      %p169 = scmp.lt.s32.totalorder %s168, 63
      %s170 = scalar_select %p169, %s168, 63
      %s171 = smul.addr %s170, 4
      %s172 = scalar_lea.vmem %s3, %s171
      %s173 = smul.u32 32, %s14
      %v175 = vld [vmem:[%s166] sm:$0xf]
      %v176 = vld [vmem:[%s166 + $0x4] sm:$0xf]
      %v177 = vld [vmem:[%s166 + $0x8] sm:$0xf]
      %v178 = vld [vmem:[%s166 + $0xc] sm:$0xf]
      %v179 = vld [vmem:[%s166 + $0x10] sm:$0xf]
      %v180 = vld [vmem:[%s166 + $0x14] sm:$0xf]
      %v181 = vld [vmem:[%s166 + $0x18] sm:$0xf]
      %v182 = vld [vmem:[%s166 + $0x1c] sm:$0xf]
      %v183 = vld [vmem:[%s166 + $0x20] sm:$0xf]
      %v184 = vld [vmem:[%s166 + $0x24] sm:$0xf]
      %v185 = vld [vmem:[%s166 + $0x28] sm:$0xf]
      %v186 = vld [vmem:[%s166 + $0x2c] sm:$0xf]
      %v187 = vld [vmem:[%s166 + $0x30] sm:$0xf]
      %v188 = vld [vmem:[%s166 + $0x34] sm:$0xf]
      %v189 = vld [vmem:[%s166 + $0x38] sm:$0xf]
      %v190 = vld [vmem:[%s166 + $0x3c] sm:$0xf]
      %v191 = vld [vmem:[%s166 + $0x40] sm:$0xf]
      %v192 = vld [vmem:[%s166 + $0x44] sm:$0xf]
      %v193 = vld [vmem:[%s166 + $0x48] sm:$0xf]
      %v194 = vld [vmem:[%s166 + $0x4c] sm:$0xf]
      %v195 = vld [vmem:[%s166 + $0x50] sm:$0xf]
      %v196 = vld [vmem:[%s166 + $0x54] sm:$0xf]
      %v197 = vld [vmem:[%s166 + $0x58] sm:$0xf]
      %v198 = vld [vmem:[%s166 + $0x5c] sm:$0xf]
      %v199 = vld [vmem:[%s166 + $0x60] sm:$0xf]
      %v200 = vld [vmem:[%s166 + $0x64] sm:$0xf]
      %v201 = vld [vmem:[%s166 + $0x68] sm:$0xf]
      %v202 = vld [vmem:[%s166 + $0x6c] sm:$0xf]
      %v203 = vld [vmem:[%s166 + $0x70] sm:$0xf]
      %v204 = vld [vmem:[%s166 + $0x74] sm:$0xf]
      %v205 = vld [vmem:[%s166 + $0x78] sm:$0xf]
      %v206 = vld [vmem:[%s166 + $0x7c] sm:$0xf]
      %v207 = vld [vmem:[%s1] sm:$0xf]
      %v208 = vld [vmem:[%s1 + $0x4] sm:$0xf]
      %v209 = vld [vmem:[%s1 + $0x8] sm:$0xf]
      %v210 = vld [vmem:[%s1 + $0xc] sm:$0xf]
      %v211 = vld [vmem:[%s1 + $0x10] sm:$0xf]
      %v212 = vld [vmem:[%s1 + $0x14] sm:$0xf]
      %v213 = vld [vmem:[%s1 + $0x18] sm:$0xf]
      %v214 = vld [vmem:[%s1 + $0x1c] sm:$0xf]
      %v215 = vld [vmem:[%s1 + $0x20] sm:$0xf]
      %v216 = vld [vmem:[%s1 + $0x24] sm:$0xf]
      %v217 = vld [vmem:[%s1 + $0x28] sm:$0xf]
      %v218 = vld [vmem:[%s1 + $0x2c] sm:$0xf]
      %v219 = vld [vmem:[%s1 + $0x30] sm:$0xf]
      %v220 = vld [vmem:[%s1 + $0x34] sm:$0xf]
      %v221 = vld [vmem:[%s1 + $0x38] sm:$0xf]
      %v222 = vld [vmem:[%s1 + $0x3c] sm:$0xf]
      %v223 = vld [vmem:[%s2] sm:$0x1]
      %v225 = vlaneseq
      %v226 = vshrl.u32 %v225, 7
      %v227 = vsub.s32 0, %v226
      %v228 = vrot.slane %v223, %v227
      %v262 = vunpack.c.l.b16 %v175
      %v263 = vunpack.c.l.b16 %v176
      %v264 = vunpack.c.l.b16 %v177
      %v265 = vunpack.c.l.b16 %v178
      %v266 = vunpack.c.l.b16 %v179
      %v267 = vunpack.c.l.b16 %v180
      %v268 = vunpack.c.l.b16 %v181
      %v269 = vunpack.c.l.b16 %v182
      %v270 = vunpack.c.l.b16 %v183
      %v271 = vunpack.c.l.b16 %v184
      %v272 = vunpack.c.l.b16 %v185
      %v273 = vunpack.c.l.b16 %v186
      %v274 = vunpack.c.l.b16 %v187
      %v275 = vunpack.c.l.b16 %v188
      %v276 = vunpack.c.l.b16 %v189
      %v277 = vunpack.c.l.b16 %v190
      %v278 = vunpack.c.l.b16 %v191
      %v279 = vunpack.c.l.b16 %v192
      %v280 = vunpack.c.l.b16 %v193
      %v281 = vunpack.c.l.b16 %v194
      %v282 = vunpack.c.l.b16 %v195
      %v283 = vunpack.c.l.b16 %v196
      %v284 = vunpack.c.l.b16 %v197
      %v285 = vunpack.c.l.b16 %v198
      %v286 = vunpack.c.l.b16 %v199
      %v287 = vunpack.c.l.b16 %v200
      %v288 = vunpack.c.l.b16 %v201
      %v289 = vunpack.c.l.b16 %v202
      %v290 = vunpack.c.l.b16 %v203
      %v291 = vunpack.c.l.b16 %v204
      %v292 = vunpack.c.l.b16 %v205
      %v293 = vunpack.c.l.b16 %v206
      %v294 = vpack.c.b16 %v263, %v262
      %v295 = vpack.c.b16 %v265, %v264
      %v296 = vpack.c.b16 %v267, %v266
      %v297 = vpack.c.b16 %v269, %v268
      %v298 = vpack.c.b16 %v271, %v270
      %v299 = vpack.c.b16 %v273, %v272
      %v300 = vpack.c.b16 %v275, %v274
      %v301 = vpack.c.b16 %v277, %v276
      %v302 = vpack.c.b16 %v279, %v278
      %v303 = vpack.c.b16 %v281, %v280
      %v304 = vpack.c.b16 %v283, %v282
      %v305 = vpack.c.b16 %v285, %v284
      %v306 = vpack.c.b16 %v287, %v286
      %v307 = vpack.c.b16 %v289, %v288
      %v308 = vpack.c.b16 %v291, %v290
      %v309 = vpack.c.b16 %v293, %v292
      %v342 = vunpack.c.l.b16 %v207
      %v343 = vunpack.c.l.b16 %v208
      %v344 = vunpack.c.l.b16 %v209
      %v345 = vunpack.c.l.b16 %v210
      %v346 = vunpack.c.l.b16 %v211
      %v347 = vunpack.c.l.b16 %v212
      %v348 = vunpack.c.l.b16 %v213
      %v349 = vunpack.c.l.b16 %v214
      %v350 = vunpack.c.l.b16 %v215
      %v351 = vunpack.c.l.b16 %v216
      %v352 = vunpack.c.l.b16 %v217
      %v353 = vunpack.c.l.b16 %v218
      %v354 = vunpack.c.l.b16 %v219
      %v355 = vunpack.c.l.b16 %v220
      %v356 = vunpack.c.l.b16 %v221
      %v357 = vunpack.c.l.b16 %v222
      %v358 = vpack.c.b16 %v343, %v342
      %v359 = vpack.c.b16 %v345, %v344
      %v360 = vpack.c.b16 %v347, %v346
      %v361 = vpack.c.b16 %v349, %v348
      %v362 = vpack.c.b16 %v351, %v350
      %v363 = vpack.c.b16 %v353, %v352
      %v364 = vpack.c.b16 %v355, %v354
      %v365 = vpack.c.b16 %v357, %v356
      %374 = vmatprep.subr.bf16.mxu0 0
      %375 = vmatpush1.bf16.msra.mxu0 %v358
      %376 = vmatprep.subr.bf16.mxu0 0
      %377 = vmatpush1.bf16.msra.mxu0 %v359
      %378 = vmatprep.subr.bf16.mxu0 0
      %379 = vmatpush1.bf16.msra.mxu0 %v360
      %380 = vmatprep.subr.bf16.mxu0 0
      %381 = vmatpush1.bf16.msra.mxu0 %v361
      %382 = vmatprep.subr.bf16.mxu0 0
      %383 = vmatpush1.bf16.msra.mxu0 %v362
      %384 = vmatprep.subr.bf16.mxu0 0
      %385 = vmatpush1.bf16.msra.mxu0 %v363
      %386 = vmatprep.subr.bf16.mxu0 0
      %387 = vmatpush1.bf16.msra.mxu0 %v364
      %388 = vmatprep.subr.bf16.mxu0 0
      %389 = vmatpush1.bf16.msra.mxu0 %v365
      %390 = vmatprep.subr.bf16.mxu0 0
      %391 = vmatpush1.bf16.msra.mxu0 0
      %392 = vmatprep.subr.bf16.mxu0 0
      %393 = vmatpush1.bf16.msra.mxu0 0
      %394 = vmatprep.subr.bf16.mxu0 0
      %395 = vmatpush1.bf16.msra.mxu0 0
      %396 = vmatprep.subr.bf16.mxu0 0
      %397 = vmatpush1.bf16.msra.mxu0 0
      %398 = vmatprep.subr.bf16.mxu0 0
      %399 = vmatpush1.bf16.msra.mxu0 0
      %400 = vmatprep.subr.bf16.mxu0 0
      %401 = vmatpush1.bf16.msra.mxu0 0
      %402 = vmatprep.subr.bf16.mxu0 0
      %403 = vmatpush1.bf16.msra.mxu0 0
      %404 = vmatprep.subr.bf16.mxu0 0
      %405 = vmatpush1.bf16.msra.mxu0 0
      %406 = vmatprep.mubr.bf16.mxu0 0
      %407 = vmatmul.mubr.bf16.gmra.mrb[0].mxu0 %v294
      %v408 = vpop.f32.mrb[0].mxu0
      %v409 = vadd.f32 %v228, %v408
      %v410 = vpop.f32.mrb[0].mxu0
      %v411 = vpop.f32.mrb[0].mxu0
      %v412 = vadd.f32 %v228, %v411
      %v413 = vpop.f32.mrb[0].mxu0
      %414 = vmatprep.mubr.bf16.mxu0 0
      %415 = vmatmul.mubr.bf16.gmra.mrb[0].mxu0 %v295
      %v416 = vpop.f32.mrb[0].mxu0
      %v417 = vadd.f32 %v228, %v416
      %v418 = vpop.f32.mrb[0].mxu0
      %v419 = vpop.f32.mrb[0].mxu0
      %v420 = vadd.f32 %v228, %v419
      %v421 = vpop.f32.mrb[0].mxu0
      %422 = vmatprep.mubr.bf16.mxu0 0
      %423 = vmatmul.mubr.bf16.gmra.mrb[0].mxu0 %v296
      %v424 = vpop.f32.mrb[0].mxu0
      %v425 = vadd.f32 %v228, %v424
      %v426 = vpop.f32.mrb[0].mxu0
      %v427 = vpop.f32.mrb[0].mxu0
      %v428 = vadd.f32 %v228, %v427
      %v429 = vpop.f32.mrb[0].mxu0
      %430 = vmatprep.mubr.bf16.mxu0 0
      %431 = vmatmul.mubr.bf16.gmra.mrb[0].mxu0 %v297
      %v432 = vpop.f32.mrb[0].mxu0
      %v433 = vadd.f32 %v228, %v432
      %v434 = vpop.f32.mrb[0].mxu0
      %v435 = vpop.f32.mrb[0].mxu0
      %v436 = vadd.f32 %v228, %v435
      %v437 = vpop.f32.mrb[0].mxu0
      %438 = vmatprep.mubr.bf16.mxu0 0
      %439 = vmatmul.mubr.bf16.gmra.mrb[0].mxu0 %v298
      %v440 = vpop.f32.mrb[0].mxu0
      %v441 = vadd.f32 %v228, %v440
      %v442 = vpop.f32.mrb[0].mxu0
      %v443 = vpop.f32.mrb[0].mxu0
      %v444 = vadd.f32 %v228, %v443
      %v445 = vpop.f32.mrb[0].mxu0
      %446 = vmatprep.mubr.bf16.mxu0 0
      %447 = vmatmul.mubr.bf16.gmra.mrb[0].mxu0 %v299
      %v448 = vpop.f32.mrb[0].mxu0
      %v449 = vadd.f32 %v228, %v448
      %v450 = vpop.f32.mrb[0].mxu0
      %v451 = vpop.f32.mrb[0].mxu0
      %v452 = vadd.f32 %v228, %v451
      %v453 = vpop.f32.mrb[0].mxu0
      %454 = vmatprep.mubr.bf16.mxu0 0
      %455 = vmatmul.mubr.bf16.gmra.mrb[0].mxu0 %v300
      %v456 = vpop.f32.mrb[0].mxu0
      %v457 = vadd.f32 %v228, %v456
      %v458 = vpop.f32.mrb[0].mxu0
      %v459 = vpop.f32.mrb[0].mxu0
      %v460 = vadd.f32 %v228, %v459
      %v461 = vpop.f32.mrb[0].mxu0
      %462 = vmatprep.mubr.bf16.mxu0 0
      %463 = vmatmul.mubr.bf16.gmra.mrb[0].mxu0 %v301
      %v464 = vpop.f32.mrb[0].mxu0
      %v465 = vadd.f32 %v228, %v464
      %v466 = vpop.f32.mrb[0].mxu0
      %v467 = vpop.f32.mrb[0].mxu0
      %v468 = vadd.f32 %v228, %v467
      %v469 = vpop.f32.mrb[0].mxu0
      %470 = vmatprep.mubr.bf16.mxu0 0
      %471 = vmatmul.mubr.bf16.gmra.mrb[0].mxu0 %v302
      %v472 = vpop.f32.mrb[0].mxu0
      %v473 = vadd.f32 %v228, %v472
      %v474 = vpop.f32.mrb[0].mxu0
      %v475 = vpop.f32.mrb[0].mxu0
      %v476 = vadd.f32 %v228, %v475
      %v477 = vpop.f32.mrb[0].mxu0
      %478 = vmatprep.mubr.bf16.mxu0 0
      %479 = vmatmul.mubr.bf16.gmra.mrb[0].mxu0 %v303
      %v480 = vpop.f32.mrb[0].mxu0
      %v481 = vadd.f32 %v228, %v480
      %v482 = vpop.f32.mrb[0].mxu0
      %v483 = vpop.f32.mrb[0].mxu0
      %v484 = vadd.f32 %v228, %v483
      %v485 = vpop.f32.mrb[0].mxu0
      %486 = vmatprep.mubr.bf16.mxu0 0
      %487 = vmatmul.mubr.bf16.gmra.mrb[0].mxu0 %v304
      %v488 = vpop.f32.mrb[0].mxu0
      %v489 = vadd.f32 %v228, %v488
      %v490 = vpop.f32.mrb[0].mxu0
      %v491 = vpop.f32.mrb[0].mxu0
      %v492 = vadd.f32 %v228, %v491
      %v493 = vpop.f32.mrb[0].mxu0
      %494 = vmatprep.mubr.bf16.mxu0 0
      %495 = vmatmul.mubr.bf16.gmra.mrb[0].mxu0 %v305
      %v496 = vpop.f32.mrb[0].mxu0
      %v497 = vadd.f32 %v228, %v496
      %v498 = vpop.f32.mrb[0].mxu0
      %v499 = vpop.f32.mrb[0].mxu0
      %v500 = vadd.f32 %v228, %v499
      %v501 = vpop.f32.mrb[0].mxu0
      %502 = vmatprep.mubr.bf16.mxu0 0
      %503 = vmatmul.mubr.bf16.gmra.mrb[0].mxu0 %v306
      %v504 = vpop.f32.mrb[0].mxu0
      %v505 = vadd.f32 %v228, %v504
      %v506 = vpop.f32.mrb[0].mxu0
      %v507 = vpop.f32.mrb[0].mxu0
      %v508 = vadd.f32 %v228, %v507
      %v509 = vpop.f32.mrb[0].mxu0
      %510 = vmatprep.mubr.bf16.mxu0 0
      %511 = vmatmul.mubr.bf16.gmra.mrb[0].mxu0 %v307
      %v512 = vpop.f32.mrb[0].mxu0
      %v513 = vadd.f32 %v228, %v512
      %v514 = vpop.f32.mrb[0].mxu0
      %v515 = vpop.f32.mrb[0].mxu0
      %v516 = vadd.f32 %v228, %v515
      %v517 = vpop.f32.mrb[0].mxu0
      %518 = vmatprep.mubr.bf16.mxu0 0
      %519 = vmatmul.mubr.bf16.gmra.mrb[0].mxu0 %v308
      %v520 = vpop.f32.mrb[0].mxu0
      %v521 = vadd.f32 %v228, %v520
      %v522 = vpop.f32.mrb[0].mxu0
      %v523 = vpop.f32.mrb[0].mxu0
      %v524 = vadd.f32 %v228, %v523
      %v525 = vpop.f32.mrb[0].mxu0
      %526 = vmatprep.mubr.bf16.mxu0 0
      %527 = vmatmul.mubr.bf16.gmra.mrb[0].mxu0 %v309
      %v528 = vpop.f32.mrb[0].mxu0
      %v529 = vadd.f32 %v228, %v528
      %v530 = vpop.f32.mrb[0].mxu0
      %v531 = vpop.f32.mrb[0].mxu0
      %v532 = vadd.f32 %v228, %v531
      %v533 = vpop.f32.mrb[0].mxu0
      %534 = vdwg.mxu0
      %v535 = vmax.f32 %v409, 0.0
      %v536 = vmax.f32 %v412, 0.0
      %v537 = vmax.f32 %v417, 0.0
      %v538 = vmax.f32 %v420, 0.0
      %v539 = vmax.f32 %v425, 0.0
      %v540 = vmax.f32 %v428, 0.0
      %v541 = vmax.f32 %v433, 0.0
      %v542 = vmax.f32 %v436, 0.0
      %v543 = vmax.f32 %v441, 0.0
      %v544 = vmax.f32 %v444, 0.0
      %v545 = vmax.f32 %v449, 0.0
      %v546 = vmax.f32 %v452, 0.0
      %v547 = vmax.f32 %v457, 0.0
      %v548 = vmax.f32 %v460, 0.0
      %v549 = vmax.f32 %v465, 0.0
      %v550 = vmax.f32 %v468, 0.0
      %v551 = vmax.f32 %v473, 0.0
      %v552 = vmax.f32 %v476, 0.0
      %v553 = vmax.f32 %v481, 0.0
      %v554 = vmax.f32 %v484, 0.0
      %v555 = vmax.f32 %v489, 0.0
      %v556 = vmax.f32 %v492, 0.0
      %v557 = vmax.f32 %v497, 0.0
      %v558 = vmax.f32 %v500, 0.0
      %v559 = vmax.f32 %v505, 0.0
      %v560 = vmax.f32 %v508, 0.0
      %v561 = vmax.f32 %v513, 0.0
      %v562 = vmax.f32 %v516, 0.0
      %v563 = vmax.f32 %v521, 0.0
      %v564 = vmax.f32 %v524, 0.0
      %v565 = vmax.f32 %v529, 0.0
      %v566 = vmax.f32 %v532, 0.0
      %v567 = vpack.c.bf16 %v536, %v535
      %v568 = vpack.c.bf16 %v538, %v537
      %v569 = vpack.c.bf16 %v540, %v539
      %v570 = vpack.c.bf16 %v542, %v541
      %v571 = vpack.c.bf16 %v544, %v543
      %v572 = vpack.c.bf16 %v546, %v545
      %v573 = vpack.c.bf16 %v548, %v547
      %v574 = vpack.c.bf16 %v550, %v549
      %v575 = vpack.c.bf16 %v552, %v551
      %v576 = vpack.c.bf16 %v554, %v553
      %v577 = vpack.c.bf16 %v556, %v555
      %v578 = vpack.c.bf16 %v558, %v557
      %v579 = vpack.c.bf16 %v560, %v559
      %v580 = vpack.c.bf16 %v562, %v561
      %v581 = vpack.c.bf16 %v564, %v563
      %v582 = vpack.c.bf16 %v566, %v565
      %v599 = vunpack.c.l.b16 %v567
      %v600 = vunpack.c.h.b16 %v567
      %v601 = vunpack.c.l.b16 %v568
      %v602 = vunpack.c.h.b16 %v568
      %v603 = vunpack.c.l.b16 %v569
      %v604 = vunpack.c.h.b16 %v569
      %v605 = vunpack.c.l.b16 %v570
      %v606 = vunpack.c.h.b16 %v570
      %v607 = vunpack.c.l.b16 %v571
      %v608 = vunpack.c.h.b16 %v571
      %v609 = vunpack.c.l.b16 %v572
      %v610 = vunpack.c.h.b16 %v572
      %v611 = vunpack.c.l.b16 %v573
      %v612 = vunpack.c.h.b16 %v573
      %v613 = vunpack.c.l.b16 %v574
      %v614 = vunpack.c.h.b16 %v574
      %v615 = vunpack.c.l.b16 %v575
      %v616 = vunpack.c.h.b16 %v575
      %v617 = vunpack.c.l.b16 %v576
      %v618 = vunpack.c.h.b16 %v576
      %v619 = vunpack.c.l.b16 %v577
      %v620 = vunpack.c.h.b16 %v577
      %v621 = vunpack.c.l.b16 %v578
      %v622 = vunpack.c.h.b16 %v578
      %v623 = vunpack.c.l.b16 %v579
      %v624 = vunpack.c.h.b16 %v579
      %v625 = vunpack.c.l.b16 %v580
      %v626 = vunpack.c.h.b16 %v580
      %v627 = vunpack.c.l.b16 %v581
      %v628 = vunpack.c.h.b16 %v581
      %v629 = vunpack.c.l.b16 %v582
      %v630 = vunpack.c.h.b16 %v582
      %v631 = vpack.c.b16 %v599, %v599
      %v632 = vpack.c.b16 %v600, %v600
      %v633 = vpack.c.b16 %v601, %v601
      %v634 = vpack.c.b16 %v602, %v602
      %v635 = vpack.c.b16 %v603, %v603
      %v636 = vpack.c.b16 %v604, %v604
      %v637 = vpack.c.b16 %v605, %v605
      %v638 = vpack.c.b16 %v606, %v606
      %v639 = vpack.c.b16 %v607, %v607
      %v640 = vpack.c.b16 %v608, %v608
      %v641 = vpack.c.b16 %v609, %v609
      %v642 = vpack.c.b16 %v610, %v610
      %v643 = vpack.c.b16 %v611, %v611
      %v644 = vpack.c.b16 %v612, %v612
      %v645 = vpack.c.b16 %v613, %v613
      %v646 = vpack.c.b16 %v614, %v614
      %v647 = vpack.c.b16 %v615, %v615
      %v648 = vpack.c.b16 %v616, %v616
      %v649 = vpack.c.b16 %v617, %v617
      %v650 = vpack.c.b16 %v618, %v618
      %v651 = vpack.c.b16 %v619, %v619
      %v652 = vpack.c.b16 %v620, %v620
      %v653 = vpack.c.b16 %v621, %v621
      %v654 = vpack.c.b16 %v622, %v622
      %v655 = vpack.c.b16 %v623, %v623
      %v656 = vpack.c.b16 %v624, %v624
      %v657 = vpack.c.b16 %v625, %v625
      %v658 = vpack.c.b16 %v626, %v626
      %v659 = vpack.c.b16 %v627, %v627
      %v660 = vpack.c.b16 %v628, %v628
      %v661 = vpack.c.b16 %v629, %v629
      %v662 = vpack.c.b16 %v630, %v630
      %695 = vst [vmem:[%s172] sm:$0xf] %v631
      %696 = vst [vmem:[%s172 + $0x4] sm:$0xf] %v632
      %697 = vst [vmem:[%s172 + $0x8] sm:$0xf] %v633
      %698 = vst [vmem:[%s172 + $0xc] sm:$0xf] %v634
      %699 = vst [vmem:[%s172 + $0x10] sm:$0xf] %v635
      %700 = vst [vmem:[%s172 + $0x14] sm:$0xf] %v636
      %701 = vst [vmem:[%s172 + $0x18] sm:$0xf] %v637
      %702 = vst [vmem:[%s172 + $0x1c] sm:$0xf] %v638
      %703 = vst [vmem:[%s172 + $0x20] sm:$0xf] %v639
      %704 = vst [vmem:[%s172 + $0x24] sm:$0xf] %v640
      %705 = vst [vmem:[%s172 + $0x28] sm:$0xf] %v641
      %706 = vst [vmem:[%s172 + $0x2c] sm:$0xf] %v642
      %707 = vst [vmem:[%s172 + $0x30] sm:$0xf] %v643
      %708 = vst [vmem:[%s172 + $0x34] sm:$0xf] %v644
      %709 = vst [vmem:[%s172 + $0x38] sm:$0xf] %v645
      %710 = vst [vmem:[%s172 + $0x3c] sm:$0xf] %v646
      %711 = vst [vmem:[%s172 + $0x40] sm:$0xf] %v647
      %712 = vst [vmem:[%s172 + $0x44] sm:$0xf] %v648
      %713 = vst [vmem:[%s172 + $0x48] sm:$0xf] %v649
      %714 = vst [vmem:[%s172 + $0x4c] sm:$0xf] %v650
      %715 = vst [vmem:[%s172 + $0x50] sm:$0xf] %v651
      %716 = vst [vmem:[%s172 + $0x54] sm:$0xf] %v652
      %717 = vst [vmem:[%s172 + $0x58] sm:$0xf] %v653
      %718 = vst [vmem:[%s172 + $0x5c] sm:$0xf] %v654
      %719 = vst [vmem:[%s172 + $0x60] sm:$0xf] %v655
      %720 = vst [vmem:[%s172 + $0x64] sm:$0xf] %v656
      %721 = vst [vmem:[%s172 + $0x68] sm:$0xf] %v657
      %722 = vst [vmem:[%s172 + $0x6c] sm:$0xf] %v658
      %723 = vst [vmem:[%s172 + $0x70] sm:$0xf] %v659
      %724 = vst [vmem:[%s172 + $0x74] sm:$0xf] %v660
      %725 = vst [vmem:[%s172 + $0x78] sm:$0xf] %v661
      %726 = vst [vmem:[%s172 + $0x7c] sm:$0xf] %v662
      %s727 = smul.u32 32, %s14
      %p728 = scmp.lt.s32.totalorder %s727, 63
      %s729 = scalar_select %p728, %s727, 63
      %s730 = smul.addr %s729, 4
      %s731 = scalar_lea.vmem %s3, %s730
      // Predicated region
      $region33: #{bottleneck_forward.3} parent=31 // pred_check
        %p732 = pneg %p100
      $region34: #{bottleneck_forward.3} parent=31 // pred_check_branch
        %734 = sbr.rel (%p732) target = $region36
      $region35: #{bottleneck_forward.3} parent=31 // pred_region
        %s735 = smul.u32 32, %s14
      $region36: #{bottleneck_forward.3} parent=31 // pred_fallthru
        _
    $region32: #{bottleneck_forward.3} parent=5 // pred_fallthru
      _
    %p736 = scmp.le.s32.totalorder 2, %s9
    // Predicated region
    $region37: #{bottleneck_forward.3} parent=5 // pred_check
      %p737 = pneg %p736
    $region38: #{bottleneck_forward.3} parent=5 // pred_check_branch
      %739 = sbr.rel (%p737) target = $region40
    $region39: #{bottleneck_forward.3} parent=5 // pred_region
      %s740 = ssub.s32 %s9, 2
      // Predicated region
      $region41: #{bottleneck_forward.3} parent=39 // pred_check
        %p741 = pneg %p106
      $region42: #{bottleneck_forward.3} parent=39 // pred_check_branch
        %743 = sbr.rel (%p741) target = $region44
      $region43: #{bottleneck_forward.3} parent=39 // pred_region
        %s744 = smul.u32 32, %s15
        %p745 = scmp.lt.s32.totalorder %s744, 63
        %s746 = scalar_select %p745, %s744, 63
        %s747 = smul.addr %s746, 4
        %s748 = scalar_lea.vmem %s3, %s747
      $region44: #{bottleneck_forward.3} parent=39 // pred_fallthru
        _
    $region40: #{bottleneck_forward.3} parent=5 // pred_fallthru
      _
  $region6: #{bottleneck_forward.3} parent=0 // loop_footer
    %s13 = sadd.s32 1, %s9
  $region7: #{bottleneck_forward.3} parent=0 // loop_footer_branch
    %8 = sbr.rel target = $region3
  $region8: #{bottleneck_forward.3} parent=0 // loop_exit
    _

// kernel: bottleneck_forward.5
$region0: #{bottleneck_forward.5}
  #allocation0 [shape = 'u32[]', space=smem, size = 0x4, offset = 0x4, fixed_abs, tag = 'smem constant byte address 0x4 - core index']
  #allocation1 [shape = 'u32[144,128]{1,0:T(1,128)}', space=vmem, size = 0x12000, scoped, tag = 'internal scratch']
  %s0 = inlined_call_operand.vmem [shape: bf16[128,128], index: 0, kind: input, shape index: {}]
  %s1 = inlined_call_operand.vmem [shape: bf16[128,128], index: 1, kind: input, shape index: {}]
  %s2 = inlined_call_operand.vmem [shape: bf16[128,128], index: 2, kind: input, shape index: {}]
  %s3 = inlined_call_operand.vmem [shape: bf16[128,128], index: 3, kind: input, shape index: {}]
  %s4 = inlined_call_operand.vmem [shape: f32[1,128], index: 4, kind: input, shape index: {}]
  %s5 = inlined_call_operand.hbm [shape: f32[128,128], index: 5, kind: output, shape index: {}]
  %s6 = sld [smem:[#allocation0]]
  $region53: #{bottleneck_forward.5} parent=0
    _
  %s8 = ssub.s32 1, %s6
  %s9 = scalar_select 0, %s8, %s6
  $region1: #{bottleneck_forward.5} parent=0
    #allocation2 [shape = 'u8[65536]{0}', space=vmem, size = 0x10000, scoped, tag = 'output window, operand 0']
    #allocation3 [shape = 's32[2]{0}', space=sflag, size = 0x8, scoped, tag = 'scoped memory for bottleneck_forward.5']
    %10 = vsyncpa [#allocation3], 0
    %s11 = scalar_lea.sflag [#allocation3], 1
    %12 = vsyncpa %s11, 0
    loop: start=0, step=1, limit=4
    $region2: #{bottleneck_forward.5} parent=1 // loop_pre_header
      _
    $region3: #{bottleneck_forward.5} parent=1 // loop_header
      %s14 = sphi 0, %s18
      %p15 = scmp.ge.s32.totalorder %s14, 4
      %s24 = sphi 0, %s26
      %s27 = sphi 0, %s24
      %s28 = sphi 0, %s27
      %s44 = sphi 0, %s28
      %s48 = sphi 0, %s48
      %s50 = sphi 0, %s48
      %s51 = sphi 0, %s50
      %s65 = sphi 0, %s51
      %s71 = sphi 0, %s73
      %s74 = sphi 0, %s71
      %s75 = sphi 0, %s74
      %s91 = sphi 0, %s75
      %s95 = sphi 0, %s95
      %s97 = sphi 0, %s95
      %s98 = sphi 0, %s97
      %s112 = sphi 0, %s98
      %s116 = sphi 0, %s116
      %s118 = sphi 0, %s116
      %s119 = sphi 0, %s118
      %s133 = sphi 0, %s119
      %s139 = sphi 0, %s141
      %s142 = sphi 0, %s139
      %s143 = sphi 0, %s142
      %s159 = sphi 0, %s143
    $region4: #{bottleneck_forward.5} parent=1 // loop_header_branch
      %17 = sbr.rel (%p15) target = $region8
    $region5: #{bottleneck_forward.5} parent=1 // loop_body
      %s19 = ssub.s32 %s14, 1
      %s20 = ssub.s32 %s14, 2
      %s21 = sadd.s32 %s14, 1
      %s22 = ssub.s32 %s14, %s21
      %p23 = scmp.eq.s32.totalorder %s22, 0
      %s25 = sadd.s32 %s24, 1
      %s26 = scalar_select %p23, %s24, %s25
      %p29 = pneg %p23
      %p30 = scmp.eq.s32.totalorder %s14, 1
      %p31 = por %p29, %p30
      %p32 = scmp.ne.s32.totalorder %s24, %s27
      %p33 = scmp.eq.s32.totalorder %s14, 0
      %p34 = por %p32, %p33
      %p35 = scmp.ne.s32.totalorder %s24, %s27
      %p36 = scmp.eq.s32.totalorder %s19, 1
      %p37 = por %p35, %p36
      %p38 = scmp.ne.s32.totalorder %s27, %s28
      %p39 = scmp.eq.s32.totalorder %s19, 0
      %p40 = por %p38, %p39
      %p41 = scmp.ne.s32.totalorder %s27, %s28
      %p42 = scmp.eq.s32.totalorder %s20, 1
      %p43 = por %p41, %p42
      %p45 = scmp.ne.s32.totalorder %s28, %s44
      %p46 = scmp.eq.s32.totalorder %s20, 0
      %p47 = por %p45, %p46
      %s49 = sadd.s32 %s48, 1
      %p52 = scmp.eq.s32.totalorder %s14, 1
      %p53 = scmp.ne.s32.totalorder %s48, %s50
      %p54 = scmp.eq.s32.totalorder %s14, 0
      %p55 = por %p53, %p54
      %p56 = scmp.ne.s32.totalorder %s48, %s50
      %p57 = scmp.eq.s32.totalorder %s19, 1
      %p58 = por %p56, %p57
      %p59 = scmp.ne.s32.totalorder %s50, %s51
      %p60 = scmp.eq.s32.totalorder %s19, 0
      %p61 = por %p59, %p60
      %p62 = scmp.ne.s32.totalorder %s50, %s51
      %p63 = scmp.eq.s32.totalorder %s20, 1
      %p64 = por %p62, %p63
      %p66 = scmp.ne.s32.totalorder %s51, %s65
      %p67 = scmp.eq.s32.totalorder %s20, 0
      %p68 = por %p66, %p67
      %s69 = ssub.s32 %s14, %s21
      %p70 = scmp.eq.s32.totalorder %s69, 0
      %s72 = sadd.s32 %s71, 1
      %s73 = scalar_select %p70, %s71, %s72
      %p76 = pneg %p70
      %p77 = scmp.eq.s32.totalorder %s14, 1
      %p78 = por %p76, %p77
      %p79 = scmp.ne.s32.totalorder %s71, %s74
      %p80 = scmp.eq.s32.totalorder %s14, 0
      %p81 = por %p79, %p80
      %p82 = scmp.ne.s32.totalorder %s71, %s74
      %p83 = scmp.eq.s32.totalorder %s19, 1
      %p84 = por %p82, %p83
      %p85 = scmp.ne.s32.totalorder %s74, %s75
      %p86 = scmp.eq.s32.totalorder %s19, 0
      %p87 = por %p85, %p86
      %p88 = scmp.ne.s32.totalorder %s74, %s75
      %p89 = scmp.eq.s32.totalorder %s20, 1
      %p90 = por %p88, %p89
      %p92 = scmp.ne.s32.totalorder %s75, %s91
      %p93 = scmp.eq.s32.totalorder %s20, 0
      %p94 = por %p92, %p93
      %s96 = sadd.s32 %s95, 1
      %p99 = scmp.eq.s32.totalorder %s14, 1
      %p100 = scmp.ne.s32.totalorder %s95, %s97
      %p101 = scmp.eq.s32.totalorder %s14, 0
      %p102 = por %p100, %p101
      %p103 = scmp.ne.s32.totalorder %s95, %s97
      %p104 = scmp.eq.s32.totalorder %s19, 1
      %p105 = por %p103, %p104
      %p106 = scmp.ne.s32.totalorder %s97, %s98
      %p107 = scmp.eq.s32.totalorder %s19, 0
      %p108 = por %p106, %p107
      %p109 = scmp.ne.s32.totalorder %s97, %s98
      %p110 = scmp.eq.s32.totalorder %s20, 1
      %p111 = por %p109, %p110
      %p113 = scmp.ne.s32.totalorder %s98, %s112
      %p114 = scmp.eq.s32.totalorder %s20, 0
      %p115 = por %p113, %p114
      %s117 = sadd.s32 %s116, 1
      %p120 = scmp.eq.s32.totalorder %s14, 1
      %p121 = scmp.ne.s32.totalorder %s116, %s118
      %p122 = scmp.eq.s32.totalorder %s14, 0
      %p123 = por %p121, %p122
      %p124 = scmp.ne.s32.totalorder %s116, %s118
      %p125 = scmp.eq.s32.totalorder %s19, 1
      %p126 = por %p124, %p125
      %p127 = scmp.ne.s32.totalorder %s118, %s119
      %p128 = scmp.eq.s32.totalorder %s19, 0
      %p129 = por %p127, %p128
      %p130 = scmp.ne.s32.totalorder %s118, %s119
      %p131 = scmp.eq.s32.totalorder %s20, 1
      %p132 = por %p130, %p131
      %p134 = scmp.ne.s32.totalorder %s119, %s133
      %p135 = scmp.eq.s32.totalorder %s20, 0
      %p136 = por %p134, %p135
      %s137 = ssub.s32 %s14, %s21
      %p138 = scmp.eq.s32.totalorder %s137, 0
      %s140 = sadd.s32 %s139, 1
      %s141 = scalar_select %p138, %s139, %s140
      %p144 = pneg %p138
      %p145 = scmp.eq.s32.totalorder %s14, 1
      %p146 = por %p144, %p145
      %p147 = scmp.ne.s32.totalorder %s139, %s142
      %p148 = scmp.eq.s32.totalorder %s14, 0
      %p149 = por %p147, %p148
      %p150 = scmp.ne.s32.totalorder %s139, %s142
      %p151 = scmp.eq.s32.totalorder %s19, 1
      %p152 = por %p150, %p151
      %p153 = scmp.ne.s32.totalorder %s142, %s143
      %p154 = scmp.eq.s32.totalorder %s19, 0
      %p155 = por %p153, %p154
      %p156 = scmp.ne.s32.totalorder %s142, %s143
      %p157 = scmp.eq.s32.totalorder %s20, 1
      %p158 = por %p156, %p157
      %p160 = scmp.ne.s32.totalorder %s143, %s159
      %p161 = scmp.eq.s32.totalorder %s20, 0
      %p162 = por %p160, %p161
      %p163 = scmp.le.s32.totalorder 1, %s14
      %p164 = scmp.lt.s32.totalorder %s14, 3
      %p165 = pnand %p163, %p164
      %p166 = pneg %p165
      // Predicated region
      $region9: #{bottleneck_forward.5} parent=5 // pred_check
        _
      $region10: #{bottleneck_forward.5} parent=5 // pred_check_branch
        %168 = sbr.rel (%p165) target = $region12
      $region11: #{bottleneck_forward.5} parent=5 // pred_region
        %s169 = ssub.s32 %s14, 1
        // Predicated region
        $region13: #{bottleneck_forward.5} parent=11 // pred_check
          %p170 = pneg %p61
        $region14: #{bottleneck_forward.5} parent=11 // pred_check_branch
          %172 = sbr.rel (%p170) target = $region16
        $region15: #{bottleneck_forward.5} parent=11 // pred_region
          _
        $region16: #{bottleneck_forward.5} parent=11 // pred_fallthru
          _
        // Predicated region
        $region17: #{bottleneck_forward.5} parent=11 // pred_check
          %p173 = pneg %p108
        $region18: #{bottleneck_forward.5} parent=11 // pred_check_branch
          %175 = sbr.rel (%p173) target = $region20
        $region19: #{bottleneck_forward.5} parent=11 // pred_region
          _
        $region20: #{bottleneck_forward.5} parent=11 // pred_fallthru
          _
        // Predicated region
        $region21: #{bottleneck_forward.5} parent=11 // pred_check
          %p176 = pneg %p129
        $region22: #{bottleneck_forward.5} parent=11 // pred_check_branch
          %178 = sbr.rel (%p176) target = $region24
        $region23: #{bottleneck_forward.5} parent=11 // pred_region
          _
        $region24: #{bottleneck_forward.5} parent=11 // pred_fallthru
          _
      $region12: #{bottleneck_forward.5} parent=5 // pred_fallthru
        _
      %p179 = scmp.lt.s32.totalorder %s14, 2
      // Predicated region
      $region25: #{bottleneck_forward.5} parent=5 // pred_check
        %p180 = pneg %p179
      $region26: #{bottleneck_forward.5} parent=5 // pred_check_branch
        %182 = sbr.rel (%p180) target = $region28
      $region27: #{bottleneck_forward.5} parent=5 // pred_region
        // Predicated region
        $region29: #{bottleneck_forward.5} parent=27 // pred_check
          %p183 = pneg %p34
        $region30: #{bottleneck_forward.5} parent=27 // pred_check_branch
          %185 = sbr.rel (%p183) target = $region32
        $region31: #{bottleneck_forward.5} parent=27 // pred_region
          %s186 = smul.u32 8, %s14
          %p187 = scmp.lt.s32.totalorder %s186, 15
          %s188 = scalar_select %p187, %s186, 15
          %s189 = smul.addr %s188, 4
          %s190 = scalar_lea.vmem %s0, %s189
          %s191 = smul.u32 8, %s14
        $region32: #{bottleneck_forward.5} parent=27 // pred_fallthru
          _
        // Predicated region
        $region33: #{bottleneck_forward.5} parent=27 // pred_check
          %p192 = pneg %p81
        $region34: #{bottleneck_forward.5} parent=27 // pred_check_branch
          %194 = sbr.rel (%p192) target = $region36
        $region35: #{bottleneck_forward.5} parent=27 // pred_region
          %s195 = smul.u32 8, %s14
          %p196 = scmp.lt.s32.totalorder %s195, 15
          %s197 = scalar_select %p196, %s195, 15
          %s198 = smul.addr %s197, 4
          %s199 = scalar_lea.vmem %s2, %s198
          %s200 = smul.u32 8, %s14
        $region36: #{bottleneck_forward.5} parent=27 // pred_fallthru
          _
      $region28: #{bottleneck_forward.5} parent=5 // pred_fallthru
        _
      %p201 = scmp.le.s32.totalorder 1, %s14
      %p202 = scmp.lt.s32.totalorder %s14, 3
      %p203 = pnand %p201, %p202
      %p204 = pneg %p203
      // Predicated region
      $region37: #{bottleneck_forward.5} parent=5 // pred_check
        _
      $region38: #{bottleneck_forward.5} parent=5 // pred_check_branch
        %206 = sbr.rel (%p203) target = $region40
      $region39: #{bottleneck_forward.5} parent=5 // pred_region
        %s207 = ssub.s32 %s14, 1
        %s208 = smul.u32 8, %s19
        %p209 = scmp.lt.s32.totalorder %s208, 15
        %s210 = scalar_select %p209, %s208, 15
        %s211 = smul.addr %s210, 4
        %s212 = scalar_lea.vmem %s0, %s211
        %p213 = pneg %p40
        %p214 = pneg %p37
        %p215 = pneg %p61
        %p216 = pneg %p58
        %s217 = smul.u32 8, %s19
        %p218 = scmp.lt.s32.totalorder %s217, 15
        %s219 = scalar_select %p218, %s217, 15
        %s220 = smul.addr %s219, 4
        %s221 = scalar_lea.vmem %s2, %s220
        %p222 = pneg %p87
        %p223 = pneg %p84
        %p224 = pneg %p108
        %p225 = pneg %p105
        %p226 = pneg %p129
        %p227 = pneg %p126
        %p228 = pneg %p155
        %p229 = pneg %p152
        %s230 = sand.u32 %s142, 1
        %s231 = scalar_lea.sflag [#allocation3], %s230
        %s232 = sand.u32 %s142, 1
        %s233 = smul.addr %s232, 64
        %s234 = scalar_lea.vmem [#allocation2], %s233
        %s235 = smul.u32 8, %s19
        %p236 = scmp.lt.s32.totalorder %s235, 15
        %s237 = scalar_select %p236, %s235, 15
        %s238 = smul.addr %s237, 4
        %s239 = scalar_lea.vmem %s0, %s238
        %s240 = smul.u32 8, %s19
        %s241 = smul.u32 8, %s19
        %p242 = scmp.lt.s32.totalorder %s241, 15
        %s243 = scalar_select %p242, %s241, 15
        %s244 = smul.addr %s243, 4
        %s245 = scalar_lea.vmem %s2, %s244
        %s246 = smul.u32 8, %s19
        %s247 = smul.u32 8, %s19
        %v249 = vld [vmem:[%s239] sm:$0xf]
        %v250 = vld [vmem:[%s239 + $0x4] sm:$0xf]
        %v251 = vld [vmem:[%s239 + $0x8] sm:$0xf]
        %v252 = vld [vmem:[%s239 + $0xc] sm:$0xf]
        %v253 = vld [vmem:[%s239 + $0x10] sm:$0xf]
        %v254 = vld [vmem:[%s239 + $0x14] sm:$0xf]
        %v255 = vld [vmem:[%s239 + $0x18] sm:$0xf]
        %v256 = vld [vmem:[%s239 + $0x1c] sm:$0xf]
        %v257 = vld [vmem:[%s1] sm:$0xf]
        %v258 = vld [vmem:[%s1 + $0x4] sm:$0xf]
        %v259 = vld [vmem:[%s1 + $0x8] sm:$0xf]
        %v260 = vld [vmem:[%s1 + $0xc] sm:$0xf]
        %v261 = vld [vmem:[%s1 + $0x10] sm:$0xf]
        %v262 = vld [vmem:[%s1 + $0x14] sm:$0xf]
        %v263 = vld [vmem:[%s1 + $0x18] sm:$0xf]
        %v264 = vld [vmem:[%s1 + $0x1c] sm:$0xf]
        %v265 = vld [vmem:[%s1 + $0x20] sm:$0xf]
        %v266 = vld [vmem:[%s1 + $0x24] sm:$0xf]
        %v267 = vld [vmem:[%s1 + $0x28] sm:$0xf]
        %v268 = vld [vmem:[%s1 + $0x2c] sm:$0xf]
        %v269 = vld [vmem:[%s1 + $0x30] sm:$0xf]
        %v270 = vld [vmem:[%s1 + $0x34] sm:$0xf]
        %v271 = vld [vmem:[%s1 + $0x38] sm:$0xf]
        %v272 = vld [vmem:[%s1 + $0x3c] sm:$0xf]
        %v273 = vld [vmem:[%s245] sm:$0xf]
        %v274 = vld [vmem:[%s245 + $0x4] sm:$0xf]
        %v275 = vld [vmem:[%s245 + $0x8] sm:$0xf]
        %v276 = vld [vmem:[%s245 + $0xc] sm:$0xf]
        %v277 = vld [vmem:[%s245 + $0x10] sm:$0xf]
        %v278 = vld [vmem:[%s245 + $0x14] sm:$0xf]
        %v279 = vld [vmem:[%s245 + $0x18] sm:$0xf]
        %v280 = vld [vmem:[%s245 + $0x1c] sm:$0xf]
        %v281 = vld [vmem:[%s3] sm:$0xf]
        %v282 = vld [vmem:[%s3 + $0x4] sm:$0xf]
        %v283 = vld [vmem:[%s3 + $0x8] sm:$0xf]
        %v284 = vld [vmem:[%s3 + $0xc] sm:$0xf]
        %v285 = vld [vmem:[%s3 + $0x10] sm:$0xf]
        %v286 = vld [vmem:[%s3 + $0x14] sm:$0xf]
        %v287 = vld [vmem:[%s3 + $0x18] sm:$0xf]
        %v288 = vld [vmem:[%s3 + $0x1c] sm:$0xf]
        %v289 = vld [vmem:[%s3 + $0x20] sm:$0xf]
        %v290 = vld [vmem:[%s3 + $0x24] sm:$0xf]
        %v291 = vld [vmem:[%s3 + $0x28] sm:$0xf]
        %v292 = vld [vmem:[%s3 + $0x2c] sm:$0xf]
        %v293 = vld [vmem:[%s3 + $0x30] sm:$0xf]
        %v294 = vld [vmem:[%s3 + $0x34] sm:$0xf]
        %v295 = vld [vmem:[%s3 + $0x38] sm:$0xf]
        %v296 = vld [vmem:[%s3 + $0x3c] sm:$0xf]
        %v305 = vunpack.c.l.b16 %v273
        %v306 = vunpack.c.l.b16 %v274
        %v307 = vunpack.c.l.b16 %v275
        %v308 = vunpack.c.l.b16 %v276
        %v309 = vunpack.c.l.b16 %v277
        %v310 = vunpack.c.l.b16 %v278
        %v311 = vunpack.c.l.b16 %v279
        %v312 = vunpack.c.l.b16 %v280
        %v313 = vpack.c.b16 %v306, %v305
        %v314 = vpack.c.b16 %v308, %v307
        %v315 = vpack.c.b16 %v310, %v309
        %v316 = vpack.c.b16 %v312, %v311
        %v337 = vunpack.c.l.b16 %v281
        %v338 = vunpack.c.l.b16 %v282
        %v339 = vunpack.c.l.b16 %v283
        %v340 = vunpack.c.l.b16 %v284
        %v341 = vunpack.c.l.b16 %v285
        %v342 = vunpack.c.l.b16 %v286
        %v343 = vunpack.c.l.b16 %v287
        %v344 = vunpack.c.l.b16 %v288
        %v345 = vunpack.c.l.b16 %v289
        %v346 = vunpack.c.l.b16 %v290
        %v347 = vunpack.c.l.b16 %v291
        %v348 = vunpack.c.l.b16 %v292
        %v349 = vunpack.c.l.b16 %v293
        %v350 = vunpack.c.l.b16 %v294
        %v351 = vunpack.c.l.b16 %v295
        %v352 = vunpack.c.l.b16 %v296
        %v353 = vpack.c.b16 %v338, %v337
        %v354 = vpack.c.b16 %v340, %v339
        %v355 = vpack.c.b16 %v342, %v341
        %v356 = vpack.c.b16 %v344, %v343
        %v357 = vpack.c.b16 %v346, %v345
        %v358 = vpack.c.b16 %v348, %v347
        %v359 = vpack.c.b16 %v350, %v349
        %v360 = vpack.c.b16 %v352, %v351
        %369 = vmatprep.subr.bf16.mxu0 0
        %370 = vmatpush1.bf16.msra.mxu0 %v353
        %371 = vmatprep.subr.bf16.mxu0 0
        %372 = vmatpush1.bf16.msra.mxu0 %v354
        %373 = vmatprep.subr.bf16.mxu0 0
        %374 = vmatpush1.bf16.msra.mxu0 %v355
        %375 = vmatprep.subr.bf16.mxu0 0
        %376 = vmatpush1.bf16.msra.mxu0 %v356
        %377 = vmatprep.subr.bf16.mxu0 0
        %378 = vmatpush1.bf16.msra.mxu0 %v357
        %379 = vmatprep.subr.bf16.mxu0 0
        %380 = vmatpush1.bf16.msra.mxu0 %v358
        %381 = vmatprep.subr.bf16.mxu0 0
        %382 = vmatpush1.bf16.msra.mxu0 %v359
        %383 = vmatprep.subr.bf16.mxu0 0
        %384 = vmatpush1.bf16.msra.mxu0 %v360
        %385 = vmatprep.subr.bf16.mxu0 0
        %386 = vmatpush1.bf16.msra.mxu0 0
        %387 = vmatprep.subr.bf16.mxu0 0
        %388 = vmatpush1.bf16.msra.mxu0 0
        %389 = vmatprep.subr.bf16.mxu0 0
        %390 = vmatpush1.bf16.msra.mxu0 0
        %391 = vmatprep.subr.bf16.mxu0 0
        %392 = vmatpush1.bf16.msra.mxu0 0
        %393 = vmatprep.subr.bf16.mxu0 0
        %394 = vmatpush1.bf16.msra.mxu0 0
        %395 = vmatprep.subr.bf16.mxu0 0
        %396 = vmatpush1.bf16.msra.mxu0 0
        %397 = vmatprep.subr.bf16.mxu0 0
        %398 = vmatpush1.bf16.msra.mxu0 0
        %399 = vmatprep.subr.bf16.mxu0 0
        %400 = vmatpush1.bf16.msra.mxu0 0
        %401 = vmatprep.mubr.bf16.mxu0 0
        %402 = vmatmul.mubr.bf16.gmra.mrb[0].mxu0 %v313
        %v403 = vpop.f32.mrb[0].mxu0
        %v404 = vadd.f32 0.0, %v403
        %v405 = vpop.f32.mrb[0].mxu0
        %v406 = vpop.f32.mrb[0].mxu0
        %v407 = vadd.f32 0.0, %v406
        %v408 = vpop.f32.mrb[0].mxu0
        %409 = vmatprep.mubr.bf16.mxu0 0
        %410 = vmatmul.mubr.bf16.gmra.mrb[0].mxu0 %v314
        %v411 = vpop.f32.mrb[0].mxu0
        %v412 = vadd.f32 0.0, %v411
        %v413 = vpop.f32.mrb[0].mxu0
        %v414 = vpop.f32.mrb[0].mxu0
        %v415 = vadd.f32 0.0, %v414
        %v416 = vpop.f32.mrb[0].mxu0
        %417 = vmatprep.mubr.bf16.mxu0 0
        %418 = vmatmul.mubr.bf16.gmra.mrb[0].mxu0 %v315
        %v419 = vpop.f32.mrb[0].mxu0
        %v420 = vadd.f32 0.0, %v419
        %v421 = vpop.f32.mrb[0].mxu0
        %v422 = vpop.f32.mrb[0].mxu0
        %v423 = vadd.f32 0.0, %v422
        %v424 = vpop.f32.mrb[0].mxu0
        %425 = vmatprep.mubr.bf16.mxu0 0
        %426 = vmatmul.mubr.bf16.gmra.mrb[0].mxu0 %v316
        %v427 = vpop.f32.mrb[0].mxu0
        %v428 = vadd.f32 0.0, %v427
        %v429 = vpop.f32.mrb[0].mxu0
        %v430 = vpop.f32.mrb[0].mxu0
        %v431 = vadd.f32 0.0, %v430
        %v432 = vpop.f32.mrb[0].mxu0
        %433 = vdwg.mxu0
        %v442 = vunpack.c.l.b16 %v249
        %v443 = vunpack.c.l.b16 %v250
        %v444 = vunpack.c.l.b16 %v251
        %v445 = vunpack.c.l.b16 %v252
        %v446 = vunpack.c.l.b16 %v253
        %v447 = vunpack.c.l.b16 %v254
        %v448 = vunpack.c.l.b16 %v255
        %v449 = vunpack.c.l.b16 %v256
        %v450 = vpack.c.b16 %v443, %v442
        %v451 = vpack.c.b16 %v445, %v444
        %v452 = vpack.c.b16 %v447, %v446
        %v453 = vpack.c.b16 %v449, %v448
        %v474 = vunpack.c.l.b16 %v257
        %v475 = vunpack.c.l.b16 %v258
        %v476 = vunpack.c.l.b16 %v259
        %v477 = vunpack.c.l.b16 %v260
        %v478 = vunpack.c.l.b16 %v261
        %v479 = vunpack.c.l.b16 %v262
        %v480 = vunpack.c.l.b16 %v263
        %v481 = vunpack.c.l.b16 %v264
        %v482 = vunpack.c.l.b16 %v265
        %v483 = vunpack.c.l.b16 %v266
        %v484 = vunpack.c.l.b16 %v267
        %v485 = vunpack.c.l.b16 %v268
        %v486 = vunpack.c.l.b16 %v269
        %v487 = vunpack.c.l.b16 %v270
        %v488 = vunpack.c.l.b16 %v271
        %v489 = vunpack.c.l.b16 %v272
        %v490 = vpack.c.b16 %v475, %v474
        %v491 = vpack.c.b16 %v477, %v476
        %v492 = vpack.c.b16 %v479, %v478
        %v493 = vpack.c.b16 %v481, %v480
        %v494 = vpack.c.b16 %v483, %v482
        %v495 = vpack.c.b16 %v485, %v484
        %v496 = vpack.c.b16 %v487, %v486
        %v497 = vpack.c.b16 %v489, %v488
        %506 = vmatprep.subr.bf16.mxu0 0
        %507 = vmatpush1.bf16.msra.mxu0 %v490
        %508 = vmatprep.subr.bf16.mxu0 0
        %509 = vmatpush1.bf16.msra.mxu0 %v491
        %510 = vmatprep.subr.bf16.mxu0 0
        %511 = vmatpush1.bf16.msra.mxu0 %v492
        %512 = vmatprep.subr.bf16.mxu0 0
        %513 = vmatpush1.bf16.msra.mxu0 %v493
        %514 = vmatprep.subr.bf16.mxu0 0
        %515 = vmatpush1.bf16.msra.mxu0 %v494
        %516 = vmatprep.subr.bf16.mxu0 0
        %517 = vmatpush1.bf16.msra.mxu0 %v495
        %518 = vmatprep.subr.bf16.mxu0 0
        %519 = vmatpush1.bf16.msra.mxu0 %v496
        %520 = vmatprep.subr.bf16.mxu0 0
        %521 = vmatpush1.bf16.msra.mxu0 %v497
        %522 = vmatprep.subr.bf16.mxu0 0
        %523 = vmatpush1.bf16.msra.mxu0 0
        %524 = vmatprep.subr.bf16.mxu0 0
        %525 = vmatpush1.bf16.msra.mxu0 0
        %526 = vmatprep.subr.bf16.mxu0 0
        %527 = vmatpush1.bf16.msra.mxu0 0
        %528 = vmatprep.subr.bf16.mxu0 0
        %529 = vmatpush1.bf16.msra.mxu0 0
        %530 = vmatprep.subr.bf16.mxu0 0
        %531 = vmatpush1.bf16.msra.mxu0 0
        %532 = vmatprep.subr.bf16.mxu0 0
        %533 = vmatpush1.bf16.msra.mxu0 0
        %534 = vmatprep.subr.bf16.mxu0 0
        %535 = vmatpush1.bf16.msra.mxu0 0
        %536 = vmatprep.subr.bf16.mxu0 0
        %537 = vmatpush1.bf16.msra.mxu0 0
        %538 = vmatprep.mubr.bf16.mxu0 0
        %539 = vmatmul.mubr.bf16.gmra.mrb[0].mxu0 %v450
        %v540 = vpop.f32.mrb[0].mxu0
        %v541 = vadd.f32 %v404, %v540
        %v542 = vpop.f32.mrb[0].mxu0
        %v543 = vpop.f32.mrb[0].mxu0
        %v544 = vadd.f32 %v407, %v543
        %v545 = vpop.f32.mrb[0].mxu0
        %546 = vmatprep.mubr.bf16.mxu0 0
        %547 = vmatmul.mubr.bf16.gmra.mrb[0].mxu0 %v451
        %v548 = vpop.f32.mrb[0].mxu0
        %v549 = vadd.f32 %v412, %v548
        %v550 = vpop.f32.mrb[0].mxu0
        %v551 = vpop.f32.mrb[0].mxu0
        %v552 = vadd.f32 %v415, %v551
        %v553 = vpop.f32.mrb[0].mxu0
        %554 = vmatprep.mubr.bf16.mxu0 0
        %555 = vmatmul.mubr.bf16.gmra.mrb[0].mxu0 %v452
        %v556 = vpop.f32.mrb[0].mxu0
        %v557 = vadd.f32 %v420, %v556
        %v558 = vpop.f32.mrb[0].mxu0
        %v559 = vpop.f32.mrb[0].mxu0
        %v560 = vadd.f32 %v423, %v559
        %v561 = vpop.f32.mrb[0].mxu0
        %562 = vmatprep.mubr.bf16.mxu0 0
        %563 = vmatmul.mubr.bf16.gmra.mrb[0].mxu0 %v453
        %v564 = vpop.f32.mrb[0].mxu0
        %v565 = vadd.f32 %v428, %v564
        %v566 = vpop.f32.mrb[0].mxu0
        %v567 = vpop.f32.mrb[0].mxu0
        %v568 = vadd.f32 %v431, %v567
        %v569 = vpop.f32.mrb[0].mxu0
        %570 = vdwg.mxu0
        %v571 = vld [vmem:[%s4] sm:$0x1]
        %v573 = vlaneseq
        %v574 = vshrl.u32 %v573, 7
        %v575 = vsub.s32 0, %v574
        %v576 = vrot.slane %v571, %v575
        %v578 = vadd.f32 %v541, %v576
        %v579 = vadd.f32 %v544, %v576
        %v580 = vadd.f32 %v549, %v576
        %v581 = vadd.f32 %v552, %v576
        %v582 = vadd.f32 %v557, %v576
        %v583 = vadd.f32 %v560, %v576
        %v584 = vadd.f32 %v565, %v576
        %v585 = vadd.f32 %v568, %v576
        %v586 = vmax.f32 %v578, 0.0
        %v587 = vmax.f32 %v579, 0.0
        %v588 = vmax.f32 %v580, 0.0
        %v589 = vmax.f32 %v581, 0.0
        %v590 = vmax.f32 %v582, 0.0
        %v591 = vmax.f32 %v583, 0.0
        %v592 = vmax.f32 %v584, 0.0
        %v593 = vmax.f32 %v585, 0.0
        %594 = vst [vmem:[%s234] sm:$0xff] %v586
        %595 = vst [vmem:[%s234 + $0x8] sm:$0xff] %v587
        %596 = vst [vmem:[%s234 + $0x10] sm:$0xff] %v588
        %597 = vst [vmem:[%s234 + $0x18] sm:$0xff] %v589
        %598 = vst [vmem:[%s234 + $0x20] sm:$0xff] %v590
        %599 = vst [vmem:[%s234 + $0x28] sm:$0xff] %v591
        %600 = vst [vmem:[%s234 + $0x30] sm:$0xff] %v592
        %601 = vst [vmem:[%s234 + $0x38] sm:$0xff] %v593
        %s602 = sand.u32 %s142, 1
        %s603 = scalar_lea.sflag [#allocation3], %s602
        %s604 = sand.u32 %s142, 1
        %s605 = smul.addr %s604, 64
        %s606 = scalar_lea.vmem [#allocation2], %s605
        // Predicated region
        $region41: #{bottleneck_forward.5} parent=39 // pred_check
          %p607 = pneg %p152
        $region42: #{bottleneck_forward.5} parent=39 // pred_check_branch
          %609 = sbr.rel (%p607) target = $region44
        $region43: #{bottleneck_forward.5} parent=39 // pred_region
          %s610 = smul.u32 8, %s19
          %s612 = ssub.s32 1024, 1024
          %613 = vsyncadd %s603, %s612
          %s614 = smul.addr %s610, 128
          %s615 = scalar_lea.hbm %s5, %s614
          %s616 = sshll.u32 %s606, 4
          %s617 = int_to_ptr.vmem [resolvable:$true] %s616
          %622 = dma.vmem_to_hbm [thread:$0]  %s617, 1024, %s615, %s603, 128, 128, 8
        $region44: #{bottleneck_forward.5} parent=39 // pred_fallthru
          _
      $region40: #{bottleneck_forward.5} parent=5 // pred_fallthru
        _
      %p623 = scmp.le.s32.totalorder 2, %s14
      // Predicated region
      $region45: #{bottleneck_forward.5} parent=5 // pred_check
        %p624 = pneg %p623
      $region46: #{bottleneck_forward.5} parent=5 // pred_check_branch
        %626 = sbr.rel (%p624) target = $region48
      $region47: #{bottleneck_forward.5} parent=5 // pred_region
        %s627 = ssub.s32 %s14, 2
        // Predicated region
        $region49: #{bottleneck_forward.5} parent=47 // pred_check
          %p628 = pneg %p158
        $region50: #{bottleneck_forward.5} parent=47 // pred_check_branch
          %630 = sbr.rel (%p628) target = $region52
        $region51: #{bottleneck_forward.5} parent=47 // pred_region
          %s631 = sand.u32 %s143, 1
          %s632 = scalar_lea.sflag [#allocation3], %s631
          %s633 = sand.u32 %s143, 1
          %s634 = smul.addr %s633, 64
          %s635 = scalar_lea.vmem [#allocation2], %s634
          %636 = dma.done %s632, 1024
        $region52: #{bottleneck_forward.5} parent=47 // pred_fallthru
          _
      $region48: #{bottleneck_forward.5} parent=5 // pred_fallthru
        _
    $region6: #{bottleneck_forward.5} parent=1 // loop_footer
      %s18 = sadd.s32 1, %s14
    $region7: #{bottleneck_forward.5} parent=1 // loop_footer_branch
      %13 = sbr.rel target = $region3
    $region8: #{bottleneck_forward.5} parent=1 // loop_exit
      _
    %637 = vsyncpa [#allocation3], 1
    %s638 = scalar_lea.sflag [#allocation3], 1
    %639 = vsyncpa %s638, 1

// kernel: bottleneck_forward.4
$region0: #{bottleneck_forward.4}
  #allocation0 [shape = 'u32[]', space=smem, size = 0x4, offset = 0x4, fixed_abs, tag = 'smem constant byte address 0x4 - core index']
  #allocation1 [shape = 'u32[144,128]{1,0:T(1,128)}', space=vmem, size = 0x12000, scoped, tag = 'internal scratch']
  %s0 = inlined_call_operand.vmem [shape: bf16[8,160,128], index: 0, kind: input, shape index: {}]
  %s1 = inlined_call_operand.vmem [shape: bf16[9,128,128], index: 1, kind: input, shape index: {}]
  %s2 = inlined_call_operand.vmem [shape: f32[1,128], index: 2, kind: input, shape index: {}]
  %s3 = inlined_call_operand.vmem [shape: bf16[16,8,128], index: 3, kind: output, shape index: {}]
  %s4 = sld [smem:[#allocation0]]
  $region45: #{bottleneck_forward.4} parent=0
    _
  %s6 = ssub.s32 1, %s4
  %s7 = scalar_select 0, %s6, %s4
  loop: start=0, step=1, limit=4
  $region2: #{bottleneck_forward.4} parent=0 // loop_pre_header
    _
  $region3: #{bottleneck_forward.4} parent=0 // loop_header
    %s9 = sphi 0, %s13
    %p10 = scmp.ge.s32.totalorder %s9, 4
    %s19 = sphi 0, %s21
    %s22 = sphi 0, %s19
    %s23 = sphi 0, %s22
    %s39 = sphi 0, %s23
    %s43 = sphi 0, %s43
    %s45 = sphi 0, %s43
    %s46 = sphi 0, %s45
    %s60 = sphi 0, %s46
    %s64 = sphi 0, %s64
    %s66 = sphi 0, %s64
    %s67 = sphi 0, %s66
    %s81 = sphi 0, %s67
    %s87 = sphi 0, %s89
    %s90 = sphi 0, %s87
    %s91 = sphi 0, %s90
    %s107 = sphi 0, %s91
  $region4: #{bottleneck_forward.4} parent=0 // loop_header_branch
    %12 = sbr.rel (%p10) target = $region8
  $region5: #{bottleneck_forward.4} parent=0 // loop_body
    %s14 = ssub.s32 %s9, 1
    %s15 = ssub.s32 %s9, 2
    %s16 = sadd.s32 %s9, 1
    %s17 = ssub.s32 %s9, %s16
    %p18 = scmp.eq.s32.totalorder %s17, 0
    %s20 = sadd.s32 %s19, 1
    %s21 = scalar_select %p18, %s19, %s20
    %p24 = pneg %p18
    %p25 = scmp.eq.s32.totalorder %s9, 1
    %p26 = por %p24, %p25
    %p27 = scmp.ne.s32.totalorder %s19, %s22
    %p28 = scmp.eq.s32.totalorder %s9, 0
    %p29 = por %p27, %p28
    %p30 = scmp.ne.s32.totalorder %s19, %s22
    %p31 = scmp.eq.s32.totalorder %s14, 1
    %p32 = por %p30, %p31
    %p33 = scmp.ne.s32.totalorder %s22, %s23
    %p34 = scmp.eq.s32.totalorder %s14, 0
    %p35 = por %p33, %p34
    %p36 = scmp.ne.s32.totalorder %s22, %s23
    %p37 = scmp.eq.s32.totalorder %s15, 1
    %p38 = por %p36, %p37
    %p40 = scmp.ne.s32.totalorder %s23, %s39
    %p41 = scmp.eq.s32.totalorder %s15, 0
    %p42 = por %p40, %p41
    %s44 = sadd.s32 %s43, 1
    %p47 = scmp.eq.s32.totalorder %s9, 1
    %p48 = scmp.ne.s32.totalorder %s43, %s45
    %p49 = scmp.eq.s32.totalorder %s9, 0
    %p50 = por %p48, %p49
    %p51 = scmp.ne.s32.totalorder %s43, %s45
    %p52 = scmp.eq.s32.totalorder %s14, 1
    %p53 = por %p51, %p52
    %p54 = scmp.ne.s32.totalorder %s45, %s46
    %p55 = scmp.eq.s32.totalorder %s14, 0
    %p56 = por %p54, %p55
    %p57 = scmp.ne.s32.totalorder %s45, %s46
    %p58 = scmp.eq.s32.totalorder %s15, 1
    %p59 = por %p57, %p58
    %p61 = scmp.ne.s32.totalorder %s46, %s60
    %p62 = scmp.eq.s32.totalorder %s15, 0
    %p63 = por %p61, %p62
    %s65 = sadd.s32 %s64, 1
    %p68 = scmp.eq.s32.totalorder %s9, 1
    %p69 = scmp.ne.s32.totalorder %s64, %s66
    %p70 = scmp.eq.s32.totalorder %s9, 0
    %p71 = por %p69, %p70
    %p72 = scmp.ne.s32.totalorder %s64, %s66
    %p73 = scmp.eq.s32.totalorder %s14, 1
    %p74 = por %p72, %p73
    %p75 = scmp.ne.s32.totalorder %s66, %s67
    %p76 = scmp.eq.s32.totalorder %s14, 0
    %p77 = por %p75, %p76
    %p78 = scmp.ne.s32.totalorder %s66, %s67
    %p79 = scmp.eq.s32.totalorder %s15, 1
    %p80 = por %p78, %p79
    %p82 = scmp.ne.s32.totalorder %s67, %s81
    %p83 = scmp.eq.s32.totalorder %s15, 0
    %p84 = por %p82, %p83
    %s85 = ssub.s32 %s9, %s16
    %p86 = scmp.eq.s32.totalorder %s85, 0
    %s88 = sadd.s32 %s87, 1
    %s89 = scalar_select %p86, %s87, %s88
    %p92 = pneg %p86
    %p93 = scmp.eq.s32.totalorder %s9, 1
    %p94 = por %p92, %p93
    %p95 = scmp.ne.s32.totalorder %s87, %s90
    %p96 = scmp.eq.s32.totalorder %s9, 0
    %p97 = por %p95, %p96
    %p98 = scmp.ne.s32.totalorder %s87, %s90
    %p99 = scmp.eq.s32.totalorder %s14, 1
    %p100 = por %p98, %p99
    %p101 = scmp.ne.s32.totalorder %s90, %s91
    %p102 = scmp.eq.s32.totalorder %s14, 0
    %p103 = por %p101, %p102
    %p104 = scmp.ne.s32.totalorder %s90, %s91
    %p105 = scmp.eq.s32.totalorder %s15, 1
    %p106 = por %p104, %p105
    %p108 = scmp.ne.s32.totalorder %s91, %s107
    %p109 = scmp.eq.s32.totalorder %s15, 0
    %p110 = por %p108, %p109
    %p111 = scmp.le.s32.totalorder 1, %s9
    %p112 = scmp.lt.s32.totalorder %s9, 3
    %p113 = pnand %p111, %p112
    %p114 = pneg %p113
    // Predicated region
    $region9: #{bottleneck_forward.4} parent=5 // pred_check
      _
    $region10: #{bottleneck_forward.4} parent=5 // pred_check_branch
      %116 = sbr.rel (%p113) target = $region12
    $region11: #{bottleneck_forward.4} parent=5 // pred_region
      %s117 = ssub.s32 %s9, 1
      // Predicated region
      $region13: #{bottleneck_forward.4} parent=11 // pred_check
        %p118 = pneg %p56
      $region14: #{bottleneck_forward.4} parent=11 // pred_check_branch
        %120 = sbr.rel (%p118) target = $region16
      $region15: #{bottleneck_forward.4} parent=11 // pred_region
        _
      $region16: #{bottleneck_forward.4} parent=11 // pred_fallthru
        _
      // Predicated region
      $region17: #{bottleneck_forward.4} parent=11 // pred_check
        %p121 = pneg %p77
      $region18: #{bottleneck_forward.4} parent=11 // pred_check_branch
        %123 = sbr.rel (%p121) target = $region20
      $region19: #{bottleneck_forward.4} parent=11 // pred_region
        _
      $region20: #{bottleneck_forward.4} parent=11 // pred_fallthru
        _
    $region12: #{bottleneck_forward.4} parent=5 // pred_fallthru
      _
    %p124 = scmp.lt.s32.totalorder %s9, 2
    // Predicated region
    $region21: #{bottleneck_forward.4} parent=5 // pred_check
      %p125 = pneg %p124
    $region22: #{bottleneck_forward.4} parent=5 // pred_check_branch
      %127 = sbr.rel (%p125) target = $region24
    $region23: #{bottleneck_forward.4} parent=5 // pred_region
      // Predicated region
      $region25: #{bottleneck_forward.4} parent=23 // pred_check
        %p128 = pneg %p29
      $region26: #{bottleneck_forward.4} parent=23 // pred_check_branch
        %130 = sbr.rel (%p128) target = $region28
      $region27: #{bottleneck_forward.4} parent=23 // pred_region
        %s131 = smul.u32 4, %s9
        %p132 = scmp.lt.s32.totalorder %s131, 7
        %s133 = scalar_select %p132, %s131, 7
        %s134 = smul.addr %s133, 20
        %s135 = smul.addr %s134, 4
        %s136 = scalar_lea.vmem %s0, %s135
        %s137 = smul.u32 4, %s9
      $region28: #{bottleneck_forward.4} parent=23 // pred_fallthru
        _
    $region24: #{bottleneck_forward.4} parent=5 // pred_fallthru
      _
    %p138 = scmp.le.s32.totalorder 1, %s9
    %p139 = scmp.lt.s32.totalorder %s9, 3
    %p140 = pnand %p138, %p139
    %p141 = pneg %p140
    // Predicated region
    $region29: #{bottleneck_forward.4} parent=5 // pred_check
      _
    $region30: #{bottleneck_forward.4} parent=5 // pred_check_branch
      %143 = sbr.rel (%p140) target = $region32
    $region31: #{bottleneck_forward.4} parent=5 // pred_region
      %s144 = ssub.s32 %s9, 1
      %s145 = smul.u32 4, %s14
      %p146 = scmp.lt.s32.totalorder %s145, 7
      %s147 = scalar_select %p146, %s145, 7
      %s148 = smul.addr %s147, 20
      %s149 = smul.addr %s148, 4
      %s150 = scalar_lea.vmem %s0, %s149
      %p151 = pneg %p35
      %p152 = pneg %p32
      %p153 = pneg %p56
      %p154 = pneg %p53
      %p155 = pneg %p77
      %p156 = pneg %p74
      %p157 = pneg %p103
      %p158 = pneg %p100
      %s159 = smul.u32 8, %s14
      %p160 = scmp.lt.s32.totalorder %s159, 15
      %s161 = scalar_select %p160, %s159, 15
      %s162 = smul.addr %s161, 4
      %s163 = scalar_lea.vmem %s3, %s162
      %s164 = smul.u32 4, %s14
      %p165 = scmp.lt.s32.totalorder %s164, 7
      %s166 = scalar_select %p165, %s164, 7
      %s167 = smul.addr %s166, 20
      %s168 = smul.addr %s167, 4
      %s169 = scalar_lea.vmem %s0, %s168
      %s170 = smul.u32 4, %s14
      %s171 = smul.u32 8, %s14
      %p172 = scmp.lt.s32.totalorder %s171, 15
      %s173 = scalar_select %p172, %s171, 15
      %s174 = smul.addr %s173, 4
      %s175 = scalar_lea.vmem %s3, %s174
      %s176 = smul.u32 8, %s14
      %v178 = vld [vmem:[%s169] sm:$0xf]
      %v179 = vld [vmem:[%s169 + $0x4] sm:$0xf]
      %v180 = vld [vmem:[%s169 + $0x8] sm:$0xf]
      %v181 = vld [vmem:[%s169 + $0xc] sm:$0xf]
      %v182 = vld [vmem:[%s169 + $0x10] sm:$0xf]
      %v183 = vld [vmem:[%s169 + $0x14] sm:$0xf]
      %v184 = vld [vmem:[%s169 + $0x18] sm:$0xf]
      %v185 = vld [vmem:[%s169 + $0x1c] sm:$0xf]
      %v186 = vld [vmem:[%s169 + $0x20] sm:$0xf]
      %v187 = vld [vmem:[%s169 + $0x24] sm:$0xf]
      %v188 = vld [vmem:[%s169 + $0x28] sm:$0xf]
      %v189 = vld [vmem:[%s169 + $0x2c] sm:$0xf]
      %v190 = vld [vmem:[%s169 + $0x30] sm:$0xf]
      %v191 = vld [vmem:[%s169 + $0x34] sm:$0xf]
      %v192 = vld [vmem:[%s169 + $0x38] sm:$0xf]
      %v193 = vld [vmem:[%s169 + $0x3c] sm:$0xf]
      %v194 = vld [vmem:[%s1] sm:$0xf]
      %v195 = vld [vmem:[%s1 + $0x4] sm:$0xf]
      %v196 = vld [vmem:[%s1 + $0x8] sm:$0xf]
      %v197 = vld [vmem:[%s1 + $0xc] sm:$0xf]
      %v198 = vld [vmem:[%s1 + $0x10] sm:$0xf]
      %v199 = vld [vmem:[%s1 + $0x14] sm:$0xf]
      %v200 = vld [vmem:[%s1 + $0x18] sm:$0xf]
      %v201 = vld [vmem:[%s1 + $0x1c] sm:$0xf]
      %v202 = vld [vmem:[%s1 + $0x20] sm:$0xf]
      %v203 = vld [vmem:[%s1 + $0x24] sm:$0xf]
      %v204 = vld [vmem:[%s1 + $0x28] sm:$0xf]
      %v205 = vld [vmem:[%s1 + $0x2c] sm:$0xf]
      %v206 = vld [vmem:[%s1 + $0x30] sm:$0xf]
      %v207 = vld [vmem:[%s1 + $0x34] sm:$0xf]
      %v208 = vld [vmem:[%s1 + $0x38] sm:$0xf]
      %v209 = vld [vmem:[%s1 + $0x3c] sm:$0xf]
      %s210 = scalar_lea.vmem %s169, 80
      %v211 = vld [vmem:[%s210] sm:$0xf]
      %v212 = vld [vmem:[%s210 + $0x4] sm:$0xf]
      %v213 = vld [vmem:[%s210 + $0x8] sm:$0xf]
      %v214 = vld [vmem:[%s210 + $0xc] sm:$0xf]
      %v215 = vld [vmem:[%s210 + $0x10] sm:$0xf]
      %v216 = vld [vmem:[%s210 + $0x14] sm:$0xf]
      %v217 = vld [vmem:[%s210 + $0x18] sm:$0xf]
      %v218 = vld [vmem:[%s210 + $0x1c] sm:$0xf]
      %v219 = vld [vmem:[%s210 + $0x20] sm:$0xf]
      %v220 = vld [vmem:[%s210 + $0x24] sm:$0xf]
      %v221 = vld [vmem:[%s210 + $0x28] sm:$0xf]
      %v222 = vld [vmem:[%s210 + $0x2c] sm:$0xf]
      %v223 = vld [vmem:[%s210 + $0x30] sm:$0xf]
      %v224 = vld [vmem:[%s210 + $0x34] sm:$0xf]
      %v225 = vld [vmem:[%s210 + $0x38] sm:$0xf]
      %v226 = vld [vmem:[%s210 + $0x3c] sm:$0xf]
      %s227 = scalar_lea.vmem %s1, 64
      %v228 = vld [vmem:[%s227] sm:$0xf]
      %v229 = vld [vmem:[%s227 + $0x4] sm:$0xf]
      %v230 = vld [vmem:[%s227 + $0x8] sm:$0xf]
      %v231 = vld [vmem:[%s227 + $0xc] sm:$0xf]
      %v232 = vld [vmem:[%s227 + $0x10] sm:$0xf]
      %v233 = vld [vmem:[%s227 + $0x14] sm:$0xf]
      %v234 = vld [vmem:[%s227 + $0x18] sm:$0xf]
      %v235 = vld [vmem:[%s227 + $0x1c] sm:$0xf]
      %v236 = vld [vmem:[%s227 + $0x20] sm:$0xf]
      %v237 = vld [vmem:[%s227 + $0x24] sm:$0xf]
      %v238 = vld [vmem:[%s227 + $0x28] sm:$0xf]
      %v239 = vld [vmem:[%s227 + $0x2c] sm:$0xf]
      %v240 = vld [vmem:[%s227 + $0x30] sm:$0xf]
      %v241 = vld [vmem:[%s227 + $0x34] sm:$0xf]
      %v242 = vld [vmem:[%s227 + $0x38] sm:$0xf]
      %v243 = vld [vmem:[%s227 + $0x3c] sm:$0xf]
      %v260 = vunpack.c.l.b16 %v211
      %v261 = vunpack.c.l.b16 %v212
      %v262 = vunpack.c.l.b16 %v213
      %v263 = vunpack.c.l.b16 %v214
      %v264 = vunpack.c.l.b16 %v215
      %v265 = vunpack.c.l.b16 %v216
      %v266 = vunpack.c.l.b16 %v217
      %v267 = vunpack.c.l.b16 %v218
      %v268 = vunpack.c.l.b16 %v219
      %v269 = vunpack.c.l.b16 %v220
      %v270 = vunpack.c.l.b16 %v221
      %v271 = vunpack.c.l.b16 %v222
      %v272 = vunpack.c.l.b16 %v223
      %v273 = vunpack.c.l.b16 %v224
      %v274 = vunpack.c.l.b16 %v225
      %v275 = vunpack.c.l.b16 %v226
      %v276 = vpack.c.b16 %v261, %v260
      %v277 = vpack.c.b16 %v263, %v262
      %v278 = vpack.c.b16 %v265, %v264
      %v279 = vpack.c.b16 %v267, %v266
      %v280 = vpack.c.b16 %v269, %v268
      %v281 = vpack.c.b16 %v271, %v270
      %v282 = vpack.c.b16 %v273, %v272
      %v283 = vpack.c.b16 %v275, %v274
      %v308 = vunpack.c.l.b16 %v228
      %v309 = vunpack.c.l.b16 %v229
      %v310 = vunpack.c.l.b16 %v230
      %v311 = vunpack.c.l.b16 %v231
      %v312 = vunpack.c.l.b16 %v232
      %v313 = vunpack.c.l.b16 %v233
      %v314 = vunpack.c.l.b16 %v234
      %v315 = vunpack.c.l.b16 %v235
      %v316 = vunpack.c.l.b16 %v236
      %v317 = vunpack.c.l.b16 %v237
      %v318 = vunpack.c.l.b16 %v238
      %v319 = vunpack.c.l.b16 %v239
      %v320 = vunpack.c.l.b16 %v240
      %v321 = vunpack.c.l.b16 %v241
      %v322 = vunpack.c.l.b16 %v242
      %v323 = vunpack.c.l.b16 %v243
      %v324 = vpack.c.b16 %v309, %v308
      %v325 = vpack.c.b16 %v311, %v310
      %v326 = vpack.c.b16 %v313, %v312
      %v327 = vpack.c.b16 %v315, %v314
      %v328 = vpack.c.b16 %v317, %v316
      %v329 = vpack.c.b16 %v319, %v318
      %v330 = vpack.c.b16 %v321, %v320
      %v331 = vpack.c.b16 %v323, %v322
      %340 = vmatprep.subr.bf16.mxu0 0
      %341 = vmatpush1.bf16.msra.mxu0 %v324
      %342 = vmatprep.subr.bf16.mxu0 0
      %343 = vmatpush1.bf16.msra.mxu0 %v325
      %344 = vmatprep.subr.bf16.mxu0 0
      %345 = vmatpush1.bf16.msra.mxu0 %v326
      %346 = vmatprep.subr.bf16.mxu0 0
      %347 = vmatpush1.bf16.msra.mxu0 %v327
      %348 = vmatprep.subr.bf16.mxu0 0
      %349 = vmatpush1.bf16.msra.mxu0 %v328
      %350 = vmatprep.subr.bf16.mxu0 0
      %351 = vmatpush1.bf16.msra.mxu0 %v329
      %352 = vmatprep.subr.bf16.mxu0 0
      %353 = vmatpush1.bf16.msra.mxu0 %v330
      %354 = vmatprep.subr.bf16.mxu0 0
      %355 = vmatpush1.bf16.msra.mxu0 %v331
      %356 = vmatprep.subr.bf16.mxu0 0
      %357 = vmatpush1.bf16.msra.mxu0 0
      %358 = vmatprep.subr.bf16.mxu0 0
      %359 = vmatpush1.bf16.msra.mxu0 0
      %360 = vmatprep.subr.bf16.mxu0 0
      %361 = vmatpush1.bf16.msra.mxu0 0
      %362 = vmatprep.subr.bf16.mxu0 0
      %363 = vmatpush1.bf16.msra.mxu0 0
      %364 = vmatprep.subr.bf16.mxu0 0
      %365 = vmatpush1.bf16.msra.mxu0 0
      %366 = vmatprep.subr.bf16.mxu0 0
      %367 = vmatpush1.bf16.msra.mxu0 0
      %368 = vmatprep.subr.bf16.mxu0 0
      %369 = vmatpush1.bf16.msra.mxu0 0
      %370 = vmatprep.subr.bf16.mxu0 0
      %371 = vmatpush1.bf16.msra.mxu0 0
      %372 = vmatprep.mubr.bf16.mxu0 0
      %373 = vmatmul.mubr.bf16.gmra.mrb[0].mxu0 %v276
      %v374 = vpop.f32.mrb[0].mxu0
      %v375 = vadd.f32 0.0, %v374
      %v376 = vpop.f32.mrb[0].mxu0
      %v377 = vpop.f32.mrb[0].mxu0
      %v378 = vpop.f32.mrb[0].mxu0
      %379 = vmatprep.mubr.bf16.mxu0 0
      %380 = vmatmul.mubr.bf16.gmra.mrb[0].mxu0 %v277
      %v381 = vpop.f32.mrb[0].mxu0
      %v382 = vadd.f32 0.0, %v381
      %v383 = vpop.f32.mrb[0].mxu0
      %v384 = vpop.f32.mrb[0].mxu0
      %v385 = vpop.f32.mrb[0].mxu0
      %386 = vmatprep.mubr.bf16.mxu0 0
      %387 = vmatmul.mubr.bf16.gmra.mrb[0].mxu0 %v278
      %v388 = vpop.f32.mrb[0].mxu0
      %v389 = vadd.f32 0.0, %v388
      %v390 = vpop.f32.mrb[0].mxu0
      %v391 = vpop.f32.mrb[0].mxu0
      %v392 = vpop.f32.mrb[0].mxu0
      %393 = vmatprep.mubr.bf16.mxu0 0
      %394 = vmatmul.mubr.bf16.gmra.mrb[0].mxu0 %v279
      %v395 = vpop.f32.mrb[0].mxu0
      %v396 = vadd.f32 0.0, %v395
      %v397 = vpop.f32.mrb[0].mxu0
      %v398 = vpop.f32.mrb[0].mxu0
      %v399 = vpop.f32.mrb[0].mxu0
      %400 = vmatprep.mubr.bf16.mxu0 0
      %401 = vmatmul.mubr.bf16.gmra.mrb[0].mxu0 %v280
      %v402 = vpop.f32.mrb[0].mxu0
      %v403 = vadd.f32 0.0, %v402
      %v404 = vpop.f32.mrb[0].mxu0
      %v405 = vpop.f32.mrb[0].mxu0
      %v406 = vpop.f32.mrb[0].mxu0
      %407 = vmatprep.mubr.bf16.mxu0 0
      %408 = vmatmul.mubr.bf16.gmra.mrb[0].mxu0 %v281
      %v409 = vpop.f32.mrb[0].mxu0
      %v410 = vadd.f32 0.0, %v409
      %v411 = vpop.f32.mrb[0].mxu0
      %v412 = vpop.f32.mrb[0].mxu0
      %v413 = vpop.f32.mrb[0].mxu0
      %414 = vmatprep.mubr.bf16.mxu0 0
      %415 = vmatmul.mubr.bf16.gmra.mrb[0].mxu0 %v282
      %v416 = vpop.f32.mrb[0].mxu0
      %v417 = vadd.f32 0.0, %v416
      %v418 = vpop.f32.mrb[0].mxu0
      %v419 = vpop.f32.mrb[0].mxu0
      %v420 = vpop.f32.mrb[0].mxu0
      %421 = vmatprep.mubr.bf16.mxu0 0
      %422 = vmatmul.mubr.bf16.gmra.mrb[0].mxu0 %v283
      %v423 = vpop.f32.mrb[0].mxu0
      %v424 = vadd.f32 0.0, %v423
      %v425 = vpop.f32.mrb[0].mxu0
      %v426 = vpop.f32.mrb[0].mxu0
      %v427 = vpop.f32.mrb[0].mxu0
      %428 = vdwg.mxu0
      %v445 = vunpack.c.l.b16 %v178
      %v446 = vunpack.c.l.b16 %v179
      %v447 = vunpack.c.l.b16 %v180
      %v448 = vunpack.c.l.b16 %v181
      %v449 = vunpack.c.l.b16 %v182
      %v450 = vunpack.c.l.b16 %v183
      %v451 = vunpack.c.l.b16 %v184
      %v452 = vunpack.c.l.b16 %v185
      %v453 = vunpack.c.l.b16 %v186
      %v454 = vunpack.c.l.b16 %v187
      %v455 = vunpack.c.l.b16 %v188
      %v456 = vunpack.c.l.b16 %v189
      %v457 = vunpack.c.l.b16 %v190
      %v458 = vunpack.c.l.b16 %v191
      %v459 = vunpack.c.l.b16 %v192
      %v460 = vunpack.c.l.b16 %v193
      %v461 = vpack.c.b16 %v446, %v445
      %v462 = vpack.c.b16 %v448, %v447
      %v463 = vpack.c.b16 %v450, %v449
      %v464 = vpack.c.b16 %v452, %v451
      %v465 = vpack.c.b16 %v454, %v453
      %v466 = vpack.c.b16 %v456, %v455
      %v467 = vpack.c.b16 %v458, %v457
      %v468 = vpack.c.b16 %v460, %v459
      %v493 = vunpack.c.l.b16 %v194
      %v494 = vunpack.c.l.b16 %v195
      %v495 = vunpack.c.l.b16 %v196
      %v496 = vunpack.c.l.b16 %v197
      %v497 = vunpack.c.l.b16 %v198
      %v498 = vunpack.c.l.b16 %v199
      %v499 = vunpack.c.l.b16 %v200
      %v500 = vunpack.c.l.b16 %v201
      %v501 = vunpack.c.l.b16 %v202
      %v502 = vunpack.c.l.b16 %v203
      %v503 = vunpack.c.l.b16 %v204
      %v504 = vunpack.c.l.b16 %v205
      %v505 = vunpack.c.l.b16 %v206
      %v506 = vunpack.c.l.b16 %v207
      %v507 = vunpack.c.l.b16 %v208
      %v508 = vunpack.c.l.b16 %v209
      %v509 = vpack.c.b16 %v494, %v493
      %v510 = vpack.c.b16 %v496, %v495
      %v511 = vpack.c.b16 %v498, %v497
      %v512 = vpack.c.b16 %v500, %v499
      %v513 = vpack.c.b16 %v502, %v501
      %v514 = vpack.c.b16 %v504, %v503
      %v515 = vpack.c.b16 %v506, %v505
      %v516 = vpack.c.b16 %v508, %v507
      %525 = vmatprep.subr.bf16.mxu0 0
      %526 = vmatpush1.bf16.msra.mxu0 %v509
      %527 = vmatprep.subr.bf16.mxu0 0
      %528 = vmatpush1.bf16.msra.mxu0 %v510
      %529 = vmatprep.subr.bf16.mxu0 0
      %530 = vmatpush1.bf16.msra.mxu0 %v511
      %531 = vmatprep.subr.bf16.mxu0 0
      %532 = vmatpush1.bf16.msra.mxu0 %v512
      %533 = vmatprep.subr.bf16.mxu0 0
      %534 = vmatpush1.bf16.msra.mxu0 %v513
      %535 = vmatprep.subr.bf16.mxu0 0
      %536 = vmatpush1.bf16.msra.mxu0 %v514
      %537 = vmatprep.subr.bf16.mxu0 0
      %538 = vmatpush1.bf16.msra.mxu0 %v515
      %539 = vmatprep.subr.bf16.mxu0 0
      %540 = vmatpush1.bf16.msra.mxu0 %v516
      %541 = vmatprep.subr.bf16.mxu0 0
      %542 = vmatpush1.bf16.msra.mxu0 0
      %543 = vmatprep.subr.bf16.mxu0 0
      %544 = vmatpush1.bf16.msra.mxu0 0
      %545 = vmatprep.subr.bf16.mxu0 0
      %546 = vmatpush1.bf16.msra.mxu0 0
      %547 = vmatprep.subr.bf16.mxu0 0
      %548 = vmatpush1.bf16.msra.mxu0 0
      %549 = vmatprep.subr.bf16.mxu0 0
      %550 = vmatpush1.bf16.msra.mxu0 0
      %551 = vmatprep.subr.bf16.mxu0 0
      %552 = vmatpush1.bf16.msra.mxu0 0
      %553 = vmatprep.subr.bf16.mxu0 0
      %554 = vmatpush1.bf16.msra.mxu0 0
      %555 = vmatprep.subr.bf16.mxu0 0
      %556 = vmatpush1.bf16.msra.mxu0 0
      %557 = vmatprep.mubr.bf16.mxu0 0
      %558 = vmatmul.mubr.bf16.gmra.mrb[0].mxu0 %v461
      %v559 = vpop.f32.mrb[0].mxu0
      %v560 = vadd.f32 %v375, %v559
      %v561 = vpop.f32.mrb[0].mxu0
      %v562 = vpop.f32.mrb[0].mxu0
      %v563 = vpop.f32.mrb[0].mxu0
      %564 = vmatprep.mubr.bf16.mxu0 0
      %565 = vmatmul.mubr.bf16.gmra.mrb[0].mxu0 %v462
      %v566 = vpop.f32.mrb[0].mxu0
      %v567 = vadd.f32 %v382, %v566
      %v568 = vpop.f32.mrb[0].mxu0
      %v569 = vpop.f32.mrb[0].mxu0
      %v570 = vpop.f32.mrb[0].mxu0
      %571 = vmatprep.mubr.bf16.mxu0 0
      %572 = vmatmul.mubr.bf16.gmra.mrb[0].mxu0 %v463
      %v573 = vpop.f32.mrb[0].mxu0
      %v574 = vadd.f32 %v389, %v573
      %v575 = vpop.f32.mrb[0].mxu0
      %v576 = vpop.f32.mrb[0].mxu0
      %v577 = vpop.f32.mrb[0].mxu0
      %578 = vmatprep.mubr.bf16.mxu0 0
      %579 = vmatmul.mubr.bf16.gmra.mrb[0].mxu0 %v464
      %v580 = vpop.f32.mrb[0].mxu0
      %v581 = vadd.f32 %v396, %v580
      %v582 = vpop.f32.mrb[0].mxu0
      %v583 = vpop.f32.mrb[0].mxu0
      %v584 = vpop.f32.mrb[0].mxu0
      %585 = vmatprep.mubr.bf16.mxu0 0
      %586 = vmatmul.mubr.bf16.gmra.mrb[0].mxu0 %v465
      %v587 = vpop.f32.mrb[0].mxu0
      %v588 = vadd.f32 %v403, %v587
      %v589 = vpop.f32.mrb[0].mxu0
      %v590 = vpop.f32.mrb[0].mxu0
      %v591 = vpop.f32.mrb[0].mxu0
      %592 = vmatprep.mubr.bf16.mxu0 0
      %593 = vmatmul.mubr.bf16.gmra.mrb[0].mxu0 %v466
      %v594 = vpop.f32.mrb[0].mxu0
      %v595 = vadd.f32 %v410, %v594
      %v596 = vpop.f32.mrb[0].mxu0
      %v597 = vpop.f32.mrb[0].mxu0
      %v598 = vpop.f32.mrb[0].mxu0
      %599 = vmatprep.mubr.bf16.mxu0 0
      %600 = vmatmul.mubr.bf16.gmra.mrb[0].mxu0 %v467
      %v601 = vpop.f32.mrb[0].mxu0
      %v602 = vadd.f32 %v417, %v601
      %v603 = vpop.f32.mrb[0].mxu0
      %v604 = vpop.f32.mrb[0].mxu0
      %v605 = vpop.f32.mrb[0].mxu0
      %606 = vmatprep.mubr.bf16.mxu0 0
      %607 = vmatmul.mubr.bf16.gmra.mrb[0].mxu0 %v468
      %v608 = vpop.f32.mrb[0].mxu0
      %v609 = vadd.f32 %v424, %v608
      %v610 = vpop.f32.mrb[0].mxu0
      %v611 = vpop.f32.mrb[0].mxu0
      %v612 = vpop.f32.mrb[0].mxu0
      %613 = vdwg.mxu0
      %v614 = vld [vmem:[%s169] sm:$0xf]
      %v615 = vld [vmem:[%s169 + $0x4] sm:$0xf]
      %v616 = vld [vmem:[%s169 + $0x8] sm:$0xf]
      %v617 = vld [vmem:[%s169 + $0xc] sm:$0xf]
      %v618 = vld [vmem:[%s169 + $0x10] sm:$0xf]
      %v619 = vld [vmem:[%s169 + $0x14] sm:$0xf]
      %v620 = vld [vmem:[%s169 + $0x18] sm:$0xf]
      %v621 = vld [vmem:[%s169 + $0x1c] sm:$0xf]
      %v622 = vld [vmem:[%s169 + $0x20] sm:$0xf]
      %v623 = vld [vmem:[%s169 + $0x24] sm:$0xf]
      %v624 = vld [vmem:[%s169 + $0x28] sm:$0xf]
      %v625 = vld [vmem:[%s169 + $0x2c] sm:$0xf]
      %v626 = vld [vmem:[%s169 + $0x30] sm:$0xf]
      %v627 = vld [vmem:[%s169 + $0x34] sm:$0xf]
      %v628 = vld [vmem:[%s169 + $0x38] sm:$0xf]
      %v629 = vld [vmem:[%s169 + $0x3c] sm:$0xf]
      %v630 = vld [vmem:[%s169 + $0x40] sm:$0x1]
      %s631 = scalar_lea.vmem %s1, 128
      %v632 = vld [vmem:[%s631] sm:$0xf]
      %v633 = vld [vmem:[%s631 + $0x4] sm:$0xf]
      %v634 = vld [vmem:[%s631 + $0x8] sm:$0xf]
      %v635 = vld [vmem:[%s631 + $0xc] sm:$0xf]
      %v636 = vld [vmem:[%s631 + $0x10] sm:$0xf]
      %v637 = vld [vmem:[%s631 + $0x14] sm:$0xf]
      %v638 = vld [vmem:[%s631 + $0x18] sm:$0xf]
      %v639 = vld [vmem:[%s631 + $0x1c] sm:$0xf]
      %v640 = vld [vmem:[%s631 + $0x20] sm:$0xf]
      %v641 = vld [vmem:[%s631 + $0x24] sm:$0xf]
      %v642 = vld [vmem:[%s631 + $0x28] sm:$0xf]
      %v643 = vld [vmem:[%s631 + $0x2c] sm:$0xf]
      %v644 = vld [vmem:[%s631 + $0x30] sm:$0xf]
      %v645 = vld [vmem:[%s631 + $0x34] sm:$0xf]
      %v646 = vld [vmem:[%s631 + $0x38] sm:$0xf]
      %v647 = vld [vmem:[%s631 + $0x3c] sm:$0xf]
      %v665 = vunpack.c.l.b16 %v614
      %v666 = vunpack.c.l.b16 %v615
      %v667 = vunpack.c.l.b16 %v616
      %v668 = vunpack.c.l.b16 %v617
      %v669 = vunpack.c.l.b16 %v618
      %v670 = vunpack.c.l.b16 %v619
      %v671 = vunpack.c.l.b16 %v620
      %v672 = vunpack.c.l.b16 %v621
      %v673 = vunpack.c.l.b16 %v622
      %v674 = vunpack.c.l.b16 %v623
      %v675 = vunpack.c.l.b16 %v624
      %v676 = vunpack.c.l.b16 %v625
      %v677 = vunpack.c.l.b16 %v626
      %v678 = vunpack.c.l.b16 %v627
      %v679 = vunpack.c.l.b16 %v628
      %v680 = vunpack.c.l.b16 %v629
      %v681 = vunpack.c.l.b16 %v630
      %v682 = vpack.c.b16 %v666, %v665
      %v683 = vpack.c.b16 %v668, %v667
      %v684 = vpack.c.b16 %v670, %v669
      %v685 = vpack.c.b16 %v672, %v671
      %v686 = vpack.c.b16 %v674, %v673
      %v687 = vpack.c.b16 %v676, %v675
      %v688 = vpack.c.b16 %v678, %v677
      %v689 = vpack.c.b16 %v680, %v679
      %v690 = vpack.c.b16 %v681, %v681
      %vm691 = vsmask.f32 7424
      %v693 = vshrl.u32 %v682, 16
      %v695 = vshll.u32 %v682, 16
      %v697 = vrot.slane %v695, 1
      %v698 = vor.u32 %v693, %v697
      %v700 = vshll.u32 %v683, 16
      %v702 = vrot.slane %v700, 1
      %v703 = vsel %vm691, %v698, %v702
      %v704 = vshrl.u32 %v683, 16
      %v706 = vor.u32 %v704, %v702
      %v708 = vshll.u32 %v684, 16
      %v710 = vrot.slane %v708, 1
      %v711 = vsel %vm691, %v706, %v710
      %v712 = vshrl.u32 %v684, 16
      %v714 = vor.u32 %v712, %v710
      %v716 = vshll.u32 %v685, 16
      %v718 = vrot.slane %v716, 1
      %v719 = vsel %vm691, %v714, %v718
      %v720 = vshrl.u32 %v685, 16
      %v722 = vor.u32 %v720, %v718
      %v724 = vshll.u32 %v686, 16
      %v726 = vrot.slane %v724, 1
      %v727 = vsel %vm691, %v722, %v726
      %v728 = vshrl.u32 %v686, 16
      %v730 = vor.u32 %v728, %v726
      %v732 = vshll.u32 %v687, 16
      %v734 = vrot.slane %v732, 1
      %v735 = vsel %vm691, %v730, %v734
      %v736 = vshrl.u32 %v687, 16
      %v738 = vor.u32 %v736, %v734
      %v740 = vshll.u32 %v688, 16
      %v742 = vrot.slane %v740, 1
      %v743 = vsel %vm691, %v738, %v742
      %v744 = vshrl.u32 %v688, 16
      %v746 = vor.u32 %v744, %v742
      %v748 = vshll.u32 %v689, 16
      %v750 = vrot.slane %v748, 1
      %v751 = vsel %vm691, %v746, %v750
      %v752 = vshrl.u32 %v689, 16
      %v754 = vor.u32 %v752, %v750
      %v756 = vshll.u32 %v690, 16
      %v758 = vrot.slane %v756, 1
      %v759 = vsel %vm691, %v754, %v758
      %v784 = vunpack.c.l.b16 %v632
      %v785 = vunpack.c.l.b16 %v633
      %v786 = vunpack.c.l.b16 %v634
      %v787 = vunpack.c.l.b16 %v635
      %v788 = vunpack.c.l.b16 %v636
      %v789 = vunpack.c.l.b16 %v637
      %v790 = vunpack.c.l.b16 %v638
      %v791 = vunpack.c.l.b16 %v639
      %v792 = vunpack.c.l.b16 %v640
      %v793 = vunpack.c.l.b16 %v641
      %v794 = vunpack.c.l.b16 %v642
      %v795 = vunpack.c.l.b16 %v643
      %v796 = vunpack.c.l.b16 %v644
      %v797 = vunpack.c.l.b16 %v645
      %v798 = vunpack.c.l.b16 %v646
      %v799 = vunpack.c.l.b16 %v647
      %v800 = vpack.c.b16 %v785, %v784
      %v801 = vpack.c.b16 %v787, %v786
      %v802 = vpack.c.b16 %v789, %v788
      %v803 = vpack.c.b16 %v791, %v790
      %v804 = vpack.c.b16 %v793, %v792
      %v805 = vpack.c.b16 %v795, %v794
      %v806 = vpack.c.b16 %v797, %v796
      %v807 = vpack.c.b16 %v799, %v798
      %816 = vmatprep.subr.bf16.mxu0 0
      %817 = vmatpush1.bf16.msra.mxu0 %v800
      %818 = vmatprep.subr.bf16.mxu0 0
      %819 = vmatpush1.bf16.msra.mxu0 %v801
      %820 = vmatprep.subr.bf16.mxu0 0
      %821 = vmatpush1.bf16.msra.mxu0 %v802
      %822 = vmatprep.subr.bf16.mxu0 0
      %823 = vmatpush1.bf16.msra.mxu0 %v803
      %824 = vmatprep.subr.bf16.mxu0 0
      %825 = vmatpush1.bf16.msra.mxu0 %v804
      %826 = vmatprep.subr.bf16.mxu0 0
      %827 = vmatpush1.bf16.msra.mxu0 %v805
      %828 = vmatprep.subr.bf16.mxu0 0
      %829 = vmatpush1.bf16.msra.mxu0 %v806
      %830 = vmatprep.subr.bf16.mxu0 0
      %831 = vmatpush1.bf16.msra.mxu0 %v807
      %832 = vmatprep.subr.bf16.mxu0 0
      %833 = vmatpush1.bf16.msra.mxu0 0
      %834 = vmatprep.subr.bf16.mxu0 0
      %835 = vmatpush1.bf16.msra.mxu0 0
      %836 = vmatprep.subr.bf16.mxu0 0
      %837 = vmatpush1.bf16.msra.mxu0 0
      %838 = vmatprep.subr.bf16.mxu0 0
      %839 = vmatpush1.bf16.msra.mxu0 0
      %840 = vmatprep.subr.bf16.mxu0 0
      %841 = vmatpush1.bf16.msra.mxu0 0
      %842 = vmatprep.subr.bf16.mxu0 0
      %843 = vmatpush1.bf16.msra.mxu0 0
      %844 = vmatprep.subr.bf16.mxu0 0
      %845 = vmatpush1.bf16.msra.mxu0 0
      %846 = vmatprep.subr.bf16.mxu0 0
      %847 = vmatpush1.bf16.msra.mxu0 0
      %848 = vmatprep.mubr.bf16.mxu0 0
      %849 = vmatmul.mubr.bf16.gmra.mrb[0].mxu0 %v703
      %v850 = vpop.f32.mrb[0].mxu0
      %v851 = vadd.f32 0.0, %v850
      %v852 = vpop.f32.mrb[0].mxu0
      %v853 = vpop.f32.mrb[0].mxu0
      %v854 = vpop.f32.mrb[0].mxu0
      %855 = vmatprep.mubr.bf16.mxu0 0
      %856 = vmatmul.mubr.bf16.gmra.mrb[0].mxu0 %v711
      %v857 = vpop.f32.mrb[0].mxu0
      %v858 = vadd.f32 0.0, %v857
      %v859 = vpop.f32.mrb[0].mxu0
      %v860 = vpop.f32.mrb[0].mxu0
      %v861 = vpop.f32.mrb[0].mxu0
      %862 = vmatprep.mubr.bf16.mxu0 0
      %863 = vmatmul.mubr.bf16.gmra.mrb[0].mxu0 %v719
      %v864 = vpop.f32.mrb[0].mxu0
      %v865 = vadd.f32 0.0, %v864
      %v866 = vpop.f32.mrb[0].mxu0
      %v867 = vpop.f32.mrb[0].mxu0
      %v868 = vpop.f32.mrb[0].mxu0
      %869 = vmatprep.mubr.bf16.mxu0 0
      %870 = vmatmul.mubr.bf16.gmra.mrb[0].mxu0 %v727
      %v871 = vpop.f32.mrb[0].mxu0
      %v872 = vadd.f32 0.0, %v871
      %v873 = vpop.f32.mrb[0].mxu0
      %v874 = vpop.f32.mrb[0].mxu0
      %v875 = vpop.f32.mrb[0].mxu0
      %876 = vmatprep.mubr.bf16.mxu0 0
      %877 = vmatmul.mubr.bf16.gmra.mrb[0].mxu0 %v735
      %v878 = vpop.f32.mrb[0].mxu0
      %v879 = vadd.f32 0.0, %v878
      %v880 = vpop.f32.mrb[0].mxu0
      %v881 = vpop.f32.mrb[0].mxu0
      %v882 = vpop.f32.mrb[0].mxu0
      %883 = vmatprep.mubr.bf16.mxu0 0
      %884 = vmatmul.mubr.bf16.gmra.mrb[0].mxu0 %v743
      %v885 = vpop.f32.mrb[0].mxu0
      %v886 = vadd.f32 0.0, %v885
      %v887 = vpop.f32.mrb[0].mxu0
      %v888 = vpop.f32.mrb[0].mxu0
      %v889 = vpop.f32.mrb[0].mxu0
      %890 = vmatprep.mubr.bf16.mxu0 0
      %891 = vmatmul.mubr.bf16.gmra.mrb[0].mxu0 %v751
      %v892 = vpop.f32.mrb[0].mxu0
      %v893 = vadd.f32 0.0, %v892
      %v894 = vpop.f32.mrb[0].mxu0
      %v895 = vpop.f32.mrb[0].mxu0
      %v896 = vpop.f32.mrb[0].mxu0
      %897 = vmatprep.mubr.bf16.mxu0 0
      %898 = vmatmul.mubr.bf16.gmra.mrb[0].mxu0 %v759
      %v899 = vpop.f32.mrb[0].mxu0
      %v900 = vadd.f32 0.0, %v899
      %v901 = vpop.f32.mrb[0].mxu0
      %v902 = vpop.f32.mrb[0].mxu0
      %v903 = vpop.f32.mrb[0].mxu0
      %904 = vdwg.mxu0
      %v905 = vadd.f32 %v560, %v851
      %v906 = vadd.f32 %v567, %v858
      %v907 = vadd.f32 %v574, %v865
      %v908 = vadd.f32 %v581, %v872
      %v909 = vadd.f32 %v588, %v879
      %v910 = vadd.f32 %v595, %v886
      %v911 = vadd.f32 %v602, %v893
      %v912 = vadd.f32 %v609, %v900
      %s913 = scalar_lea.vmem %s169, 160
      %v914 = vld [vmem:[%s913] sm:$0xf]
      %v915 = vld [vmem:[%s913 + $0x4] sm:$0xf]
      %v916 = vld [vmem:[%s913 + $0x8] sm:$0xf]
      %v917 = vld [vmem:[%s913 + $0xc] sm:$0xf]
      %v918 = vld [vmem:[%s913 + $0x10] sm:$0xf]
      %v919 = vld [vmem:[%s913 + $0x14] sm:$0xf]
      %v920 = vld [vmem:[%s913 + $0x18] sm:$0xf]
      %v921 = vld [vmem:[%s913 + $0x1c] sm:$0xf]
      %v922 = vld [vmem:[%s913 + $0x20] sm:$0xf]
      %v923 = vld [vmem:[%s913 + $0x24] sm:$0xf]
      %v924 = vld [vmem:[%s913 + $0x28] sm:$0xf]
      %v925 = vld [vmem:[%s913 + $0x2c] sm:$0xf]
      %v926 = vld [vmem:[%s913 + $0x30] sm:$0xf]
      %v927 = vld [vmem:[%s913 + $0x34] sm:$0xf]
      %v928 = vld [vmem:[%s913 + $0x38] sm:$0xf]
      %v929 = vld [vmem:[%s913 + $0x3c] sm:$0xf]
      %s930 = scalar_lea.vmem %s1, 192
      %v931 = vld [vmem:[%s930] sm:$0xf]
      %v932 = vld [vmem:[%s930 + $0x4] sm:$0xf]
      %v933 = vld [vmem:[%s930 + $0x8] sm:$0xf]
      %v934 = vld [vmem:[%s930 + $0xc] sm:$0xf]
      %v935 = vld [vmem:[%s930 + $0x10] sm:$0xf]
      %v936 = vld [vmem:[%s930 + $0x14] sm:$0xf]
      %v937 = vld [vmem:[%s930 + $0x18] sm:$0xf]
      %v938 = vld [vmem:[%s930 + $0x1c] sm:$0xf]
      %v939 = vld [vmem:[%s930 + $0x20] sm:$0xf]
      %v940 = vld [vmem:[%s930 + $0x24] sm:$0xf]
      %v941 = vld [vmem:[%s930 + $0x28] sm:$0xf]
      %v942 = vld [vmem:[%s930 + $0x2c] sm:$0xf]
      %v943 = vld [vmem:[%s930 + $0x30] sm:$0xf]
      %v944 = vld [vmem:[%s930 + $0x34] sm:$0xf]
      %v945 = vld [vmem:[%s930 + $0x38] sm:$0xf]
      %v946 = vld [vmem:[%s930 + $0x3c] sm:$0xf]
      %v963 = vunpack.c.l.b16 %v914
      %v964 = vunpack.c.l.b16 %v915
      %v965 = vunpack.c.l.b16 %v916
      %v966 = vunpack.c.l.b16 %v917
      %v967 = vunpack.c.l.b16 %v918
      %v968 = vunpack.c.l.b16 %v919
      %v969 = vunpack.c.l.b16 %v920
      %v970 = vunpack.c.l.b16 %v921
      %v971 = vunpack.c.l.b16 %v922
      %v972 = vunpack.c.l.b16 %v923
      %v973 = vunpack.c.l.b16 %v924
      %v974 = vunpack.c.l.b16 %v925
      %v975 = vunpack.c.l.b16 %v926
      %v976 = vunpack.c.l.b16 %v927
      %v977 = vunpack.c.l.b16 %v928
      %v978 = vunpack.c.l.b16 %v929
      %v979 = vpack.c.b16 %v964, %v963
      %v980 = vpack.c.b16 %v966, %v965
      %v981 = vpack.c.b16 %v968, %v967
      %v982 = vpack.c.b16 %v970, %v969
      %v983 = vpack.c.b16 %v972, %v971
      %v984 = vpack.c.b16 %v974, %v973
      %v985 = vpack.c.b16 %v976, %v975
      %v986 = vpack.c.b16 %v978, %v977
      %v1011 = vunpack.c.l.b16 %v931
      %v1012 = vunpack.c.l.b16 %v932
      %v1013 = vunpack.c.l.b16 %v933
      %v1014 = vunpack.c.l.b16 %v934
      %v1015 = vunpack.c.l.b16 %v935
      %v1016 = vunpack.c.l.b16 %v936
      %v1017 = vunpack.c.l.b16 %v937
      %v1018 = vunpack.c.l.b16 %v938
      %v1019 = vunpack.c.l.b16 %v939
      %v1020 = vunpack.c.l.b16 %v940
      %v1021 = vunpack.c.l.b16 %v941
      %v1022 = vunpack.c.l.b16 %v942
      %v1023 = vunpack.c.l.b16 %v943
      %v1024 = vunpack.c.l.b16 %v944
      %v1025 = vunpack.c.l.b16 %v945
      %v1026 = vunpack.c.l.b16 %v946
      %v1027 = vpack.c.b16 %v1012, %v1011
      %v1028 = vpack.c.b16 %v1014, %v1013
      %v1029 = vpack.c.b16 %v1016, %v1015
      %v1030 = vpack.c.b16 %v1018, %v1017
      %v1031 = vpack.c.b16 %v1020, %v1019
      %v1032 = vpack.c.b16 %v1022, %v1021
      %v1033 = vpack.c.b16 %v1024, %v1023
      %v1034 = vpack.c.b16 %v1026, %v1025
      %1043 = vmatprep.subr.bf16.mxu0 0
      %1044 = vmatpush1.bf16.msra.mxu0 %v1027
      %1045 = vmatprep.subr.bf16.mxu0 0
      %1046 = vmatpush1.bf16.msra.mxu0 %v1028
      %1047 = vmatprep.subr.bf16.mxu0 0
      %1048 = vmatpush1.bf16.msra.mxu0 %v1029
      %1049 = vmatprep.subr.bf16.mxu0 0
      %1050 = vmatpush1.bf16.msra.mxu0 %v1030
      %1051 = vmatprep.subr.bf16.mxu0 0
      %1052 = vmatpush1.bf16.msra.mxu0 %v1031
      %1053 = vmatprep.subr.bf16.mxu0 0
      %1054 = vmatpush1.bf16.msra.mxu0 %v1032
      %1055 = vmatprep.subr.bf16.mxu0 0
      %1056 = vmatpush1.bf16.msra.mxu0 %v1033
      %1057 = vmatprep.subr.bf16.mxu0 0
      %1058 = vmatpush1.bf16.msra.mxu0 %v1034
      %1059 = vmatprep.subr.bf16.mxu0 0
      %1060 = vmatpush1.bf16.msra.mxu0 0
      %1061 = vmatprep.subr.bf16.mxu0 0
      %1062 = vmatpush1.bf16.msra.mxu0 0
      %1063 = vmatprep.subr.bf16.mxu0 0
      %1064 = vmatpush1.bf16.msra.mxu0 0
      %1065 = vmatprep.subr.bf16.mxu0 0
      %1066 = vmatpush1.bf16.msra.mxu0 0
      %1067 = vmatprep.subr.bf16.mxu0 0
      %1068 = vmatpush1.bf16.msra.mxu0 0
      %1069 = vmatprep.subr.bf16.mxu0 0
      %1070 = vmatpush1.bf16.msra.mxu0 0
      %1071 = vmatprep.subr.bf16.mxu0 0
      %1072 = vmatpush1.bf16.msra.mxu0 0
      %1073 = vmatprep.subr.bf16.mxu0 0
      %1074 = vmatpush1.bf16.msra.mxu0 0
      %1075 = vmatprep.mubr.bf16.mxu0 0
      %1076 = vmatmul.mubr.bf16.gmra.mrb[0].mxu0 %v979
      %v1077 = vpop.f32.mrb[0].mxu0
      %v1078 = vadd.f32 0.0, %v1077
      %v1079 = vpop.f32.mrb[0].mxu0
      %v1080 = vpop.f32.mrb[0].mxu0
      %v1081 = vpop.f32.mrb[0].mxu0
      %1082 = vmatprep.mubr.bf16.mxu0 0
      %1083 = vmatmul.mubr.bf16.gmra.mrb[0].mxu0 %v980
      %v1084 = vpop.f32.mrb[0].mxu0
      %v1085 = vadd.f32 0.0, %v1084
      %v1086 = vpop.f32.mrb[0].mxu0
      %v1087 = vpop.f32.mrb[0].mxu0
      %v1088 = vpop.f32.mrb[0].mxu0
      %1089 = vmatprep.mubr.bf16.mxu0 0
      %1090 = vmatmul.mubr.bf16.gmra.mrb[0].mxu0 %v981
      %v1091 = vpop.f32.mrb[0].mxu0
      %v1092 = vadd.f32 0.0, %v1091
      %v1093 = vpop.f32.mrb[0].mxu0
      %v1094 = vpop.f32.mrb[0].mxu0
      %v1095 = vpop.f32.mrb[0].mxu0
      %1096 = vmatprep.mubr.bf16.mxu0 0
      %1097 = vmatmul.mubr.bf16.gmra.mrb[0].mxu0 %v982
      %v1098 = vpop.f32.mrb[0].mxu0
      %v1099 = vadd.f32 0.0, %v1098
      %v1100 = vpop.f32.mrb[0].mxu0
      %v1101 = vpop.f32.mrb[0].mxu0
      %v1102 = vpop.f32.mrb[0].mxu0
      %1103 = vmatprep.mubr.bf16.mxu0 0
      %1104 = vmatmul.mubr.bf16.gmra.mrb[0].mxu0 %v983
      %v1105 = vpop.f32.mrb[0].mxu0
      %v1106 = vadd.f32 0.0, %v1105
      %v1107 = vpop.f32.mrb[0].mxu0
      %v1108 = vpop.f32.mrb[0].mxu0
      %v1109 = vpop.f32.mrb[0].mxu0
      %1110 = vmatprep.mubr.bf16.mxu0 0
      %1111 = vmatmul.mubr.bf16.gmra.mrb[0].mxu0 %v984
      %v1112 = vpop.f32.mrb[0].mxu0
      %v1113 = vadd.f32 0.0, %v1112
      %v1114 = vpop.f32.mrb[0].mxu0
      %v1115 = vpop.f32.mrb[0].mxu0
      %v1116 = vpop.f32.mrb[0].mxu0
      %1117 = vmatprep.mubr.bf16.mxu0 0
      %1118 = vmatmul.mubr.bf16.gmra.mrb[0].mxu0 %v985
      %v1119 = vpop.f32.mrb[0].mxu0
      %v1120 = vadd.f32 0.0, %v1119
      %v1121 = vpop.f32.mrb[0].mxu0
      %v1122 = vpop.f32.mrb[0].mxu0
      %v1123 = vpop.f32.mrb[0].mxu0
      %1124 = vmatprep.mubr.bf16.mxu0 0
      %1125 = vmatmul.mubr.bf16.gmra.mrb[0].mxu0 %v986
      %v1126 = vpop.f32.mrb[0].mxu0
      %v1127 = vadd.f32 0.0, %v1126
      %v1128 = vpop.f32.mrb[0].mxu0
      %v1129 = vpop.f32.mrb[0].mxu0
      %v1130 = vpop.f32.mrb[0].mxu0
      %1131 = vdwg.mxu0
      %v1132 = vadd.f32 %v905, %v1078
      %v1133 = vadd.f32 %v906, %v1085
      %v1134 = vadd.f32 %v907, %v1092
      %v1135 = vadd.f32 %v908, %v1099
      %v1136 = vadd.f32 %v909, %v1106
      %v1137 = vadd.f32 %v910, %v1113
      %v1138 = vadd.f32 %v911, %v1120
      %v1139 = vadd.f32 %v912, %v1127
      %s1140 = scalar_lea.vmem %s169, 240
      %v1141 = vld [vmem:[%s1140] sm:$0xf]
      %v1142 = vld [vmem:[%s1140 + $0x4] sm:$0xf]
      %v1143 = vld [vmem:[%s1140 + $0x8] sm:$0xf]
      %v1144 = vld [vmem:[%s1140 + $0xc] sm:$0xf]
      %v1145 = vld [vmem:[%s1140 + $0x10] sm:$0xf]
      %v1146 = vld [vmem:[%s1140 + $0x14] sm:$0xf]
      %v1147 = vld [vmem:[%s1140 + $0x18] sm:$0xf]
      %v1148 = vld [vmem:[%s1140 + $0x1c] sm:$0xf]
      %v1149 = vld [vmem:[%s1140 + $0x20] sm:$0xf]
      %v1150 = vld [vmem:[%s1140 + $0x24] sm:$0xf]
      %v1151 = vld [vmem:[%s1140 + $0x28] sm:$0xf]
      %v1152 = vld [vmem:[%s1140 + $0x2c] sm:$0xf]
      %v1153 = vld [vmem:[%s1140 + $0x30] sm:$0xf]
      %v1154 = vld [vmem:[%s1140 + $0x34] sm:$0xf]
      %v1155 = vld [vmem:[%s1140 + $0x38] sm:$0xf]
      %v1156 = vld [vmem:[%s1140 + $0x3c] sm:$0xf]
      %s1157 = scalar_lea.vmem %s1, 256
      %v1158 = vld [vmem:[%s1157] sm:$0xf]
      %v1159 = vld [vmem:[%s1157 + $0x4] sm:$0xf]
      %v1160 = vld [vmem:[%s1157 + $0x8] sm:$0xf]
      %v1161 = vld [vmem:[%s1157 + $0xc] sm:$0xf]
      %v1162 = vld [vmem:[%s1157 + $0x10] sm:$0xf]
      %v1163 = vld [vmem:[%s1157 + $0x14] sm:$0xf]
      %v1164 = vld [vmem:[%s1157 + $0x18] sm:$0xf]
      %v1165 = vld [vmem:[%s1157 + $0x1c] sm:$0xf]
      %v1166 = vld [vmem:[%s1157 + $0x20] sm:$0xf]
      %v1167 = vld [vmem:[%s1157 + $0x24] sm:$0xf]
      %v1168 = vld [vmem:[%s1157 + $0x28] sm:$0xf]
      %v1169 = vld [vmem:[%s1157 + $0x2c] sm:$0xf]
      %v1170 = vld [vmem:[%s1157 + $0x30] sm:$0xf]
      %v1171 = vld [vmem:[%s1157 + $0x34] sm:$0xf]
      %v1172 = vld [vmem:[%s1157 + $0x38] sm:$0xf]
      %v1173 = vld [vmem:[%s1157 + $0x3c] sm:$0xf]
      %v1190 = vunpack.c.l.b16 %v1141
      %v1191 = vunpack.c.l.b16 %v1142
      %v1192 = vunpack.c.l.b16 %v1143
      %v1193 = vunpack.c.l.b16 %v1144
      %v1194 = vunpack.c.l.b16 %v1145
      %v1195 = vunpack.c.l.b16 %v1146
      %v1196 = vunpack.c.l.b16 %v1147
      %v1197 = vunpack.c.l.b16 %v1148
      %v1198 = vunpack.c.l.b16 %v1149
      %v1199 = vunpack.c.l.b16 %v1150
      %v1200 = vunpack.c.l.b16 %v1151
      %v1201 = vunpack.c.l.b16 %v1152
      %v1202 = vunpack.c.l.b16 %v1153
      %v1203 = vunpack.c.l.b16 %v1154
      %v1204 = vunpack.c.l.b16 %v1155
      %v1205 = vunpack.c.l.b16 %v1156
      %v1206 = vpack.c.b16 %v1191, %v1190
      %v1207 = vpack.c.b16 %v1193, %v1192
      %v1208 = vpack.c.b16 %v1195, %v1194
      %v1209 = vpack.c.b16 %v1197, %v1196
      %v1210 = vpack.c.b16 %v1199, %v1198
      %v1211 = vpack.c.b16 %v1201, %v1200
      %v1212 = vpack.c.b16 %v1203, %v1202
      %v1213 = vpack.c.b16 %v1205, %v1204
      %v1238 = vunpack.c.l.b16 %v1158
      %v1239 = vunpack.c.l.b16 %v1159
      %v1240 = vunpack.c.l.b16 %v1160
      %v1241 = vunpack.c.l.b16 %v1161
      %v1242 = vunpack.c.l.b16 %v1162
      %v1243 = vunpack.c.l.b16 %v1163
      %v1244 = vunpack.c.l.b16 %v1164
      %v1245 = vunpack.c.l.b16 %v1165
      %v1246 = vunpack.c.l.b16 %v1166
      %v1247 = vunpack.c.l.b16 %v1167
      %v1248 = vunpack.c.l.b16 %v1168
      %v1249 = vunpack.c.l.b16 %v1169
      %v1250 = vunpack.c.l.b16 %v1170
      %v1251 = vunpack.c.l.b16 %v1171
      %v1252 = vunpack.c.l.b16 %v1172
      %v1253 = vunpack.c.l.b16 %v1173
      %v1254 = vpack.c.b16 %v1239, %v1238
      %v1255 = vpack.c.b16 %v1241, %v1240
      %v1256 = vpack.c.b16 %v1243, %v1242
      %v1257 = vpack.c.b16 %v1245, %v1244
      %v1258 = vpack.c.b16 %v1247, %v1246
      %v1259 = vpack.c.b16 %v1249, %v1248
      %v1260 = vpack.c.b16 %v1251, %v1250
      %v1261 = vpack.c.b16 %v1253, %v1252
      %1270 = vmatprep.subr.bf16.mxu0 0
      %1271 = vmatpush1.bf16.msra.mxu0 %v1254
      %1272 = vmatprep.subr.bf16.mxu0 0
      %1273 = vmatpush1.bf16.msra.mxu0 %v1255
      %1274 = vmatprep.subr.bf16.mxu0 0
      %1275 = vmatpush1.bf16.msra.mxu0 %v1256
      %1276 = vmatprep.subr.bf16.mxu0 0
      %1277 = vmatpush1.bf16.msra.mxu0 %v1257
      %1278 = vmatprep.subr.bf16.mxu0 0
      %1279 = vmatpush1.bf16.msra.mxu0 %v1258
      %1280 = vmatprep.subr.bf16.mxu0 0
      %1281 = vmatpush1.bf16.msra.mxu0 %v1259
      %1282 = vmatprep.subr.bf16.mxu0 0
      %1283 = vmatpush1.bf16.msra.mxu0 %v1260
      %1284 = vmatprep.subr.bf16.mxu0 0
      %1285 = vmatpush1.bf16.msra.mxu0 %v1261
      %1286 = vmatprep.subr.bf16.mxu0 0
      %1287 = vmatpush1.bf16.msra.mxu0 0
      %1288 = vmatprep.subr.bf16.mxu0 0
      %1289 = vmatpush1.bf16.msra.mxu0 0
      %1290 = vmatprep.subr.bf16.mxu0 0
      %1291 = vmatpush1.bf16.msra.mxu0 0
      %1292 = vmatprep.subr.bf16.mxu0 0
      %1293 = vmatpush1.bf16.msra.mxu0 0
      %1294 = vmatprep.subr.bf16.mxu0 0
      %1295 = vmatpush1.bf16.msra.mxu0 0
      %1296 = vmatprep.subr.bf16.mxu0 0
      %1297 = vmatpush1.bf16.msra.mxu0 0
      %1298 = vmatprep.subr.bf16.mxu0 0
      %1299 = vmatpush1.bf16.msra.mxu0 0
      %1300 = vmatprep.subr.bf16.mxu0 0
      %1301 = vmatpush1.bf16.msra.mxu0 0
      %1302 = vmatprep.mubr.bf16.mxu0 0
      %1303 = vmatmul.mubr.bf16.gmra.mrb[0].mxu0 %v1206
      %v1304 = vpop.f32.mrb[0].mxu0
      %v1305 = vadd.f32 0.0, %v1304
      %v1306 = vpop.f32.mrb[0].mxu0
      %v1307 = vpop.f32.mrb[0].mxu0
      %v1308 = vpop.f32.mrb[0].mxu0
      %1309 = vmatprep.mubr.bf16.mxu0 0
      %1310 = vmatmul.mubr.bf16.gmra.mrb[0].mxu0 %v1207
      %v1311 = vpop.f32.mrb[0].mxu0
      %v1312 = vadd.f32 0.0, %v1311
      %v1313 = vpop.f32.mrb[0].mxu0
      %v1314 = vpop.f32.mrb[0].mxu0
      %v1315 = vpop.f32.mrb[0].mxu0
      %1316 = vmatprep.mubr.bf16.mxu0 0
      %1317 = vmatmul.mubr.bf16.gmra.mrb[0].mxu0 %v1208
      %v1318 = vpop.f32.mrb[0].mxu0
      %v1319 = vadd.f32 0.0, %v1318
      %v1320 = vpop.f32.mrb[0].mxu0
      %v1321 = vpop.f32.mrb[0].mxu0
      %v1322 = vpop.f32.mrb[0].mxu0
      %1323 = vmatprep.mubr.bf16.mxu0 0
      %1324 = vmatmul.mubr.bf16.gmra.mrb[0].mxu0 %v1209
      %v1325 = vpop.f32.mrb[0].mxu0
      %v1326 = vadd.f32 0.0, %v1325
      %v1327 = vpop.f32.mrb[0].mxu0
      %v1328 = vpop.f32.mrb[0].mxu0
      %v1329 = vpop.f32.mrb[0].mxu0
      %1330 = vmatprep.mubr.bf16.mxu0 0
      %1331 = vmatmul.mubr.bf16.gmra.mrb[0].mxu0 %v1210
      %v1332 = vpop.f32.mrb[0].mxu0
      %v1333 = vadd.f32 0.0, %v1332
      %v1334 = vpop.f32.mrb[0].mxu0
      %v1335 = vpop.f32.mrb[0].mxu0
      %v1336 = vpop.f32.mrb[0].mxu0
      %1337 = vmatprep.mubr.bf16.mxu0 0
      %1338 = vmatmul.mubr.bf16.gmra.mrb[0].mxu0 %v1211
      %v1339 = vpop.f32.mrb[0].mxu0
      %v1340 = vadd.f32 0.0, %v1339
      %v1341 = vpop.f32.mrb[0].mxu0
      %v1342 = vpop.f32.mrb[0].mxu0
      %v1343 = vpop.f32.mrb[0].mxu0
      %1344 = vmatprep.mubr.bf16.mxu0 0
      %1345 = vmatmul.mubr.bf16.gmra.mrb[0].mxu0 %v1212
      %v1346 = vpop.f32.mrb[0].mxu0
      %v1347 = vadd.f32 0.0, %v1346
      %v1348 = vpop.f32.mrb[0].mxu0
      %v1349 = vpop.f32.mrb[0].mxu0
      %v1350 = vpop.f32.mrb[0].mxu0
      %1351 = vmatprep.mubr.bf16.mxu0 0
      %1352 = vmatmul.mubr.bf16.gmra.mrb[0].mxu0 %v1213
      %v1353 = vpop.f32.mrb[0].mxu0
      %v1354 = vadd.f32 0.0, %v1353
      %v1355 = vpop.f32.mrb[0].mxu0
      %v1356 = vpop.f32.mrb[0].mxu0
      %v1357 = vpop.f32.mrb[0].mxu0
      %1358 = vdwg.mxu0
      %v1359 = vadd.f32 %v1132, %v1305
      %v1360 = vadd.f32 %v1133, %v1312
      %v1361 = vadd.f32 %v1134, %v1319
      %v1362 = vadd.f32 %v1135, %v1326
      %v1363 = vadd.f32 %v1136, %v1333
      %v1364 = vadd.f32 %v1137, %v1340
      %v1365 = vadd.f32 %v1138, %v1347
      %v1366 = vadd.f32 %v1139, %v1354
      %v1367 = vld [vmem:[%s913] sm:$0xf]
      %v1368 = vld [vmem:[%s913 + $0x4] sm:$0xf]
      %v1369 = vld [vmem:[%s913 + $0x8] sm:$0xf]
      %v1370 = vld [vmem:[%s913 + $0xc] sm:$0xf]
      %v1371 = vld [vmem:[%s913 + $0x10] sm:$0xf]
      %v1372 = vld [vmem:[%s913 + $0x14] sm:$0xf]
      %v1373 = vld [vmem:[%s913 + $0x18] sm:$0xf]
      %v1374 = vld [vmem:[%s913 + $0x1c] sm:$0xf]
      %v1375 = vld [vmem:[%s913 + $0x20] sm:$0xf]
      %v1376 = vld [vmem:[%s913 + $0x24] sm:$0xf]
      %v1377 = vld [vmem:[%s913 + $0x28] sm:$0xf]
      %v1378 = vld [vmem:[%s913 + $0x2c] sm:$0xf]
      %v1379 = vld [vmem:[%s913 + $0x30] sm:$0xf]
      %v1380 = vld [vmem:[%s913 + $0x34] sm:$0xf]
      %v1381 = vld [vmem:[%s913 + $0x38] sm:$0xf]
      %v1382 = vld [vmem:[%s913 + $0x3c] sm:$0xf]
      %v1383 = vld [vmem:[%s913 + $0x40] sm:$0x1]
      %s1384 = scalar_lea.vmem %s1, 320
      %v1385 = vld [vmem:[%s1384] sm:$0xf]
      %v1386 = vld [vmem:[%s1384 + $0x4] sm:$0xf]
      %v1387 = vld [vmem:[%s1384 + $0x8] sm:$0xf]
      %v1388 = vld [vmem:[%s1384 + $0xc] sm:$0xf]
      %v1389 = vld [vmem:[%s1384 + $0x10] sm:$0xf]
      %v1390 = vld [vmem:[%s1384 + $0x14] sm:$0xf]
      %v1391 = vld [vmem:[%s1384 + $0x18] sm:$0xf]
      %v1392 = vld [vmem:[%s1384 + $0x1c] sm:$0xf]
      %v1393 = vld [vmem:[%s1384 + $0x20] sm:$0xf]
      %v1394 = vld [vmem:[%s1384 + $0x24] sm:$0xf]
      %v1395 = vld [vmem:[%s1384 + $0x28] sm:$0xf]
      %v1396 = vld [vmem:[%s1384 + $0x2c] sm:$0xf]
      %v1397 = vld [vmem:[%s1384 + $0x30] sm:$0xf]
      %v1398 = vld [vmem:[%s1384 + $0x34] sm:$0xf]
      %v1399 = vld [vmem:[%s1384 + $0x38] sm:$0xf]
      %v1400 = vld [vmem:[%s1384 + $0x3c] sm:$0xf]
      %v1418 = vunpack.c.l.b16 %v1367
      %v1419 = vunpack.c.l.b16 %v1368
      %v1420 = vunpack.c.l.b16 %v1369
      %v1421 = vunpack.c.l.b16 %v1370
      %v1422 = vunpack.c.l.b16 %v1371
      %v1423 = vunpack.c.l.b16 %v1372
      %v1424 = vunpack.c.l.b16 %v1373
      %v1425 = vunpack.c.l.b16 %v1374
      %v1426 = vunpack.c.l.b16 %v1375
      %v1427 = vunpack.c.l.b16 %v1376
      %v1428 = vunpack.c.l.b16 %v1377
      %v1429 = vunpack.c.l.b16 %v1378
      %v1430 = vunpack.c.l.b16 %v1379
      %v1431 = vunpack.c.l.b16 %v1380
      %v1432 = vunpack.c.l.b16 %v1381
      %v1433 = vunpack.c.l.b16 %v1382
      %v1434 = vunpack.c.l.b16 %v1383
      %v1435 = vpack.c.b16 %v1419, %v1418
      %v1436 = vpack.c.b16 %v1421, %v1420
      %v1437 = vpack.c.b16 %v1423, %v1422
      %v1438 = vpack.c.b16 %v1425, %v1424
      %v1439 = vpack.c.b16 %v1427, %v1426
      %v1440 = vpack.c.b16 %v1429, %v1428
      %v1441 = vpack.c.b16 %v1431, %v1430
      %v1442 = vpack.c.b16 %v1433, %v1432
      %v1443 = vpack.c.b16 %v1434, %v1434
      %v1445 = vshrl.u32 %v1435, 16
      %v1447 = vshll.u32 %v1435, 16
      %v1449 = vrot.slane %v1447, 1
      %v1450 = vor.u32 %v1445, %v1449
      %v1452 = vshll.u32 %v1436, 16
      %v1454 = vrot.slane %v1452, 1
      %v1455 = vsel %vm691, %v1450, %v1454
      %v1456 = vshrl.u32 %v1436, 16
      %v1458 = vor.u32 %v1456, %v1454
      %v1460 = vshll.u32 %v1437, 16
      %v1462 = vrot.slane %v1460, 1
      %v1463 = vsel %vm691, %v1458, %v1462
      %v1464 = vshrl.u32 %v1437, 16
      %v1466 = vor.u32 %v1464, %v1462
      %v1468 = vshll.u32 %v1438, 16
      %v1470 = vrot.slane %v1468, 1
      %v1471 = vsel %vm691, %v1466, %v1470
      %v1472 = vshrl.u32 %v1438, 16
      %v1474 = vor.u32 %v1472, %v1470
      %v1476 = vshll.u32 %v1439, 16
      %v1478 = vrot.slane %v1476, 1
      %v1479 = vsel %vm691, %v1474, %v1478
      %v1480 = vshrl.u32 %v1439, 16
      %v1482 = vor.u32 %v1480, %v1478
      %v1484 = vshll.u32 %v1440, 16
      %v1486 = vrot.slane %v1484, 1
      %v1487 = vsel %vm691, %v1482, %v1486
      %v1488 = vshrl.u32 %v1440, 16
      %v1490 = vor.u32 %v1488, %v1486
      %v1492 = vshll.u32 %v1441, 16
      %v1494 = vrot.slane %v1492, 1
      %v1495 = vsel %vm691, %v1490, %v1494
      %v1496 = vshrl.u32 %v1441, 16
      %v1498 = vor.u32 %v1496, %v1494
      %v1500 = vshll.u32 %v1442, 16
      %v1502 = vrot.slane %v1500, 1
      %v1503 = vsel %vm691, %v1498, %v1502
      %v1504 = vshrl.u32 %v1442, 16
      %v1506 = vor.u32 %v1504, %v1502
      %v1508 = vshll.u32 %v1443, 16
      %v1510 = vrot.slane %v1508, 1
      %v1511 = vsel %vm691, %v1506, %v1510
      %v1536 = vunpack.c.l.b16 %v1385
      %v1537 = vunpack.c.l.b16 %v1386
      %v1538 = vunpack.c.l.b16 %v1387
      %v1539 = vunpack.c.l.b16 %v1388
      %v1540 = vunpack.c.l.b16 %v1389
      %v1541 = vunpack.c.l.b16 %v1390
      %v1542 = vunpack.c.l.b16 %v1391
      %v1543 = vunpack.c.l.b16 %v1392
      %v1544 = vunpack.c.l.b16 %v1393
      %v1545 = vunpack.c.l.b16 %v1394
      %v1546 = vunpack.c.l.b16 %v1395
      %v1547 = vunpack.c.l.b16 %v1396
      %v1548 = vunpack.c.l.b16 %v1397
      %v1549 = vunpack.c.l.b16 %v1398
      %v1550 = vunpack.c.l.b16 %v1399
      %v1551 = vunpack.c.l.b16 %v1400
      %v1552 = vpack.c.b16 %v1537, %v1536
      %v1553 = vpack.c.b16 %v1539, %v1538
      %v1554 = vpack.c.b16 %v1541, %v1540
      %v1555 = vpack.c.b16 %v1543, %v1542
      %v1556 = vpack.c.b16 %v1545, %v1544
      %v1557 = vpack.c.b16 %v1547, %v1546
      %v1558 = vpack.c.b16 %v1549, %v1548
      %v1559 = vpack.c.b16 %v1551, %v1550
      %1568 = vmatprep.subr.bf16.mxu0 0
      %1569 = vmatpush1.bf16.msra.mxu0 %v1552
      %1570 = vmatprep.subr.bf16.mxu0 0
      %1571 = vmatpush1.bf16.msra.mxu0 %v1553
      %1572 = vmatprep.subr.bf16.mxu0 0
      %1573 = vmatpush1.bf16.msra.mxu0 %v1554
      %1574 = vmatprep.subr.bf16.mxu0 0
      %1575 = vmatpush1.bf16.msra.mxu0 %v1555
      %1576 = vmatprep.subr.bf16.mxu0 0
      %1577 = vmatpush1.bf16.msra.mxu0 %v1556
      %1578 = vmatprep.subr.bf16.mxu0 0
      %1579 = vmatpush1.bf16.msra.mxu0 %v1557
      %1580 = vmatprep.subr.bf16.mxu0 0
      %1581 = vmatpush1.bf16.msra.mxu0 %v1558
      %1582 = vmatprep.subr.bf16.mxu0 0
      %1583 = vmatpush1.bf16.msra.mxu0 %v1559
      %1584 = vmatprep.subr.bf16.mxu0 0
      %1585 = vmatpush1.bf16.msra.mxu0 0
      %1586 = vmatprep.subr.bf16.mxu0 0
      %1587 = vmatpush1.bf16.msra.mxu0 0
      %1588 = vmatprep.subr.bf16.mxu0 0
      %1589 = vmatpush1.bf16.msra.mxu0 0
      %1590 = vmatprep.subr.bf16.mxu0 0
      %1591 = vmatpush1.bf16.msra.mxu0 0
      %1592 = vmatprep.subr.bf16.mxu0 0
      %1593 = vmatpush1.bf16.msra.mxu0 0
      %1594 = vmatprep.subr.bf16.mxu0 0
      %1595 = vmatpush1.bf16.msra.mxu0 0
      %1596 = vmatprep.subr.bf16.mxu0 0
      %1597 = vmatpush1.bf16.msra.mxu0 0
      %1598 = vmatprep.subr.bf16.mxu0 0
      %1599 = vmatpush1.bf16.msra.mxu0 0
      %1600 = vmatprep.mubr.bf16.mxu0 0
      %1601 = vmatmul.mubr.bf16.gmra.mrb[0].mxu0 %v1455
      %v1602 = vpop.f32.mrb[0].mxu0
      %v1603 = vadd.f32 0.0, %v1602
      %v1604 = vpop.f32.mrb[0].mxu0
      %v1605 = vpop.f32.mrb[0].mxu0
      %v1606 = vpop.f32.mrb[0].mxu0
      %1607 = vmatprep.mubr.bf16.mxu0 0
      %1608 = vmatmul.mubr.bf16.gmra.mrb[0].mxu0 %v1463
      %v1609 = vpop.f32.mrb[0].mxu0
      %v1610 = vadd.f32 0.0, %v1609
      %v1611 = vpop.f32.mrb[0].mxu0
      %v1612 = vpop.f32.mrb[0].mxu0
      %v1613 = vpop.f32.mrb[0].mxu0
      %1614 = vmatprep.mubr.bf16.mxu0 0
      %1615 = vmatmul.mubr.bf16.gmra.mrb[0].mxu0 %v1471
      %v1616 = vpop.f32.mrb[0].mxu0
      %v1617 = vadd.f32 0.0, %v1616
      %v1618 = vpop.f32.mrb[0].mxu0
      %v1619 = vpop.f32.mrb[0].mxu0
      %v1620 = vpop.f32.mrb[0].mxu0
      %1621 = vmatprep.mubr.bf16.mxu0 0
      %1622 = vmatmul.mubr.bf16.gmra.mrb[0].mxu0 %v1479
      %v1623 = vpop.f32.mrb[0].mxu0
      %v1624 = vadd.f32 0.0, %v1623
      %v1625 = vpop.f32.mrb[0].mxu0
      %v1626 = vpop.f32.mrb[0].mxu0
      %v1627 = vpop.f32.mrb[0].mxu0
      %1628 = vmatprep.mubr.bf16.mxu0 0
      %1629 = vmatmul.mubr.bf16.gmra.mrb[0].mxu0 %v1487
      %v1630 = vpop.f32.mrb[0].mxu0
      %v1631 = vadd.f32 0.0, %v1630
      %v1632 = vpop.f32.mrb[0].mxu0
      %v1633 = vpop.f32.mrb[0].mxu0
      %v1634 = vpop.f32.mrb[0].mxu0
      %1635 = vmatprep.mubr.bf16.mxu0 0
      %1636 = vmatmul.mubr.bf16.gmra.mrb[0].mxu0 %v1495
      %v1637 = vpop.f32.mrb[0].mxu0
      %v1638 = vadd.f32 0.0, %v1637
      %v1639 = vpop.f32.mrb[0].mxu0
      %v1640 = vpop.f32.mrb[0].mxu0
      %v1641 = vpop.f32.mrb[0].mxu0
      %1642 = vmatprep.mubr.bf16.mxu0 0
      %1643 = vmatmul.mubr.bf16.gmra.mrb[0].mxu0 %v1503
      %v1644 = vpop.f32.mrb[0].mxu0
      %v1645 = vadd.f32 0.0, %v1644
      %v1646 = vpop.f32.mrb[0].mxu0
      %v1647 = vpop.f32.mrb[0].mxu0
      %v1648 = vpop.f32.mrb[0].mxu0
      %1649 = vmatprep.mubr.bf16.mxu0 0
      %1650 = vmatmul.mubr.bf16.gmra.mrb[0].mxu0 %v1511
      %v1651 = vpop.f32.mrb[0].mxu0
      %v1652 = vadd.f32 0.0, %v1651
      %v1653 = vpop.f32.mrb[0].mxu0
      %v1654 = vpop.f32.mrb[0].mxu0
      %v1655 = vpop.f32.mrb[0].mxu0
      %1656 = vdwg.mxu0
      %v1657 = vadd.f32 %v1359, %v1603
      %v1658 = vadd.f32 %v1360, %v1610
      %v1659 = vadd.f32 %v1361, %v1617
      %v1660 = vadd.f32 %v1362, %v1624
      %v1661 = vadd.f32 %v1363, %v1631
      %v1662 = vadd.f32 %v1364, %v1638
      %v1663 = vadd.f32 %v1365, %v1645
      %v1664 = vadd.f32 %v1366, %v1652
      %v1665 = vld [vmem:[%s169 + $0x8] sm:$0xf]
      %v1666 = vld [vmem:[%s169 + $0xc] sm:$0xf]
      %v1667 = vld [vmem:[%s169 + $0x10] sm:$0xf]
      %v1668 = vld [vmem:[%s169 + $0x14] sm:$0xf]
      %v1669 = vld [vmem:[%s169 + $0x18] sm:$0xf]
      %v1670 = vld [vmem:[%s169 + $0x1c] sm:$0xf]
      %v1671 = vld [vmem:[%s169 + $0x20] sm:$0xf]
      %v1672 = vld [vmem:[%s169 + $0x24] sm:$0xf]
      %v1673 = vld [vmem:[%s169 + $0x28] sm:$0xf]
      %v1674 = vld [vmem:[%s169 + $0x2c] sm:$0xf]
      %v1675 = vld [vmem:[%s169 + $0x30] sm:$0xf]
      %v1676 = vld [vmem:[%s169 + $0x34] sm:$0xf]
      %v1677 = vld [vmem:[%s169 + $0x38] sm:$0xf]
      %v1678 = vld [vmem:[%s169 + $0x3c] sm:$0xf]
      %v1679 = vld [vmem:[%s169 + $0x40] sm:$0xf]
      %v1680 = vld [vmem:[%s169 + $0x44] sm:$0xf]
      %s1681 = scalar_lea.vmem %s1, 384
      %v1682 = vld [vmem:[%s1681] sm:$0xf]
      %v1683 = vld [vmem:[%s1681 + $0x4] sm:$0xf]
      %v1684 = vld [vmem:[%s1681 + $0x8] sm:$0xf]
      %v1685 = vld [vmem:[%s1681 + $0xc] sm:$0xf]
      %v1686 = vld [vmem:[%s1681 + $0x10] sm:$0xf]
      %v1687 = vld [vmem:[%s1681 + $0x14] sm:$0xf]
      %v1688 = vld [vmem:[%s1681 + $0x18] sm:$0xf]
      %v1689 = vld [vmem:[%s1681 + $0x1c] sm:$0xf]
      %v1690 = vld [vmem:[%s1681 + $0x20] sm:$0xf]
      %v1691 = vld [vmem:[%s1681 + $0x24] sm:$0xf]
      %v1692 = vld [vmem:[%s1681 + $0x28] sm:$0xf]
      %v1693 = vld [vmem:[%s1681 + $0x2c] sm:$0xf]
      %v1694 = vld [vmem:[%s1681 + $0x30] sm:$0xf]
      %v1695 = vld [vmem:[%s1681 + $0x34] sm:$0xf]
      %v1696 = vld [vmem:[%s1681 + $0x38] sm:$0xf]
      %v1697 = vld [vmem:[%s1681 + $0x3c] sm:$0xf]
      %v1714 = vunpack.c.l.b16 %v1665
      %v1715 = vunpack.c.l.b16 %v1666
      %v1716 = vunpack.c.l.b16 %v1667
      %v1717 = vunpack.c.l.b16 %v1668
      %v1718 = vunpack.c.l.b16 %v1669
      %v1719 = vunpack.c.l.b16 %v1670
      %v1720 = vunpack.c.l.b16 %v1671
      %v1721 = vunpack.c.l.b16 %v1672
      %v1722 = vunpack.c.l.b16 %v1673
      %v1723 = vunpack.c.l.b16 %v1674
      %v1724 = vunpack.c.l.b16 %v1675
      %v1725 = vunpack.c.l.b16 %v1676
      %v1726 = vunpack.c.l.b16 %v1677
      %v1727 = vunpack.c.l.b16 %v1678
      %v1728 = vunpack.c.l.b16 %v1679
      %v1729 = vunpack.c.l.b16 %v1680
      %v1730 = vpack.c.b16 %v1715, %v1714
      %v1731 = vpack.c.b16 %v1717, %v1716
      %v1732 = vpack.c.b16 %v1719, %v1718
      %v1733 = vpack.c.b16 %v1721, %v1720
      %v1734 = vpack.c.b16 %v1723, %v1722
      %v1735 = vpack.c.b16 %v1725, %v1724
      %v1736 = vpack.c.b16 %v1727, %v1726
      %v1737 = vpack.c.b16 %v1729, %v1728
      %v1762 = vunpack.c.l.b16 %v1682
      %v1763 = vunpack.c.l.b16 %v1683
      %v1764 = vunpack.c.l.b16 %v1684
      %v1765 = vunpack.c.l.b16 %v1685
      %v1766 = vunpack.c.l.b16 %v1686
      %v1767 = vunpack.c.l.b16 %v1687
      %v1768 = vunpack.c.l.b16 %v1688
      %v1769 = vunpack.c.l.b16 %v1689
      %v1770 = vunpack.c.l.b16 %v1690
      %v1771 = vunpack.c.l.b16 %v1691
      %v1772 = vunpack.c.l.b16 %v1692
      %v1773 = vunpack.c.l.b16 %v1693
      %v1774 = vunpack.c.l.b16 %v1694
      %v1775 = vunpack.c.l.b16 %v1695
      %v1776 = vunpack.c.l.b16 %v1696
      %v1777 = vunpack.c.l.b16 %v1697
      %v1778 = vpack.c.b16 %v1763, %v1762
      %v1779 = vpack.c.b16 %v1765, %v1764
      %v1780 = vpack.c.b16 %v1767, %v1766
      %v1781 = vpack.c.b16 %v1769, %v1768
      %v1782 = vpack.c.b16 %v1771, %v1770
      %v1783 = vpack.c.b16 %v1773, %v1772
      %v1784 = vpack.c.b16 %v1775, %v1774
      %v1785 = vpack.c.b16 %v1777, %v1776
      %1794 = vmatprep.subr.bf16.mxu0 0
      %1795 = vmatpush1.bf16.msra.mxu0 %v1778
      %1796 = vmatprep.subr.bf16.mxu0 0
      %1797 = vmatpush1.bf16.msra.mxu0 %v1779
      %1798 = vmatprep.subr.bf16.mxu0 0
      %1799 = vmatpush1.bf16.msra.mxu0 %v1780
      %1800 = vmatprep.subr.bf16.mxu0 0
      %1801 = vmatpush1.bf16.msra.mxu0 %v1781
      %1802 = vmatprep.subr.bf16.mxu0 0
      %1803 = vmatpush1.bf16.msra.mxu0 %v1782
      %1804 = vmatprep.subr.bf16.mxu0 0
      %1805 = vmatpush1.bf16.msra.mxu0 %v1783
      %1806 = vmatprep.subr.bf16.mxu0 0
      %1807 = vmatpush1.bf16.msra.mxu0 %v1784
      %1808 = vmatprep.subr.bf16.mxu0 0
      %1809 = vmatpush1.bf16.msra.mxu0 %v1785
      %1810 = vmatprep.subr.bf16.mxu0 0
      %1811 = vmatpush1.bf16.msra.mxu0 0
      %1812 = vmatprep.subr.bf16.mxu0 0
      %1813 = vmatpush1.bf16.msra.mxu0 0
      %1814 = vmatprep.subr.bf16.mxu0 0
      %1815 = vmatpush1.bf16.msra.mxu0 0
      %1816 = vmatprep.subr.bf16.mxu0 0
      %1817 = vmatpush1.bf16.msra.mxu0 0
      %1818 = vmatprep.subr.bf16.mxu0 0
      %1819 = vmatpush1.bf16.msra.mxu0 0
      %1820 = vmatprep.subr.bf16.mxu0 0
      %1821 = vmatpush1.bf16.msra.mxu0 0
      %1822 = vmatprep.subr.bf16.mxu0 0
      %1823 = vmatpush1.bf16.msra.mxu0 0
      %1824 = vmatprep.subr.bf16.mxu0 0
      %1825 = vmatpush1.bf16.msra.mxu0 0
      %1826 = vmatprep.mubr.bf16.mxu0 0
      %1827 = vmatmul.mubr.bf16.gmra.mrb[0].mxu0 %v1730
      %v1828 = vpop.f32.mrb[0].mxu0
      %v1829 = vadd.f32 0.0, %v1828
      %v1830 = vpop.f32.mrb[0].mxu0
      %v1831 = vpop.f32.mrb[0].mxu0
      %v1832 = vpop.f32.mrb[0].mxu0
      %1833 = vmatprep.mubr.bf16.mxu0 0
      %1834 = vmatmul.mubr.bf16.gmra.mrb[0].mxu0 %v1731
      %v1835 = vpop.f32.mrb[0].mxu0
      %v1836 = vadd.f32 0.0, %v1835
      %v1837 = vpop.f32.mrb[0].mxu0
      %v1838 = vpop.f32.mrb[0].mxu0
      %v1839 = vpop.f32.mrb[0].mxu0
      %1840 = vmatprep.mubr.bf16.mxu0 0
      %1841 = vmatmul.mubr.bf16.gmra.mrb[0].mxu0 %v1732
      %v1842 = vpop.f32.mrb[0].mxu0
      %v1843 = vadd.f32 0.0, %v1842
      %v1844 = vpop.f32.mrb[0].mxu0
      %v1845 = vpop.f32.mrb[0].mxu0
      %v1846 = vpop.f32.mrb[0].mxu0
      %1847 = vmatprep.mubr.bf16.mxu0 0
      %1848 = vmatmul.mubr.bf16.gmra.mrb[0].mxu0 %v1733
      %v1849 = vpop.f32.mrb[0].mxu0
      %v1850 = vadd.f32 0.0, %v1849
      %v1851 = vpop.f32.mrb[0].mxu0
      %v1852 = vpop.f32.mrb[0].mxu0
      %v1853 = vpop.f32.mrb[0].mxu0
      %1854 = vmatprep.mubr.bf16.mxu0 0
      %1855 = vmatmul.mubr.bf16.gmra.mrb[0].mxu0 %v1734
      %v1856 = vpop.f32.mrb[0].mxu0
      %v1857 = vadd.f32 0.0, %v1856
      %v1858 = vpop.f32.mrb[0].mxu0
      %v1859 = vpop.f32.mrb[0].mxu0
      %v1860 = vpop.f32.mrb[0].mxu0
      %1861 = vmatprep.mubr.bf16.mxu0 0
      %1862 = vmatmul.mubr.bf16.gmra.mrb[0].mxu0 %v1735
      %v1863 = vpop.f32.mrb[0].mxu0
      %v1864 = vadd.f32 0.0, %v1863
      %v1865 = vpop.f32.mrb[0].mxu0
      %v1866 = vpop.f32.mrb[0].mxu0
      %v1867 = vpop.f32.mrb[0].mxu0
      %1868 = vmatprep.mubr.bf16.mxu0 0
      %1869 = vmatmul.mubr.bf16.gmra.mrb[0].mxu0 %v1736
      %v1870 = vpop.f32.mrb[0].mxu0
      %v1871 = vadd.f32 0.0, %v1870
      %v1872 = vpop.f32.mrb[0].mxu0
      %v1873 = vpop.f32.mrb[0].mxu0
      %v1874 = vpop.f32.mrb[0].mxu0
      %1875 = vmatprep.mubr.bf16.mxu0 0
      %1876 = vmatmul.mubr.bf16.gmra.mrb[0].mxu0 %v1737
      %v1877 = vpop.f32.mrb[0].mxu0
      %v1878 = vadd.f32 0.0, %v1877
      %v1879 = vpop.f32.mrb[0].mxu0
      %v1880 = vpop.f32.mrb[0].mxu0
      %v1881 = vpop.f32.mrb[0].mxu0
      %1882 = vdwg.mxu0
      %v1883 = vadd.f32 %v1657, %v1829
      %v1884 = vadd.f32 %v1658, %v1836
      %v1885 = vadd.f32 %v1659, %v1843
      %v1886 = vadd.f32 %v1660, %v1850
      %v1887 = vadd.f32 %v1661, %v1857
      %v1888 = vadd.f32 %v1662, %v1864
      %v1889 = vadd.f32 %v1663, %v1871
      %v1890 = vadd.f32 %v1664, %v1878
      %v1891 = vld [vmem:[%s210 + $0x8] sm:$0xf]
      %v1892 = vld [vmem:[%s210 + $0xc] sm:$0xf]
      %v1893 = vld [vmem:[%s210 + $0x10] sm:$0xf]
      %v1894 = vld [vmem:[%s210 + $0x14] sm:$0xf]
      %v1895 = vld [vmem:[%s210 + $0x18] sm:$0xf]
      %v1896 = vld [vmem:[%s210 + $0x1c] sm:$0xf]
      %v1897 = vld [vmem:[%s210 + $0x20] sm:$0xf]
      %v1898 = vld [vmem:[%s210 + $0x24] sm:$0xf]
      %v1899 = vld [vmem:[%s210 + $0x28] sm:$0xf]
      %v1900 = vld [vmem:[%s210 + $0x2c] sm:$0xf]
      %v1901 = vld [vmem:[%s210 + $0x30] sm:$0xf]
      %v1902 = vld [vmem:[%s210 + $0x34] sm:$0xf]
      %v1903 = vld [vmem:[%s210 + $0x38] sm:$0xf]
      %v1904 = vld [vmem:[%s210 + $0x3c] sm:$0xf]
      %v1905 = vld [vmem:[%s210 + $0x40] sm:$0xf]
      %v1906 = vld [vmem:[%s210 + $0x44] sm:$0xf]
      %s1907 = scalar_lea.vmem %s1, 448
      %v1908 = vld [vmem:[%s1907] sm:$0xf]
      %v1909 = vld [vmem:[%s1907 + $0x4] sm:$0xf]
      %v1910 = vld [vmem:[%s1907 + $0x8] sm:$0xf]
      %v1911 = vld [vmem:[%s1907 + $0xc] sm:$0xf]
      %v1912 = vld [vmem:[%s1907 + $0x10] sm:$0xf]
      %v1913 = vld [vmem:[%s1907 + $0x14] sm:$0xf]
      %v1914 = vld [vmem:[%s1907 + $0x18] sm:$0xf]
      %v1915 = vld [vmem:[%s1907 + $0x1c] sm:$0xf]
      %v1916 = vld [vmem:[%s1907 + $0x20] sm:$0xf]
      %v1917 = vld [vmem:[%s1907 + $0x24] sm:$0xf]
      %v1918 = vld [vmem:[%s1907 + $0x28] sm:$0xf]
      %v1919 = vld [vmem:[%s1907 + $0x2c] sm:$0xf]
      %v1920 = vld [vmem:[%s1907 + $0x30] sm:$0xf]
      %v1921 = vld [vmem:[%s1907 + $0x34] sm:$0xf]
      %v1922 = vld [vmem:[%s1907 + $0x38] sm:$0xf]
      %v1923 = vld [vmem:[%s1907 + $0x3c] sm:$0xf]
      %v1940 = vunpack.c.l.b16 %v1891
      %v1941 = vunpack.c.l.b16 %v1892
      %v1942 = vunpack.c.l.b16 %v1893
      %v1943 = vunpack.c.l.b16 %v1894
      %v1944 = vunpack.c.l.b16 %v1895
      %v1945 = vunpack.c.l.b16 %v1896
      %v1946 = vunpack.c.l.b16 %v1897
      %v1947 = vunpack.c.l.b16 %v1898
      %v1948 = vunpack.c.l.b16 %v1899
      %v1949 = vunpack.c.l.b16 %v1900
      %v1950 = vunpack.c.l.b16 %v1901
      %v1951 = vunpack.c.l.b16 %v1902
      %v1952 = vunpack.c.l.b16 %v1903
      %v1953 = vunpack.c.l.b16 %v1904
      %v1954 = vunpack.c.l.b16 %v1905
      %v1955 = vunpack.c.l.b16 %v1906
      %v1956 = vpack.c.b16 %v1941, %v1940
      %v1957 = vpack.c.b16 %v1943, %v1942
      %v1958 = vpack.c.b16 %v1945, %v1944
      %v1959 = vpack.c.b16 %v1947, %v1946
      %v1960 = vpack.c.b16 %v1949, %v1948
      %v1961 = vpack.c.b16 %v1951, %v1950
      %v1962 = vpack.c.b16 %v1953, %v1952
      %v1963 = vpack.c.b16 %v1955, %v1954
      %v1988 = vunpack.c.l.b16 %v1908
      %v1989 = vunpack.c.l.b16 %v1909
      %v1990 = vunpack.c.l.b16 %v1910
      %v1991 = vunpack.c.l.b16 %v1911
      %v1992 = vunpack.c.l.b16 %v1912
      %v1993 = vunpack.c.l.b16 %v1913
      %v1994 = vunpack.c.l.b16 %v1914
      %v1995 = vunpack.c.l.b16 %v1915
      %v1996 = vunpack.c.l.b16 %v1916
      %v1997 = vunpack.c.l.b16 %v1917
      %v1998 = vunpack.c.l.b16 %v1918
      %v1999 = vunpack.c.l.b16 %v1919
      %v2000 = vunpack.c.l.b16 %v1920
      %v2001 = vunpack.c.l.b16 %v1921
      %v2002 = vunpack.c.l.b16 %v1922
      %v2003 = vunpack.c.l.b16 %v1923
      %v2004 = vpack.c.b16 %v1989, %v1988
      %v2005 = vpack.c.b16 %v1991, %v1990
      %v2006 = vpack.c.b16 %v1993, %v1992
      %v2007 = vpack.c.b16 %v1995, %v1994
      %v2008 = vpack.c.b16 %v1997, %v1996
      %v2009 = vpack.c.b16 %v1999, %v1998
      %v2010 = vpack.c.b16 %v2001, %v2000
      %v2011 = vpack.c.b16 %v2003, %v2002
      %2020 = vmatprep.subr.bf16.mxu0 0
      %2021 = vmatpush1.bf16.msra.mxu0 %v2004
      %2022 = vmatprep.subr.bf16.mxu0 0
      %2023 = vmatpush1.bf16.msra.mxu0 %v2005
      %2024 = vmatprep.subr.bf16.mxu0 0
      %2025 = vmatpush1.bf16.msra.mxu0 %v2006
      %2026 = vmatprep.subr.bf16.mxu0 0
      %2027 = vmatpush1.bf16.msra.mxu0 %v2007
      %2028 = vmatprep.subr.bf16.mxu0 0
      %2029 = vmatpush1.bf16.msra.mxu0 %v2008
      %2030 = vmatprep.subr.bf16.mxu0 0
      %2031 = vmatpush1.bf16.msra.mxu0 %v2009
      %2032 = vmatprep.subr.bf16.mxu0 0
      %2033 = vmatpush1.bf16.msra.mxu0 %v2010
      %2034 = vmatprep.subr.bf16.mxu0 0
      %2035 = vmatpush1.bf16.msra.mxu0 %v2011
      %2036 = vmatprep.subr.bf16.mxu0 0
      %2037 = vmatpush1.bf16.msra.mxu0 0
      %2038 = vmatprep.subr.bf16.mxu0 0
      %2039 = vmatpush1.bf16.msra.mxu0 0
      %2040 = vmatprep.subr.bf16.mxu0 0
      %2041 = vmatpush1.bf16.msra.mxu0 0
      %2042 = vmatprep.subr.bf16.mxu0 0
      %2043 = vmatpush1.bf16.msra.mxu0 0
      %2044 = vmatprep.subr.bf16.mxu0 0
      %2045 = vmatpush1.bf16.msra.mxu0 0
      %2046 = vmatprep.subr.bf16.mxu0 0
      %2047 = vmatpush1.bf16.msra.mxu0 0
      %2048 = vmatprep.subr.bf16.mxu0 0
      %2049 = vmatpush1.bf16.msra.mxu0 0
      %2050 = vmatprep.subr.bf16.mxu0 0
      %2051 = vmatpush1.bf16.msra.mxu0 0
      %2052 = vmatprep.mubr.bf16.mxu0 0
      %2053 = vmatmul.mubr.bf16.gmra.mrb[0].mxu0 %v1956
      %v2054 = vpop.f32.mrb[0].mxu0
      %v2055 = vadd.f32 0.0, %v2054
      %v2056 = vpop.f32.mrb[0].mxu0
      %v2057 = vpop.f32.mrb[0].mxu0
      %v2058 = vpop.f32.mrb[0].mxu0
      %2059 = vmatprep.mubr.bf16.mxu0 0
      %2060 = vmatmul.mubr.bf16.gmra.mrb[0].mxu0 %v1957
      %v2061 = vpop.f32.mrb[0].mxu0
      %v2062 = vadd.f32 0.0, %v2061
      %v2063 = vpop.f32.mrb[0].mxu0
      %v2064 = vpop.f32.mrb[0].mxu0
      %v2065 = vpop.f32.mrb[0].mxu0
      %2066 = vmatprep.mubr.bf16.mxu0 0
      %2067 = vmatmul.mubr.bf16.gmra.mrb[0].mxu0 %v1958
      %v2068 = vpop.f32.mrb[0].mxu0
      %v2069 = vadd.f32 0.0, %v2068
      %v2070 = vpop.f32.mrb[0].mxu0
      %v2071 = vpop.f32.mrb[0].mxu0
      %v2072 = vpop.f32.mrb[0].mxu0
      %2073 = vmatprep.mubr.bf16.mxu0 0
      %2074 = vmatmul.mubr.bf16.gmra.mrb[0].mxu0 %v1959
      %v2075 = vpop.f32.mrb[0].mxu0
      %v2076 = vadd.f32 0.0, %v2075
      %v2077 = vpop.f32.mrb[0].mxu0
      %v2078 = vpop.f32.mrb[0].mxu0
      %v2079 = vpop.f32.mrb[0].mxu0
      %2080 = vmatprep.mubr.bf16.mxu0 0
      %2081 = vmatmul.mubr.bf16.gmra.mrb[0].mxu0 %v1960
      %v2082 = vpop.f32.mrb[0].mxu0
      %v2083 = vadd.f32 0.0, %v2082
      %v2084 = vpop.f32.mrb[0].mxu0
      %v2085 = vpop.f32.mrb[0].mxu0
      %v2086 = vpop.f32.mrb[0].mxu0
      %2087 = vmatprep.mubr.bf16.mxu0 0
      %2088 = vmatmul.mubr.bf16.gmra.mrb[0].mxu0 %v1961
      %v2089 = vpop.f32.mrb[0].mxu0
      %v2090 = vadd.f32 0.0, %v2089
      %v2091 = vpop.f32.mrb[0].mxu0
      %v2092 = vpop.f32.mrb[0].mxu0
      %v2093 = vpop.f32.mrb[0].mxu0
      %2094 = vmatprep.mubr.bf16.mxu0 0
      %2095 = vmatmul.mubr.bf16.gmra.mrb[0].mxu0 %v1962
      %v2096 = vpop.f32.mrb[0].mxu0
      %v2097 = vadd.f32 0.0, %v2096
      %v2098 = vpop.f32.mrb[0].mxu0
      %v2099 = vpop.f32.mrb[0].mxu0
      %v2100 = vpop.f32.mrb[0].mxu0
      %2101 = vmatprep.mubr.bf16.mxu0 0
      %2102 = vmatmul.mubr.bf16.gmra.mrb[0].mxu0 %v1963
      %v2103 = vpop.f32.mrb[0].mxu0
      %v2104 = vadd.f32 0.0, %v2103
      %v2105 = vpop.f32.mrb[0].mxu0
      %v2106 = vpop.f32.mrb[0].mxu0
      %v2107 = vpop.f32.mrb[0].mxu0
      %2108 = vdwg.mxu0
      %v2109 = vadd.f32 %v1883, %v2055
      %v2110 = vadd.f32 %v1884, %v2062
      %v2111 = vadd.f32 %v1885, %v2069
      %v2112 = vadd.f32 %v1886, %v2076
      %v2113 = vadd.f32 %v1887, %v2083
      %v2114 = vadd.f32 %v1888, %v2090
      %v2115 = vadd.f32 %v1889, %v2097
      %v2116 = vadd.f32 %v1890, %v2104
      %v2117 = vld [vmem:[%s169 + $0x8] sm:$0xf]
      %v2118 = vld [vmem:[%s169 + $0xc] sm:$0xf]
      %v2119 = vld [vmem:[%s169 + $0x10] sm:$0xf]
      %v2120 = vld [vmem:[%s169 + $0x14] sm:$0xf]
      %v2121 = vld [vmem:[%s169 + $0x18] sm:$0xf]
      %v2122 = vld [vmem:[%s169 + $0x1c] sm:$0xf]
      %v2123 = vld [vmem:[%s169 + $0x20] sm:$0xf]
      %v2124 = vld [vmem:[%s169 + $0x24] sm:$0xf]
      %v2125 = vld [vmem:[%s169 + $0x28] sm:$0xf]
      %v2126 = vld [vmem:[%s169 + $0x2c] sm:$0xf]
      %v2127 = vld [vmem:[%s169 + $0x30] sm:$0xf]
      %v2128 = vld [vmem:[%s169 + $0x34] sm:$0xf]
      %v2129 = vld [vmem:[%s169 + $0x38] sm:$0xf]
      %v2130 = vld [vmem:[%s169 + $0x3c] sm:$0xf]
      %v2131 = vld [vmem:[%s169 + $0x40] sm:$0xf]
      %v2132 = vld [vmem:[%s169 + $0x44] sm:$0xf]
      %v2133 = vld [vmem:[%s169 + $0x48] sm:$0x1]
      %s2134 = scalar_lea.vmem %s1, 512
      %v2135 = vld [vmem:[%s2134] sm:$0xf]
      %v2136 = vld [vmem:[%s2134 + $0x4] sm:$0xf]
      %v2137 = vld [vmem:[%s2134 + $0x8] sm:$0xf]
      %v2138 = vld [vmem:[%s2134 + $0xc] sm:$0xf]
      %v2139 = vld [vmem:[%s2134 + $0x10] sm:$0xf]
      %v2140 = vld [vmem:[%s2134 + $0x14] sm:$0xf]
      %v2141 = vld [vmem:[%s2134 + $0x18] sm:$0xf]
      %v2142 = vld [vmem:[%s2134 + $0x1c] sm:$0xf]
      %v2143 = vld [vmem:[%s2134 + $0x20] sm:$0xf]
      %v2144 = vld [vmem:[%s2134 + $0x24] sm:$0xf]
      %v2145 = vld [vmem:[%s2134 + $0x28] sm:$0xf]
      %v2146 = vld [vmem:[%s2134 + $0x2c] sm:$0xf]
      %v2147 = vld [vmem:[%s2134 + $0x30] sm:$0xf]
      %v2148 = vld [vmem:[%s2134 + $0x34] sm:$0xf]
      %v2149 = vld [vmem:[%s2134 + $0x38] sm:$0xf]
      %v2150 = vld [vmem:[%s2134 + $0x3c] sm:$0xf]
      %v2168 = vunpack.c.l.b16 %v2117
      %v2169 = vunpack.c.l.b16 %v2118
      %v2170 = vunpack.c.l.b16 %v2119
      %v2171 = vunpack.c.l.b16 %v2120
      %v2172 = vunpack.c.l.b16 %v2121
      %v2173 = vunpack.c.l.b16 %v2122
      %v2174 = vunpack.c.l.b16 %v2123
      %v2175 = vunpack.c.l.b16 %v2124
      %v2176 = vunpack.c.l.b16 %v2125
      %v2177 = vunpack.c.l.b16 %v2126
      %v2178 = vunpack.c.l.b16 %v2127
      %v2179 = vunpack.c.l.b16 %v2128
      %v2180 = vunpack.c.l.b16 %v2129
      %v2181 = vunpack.c.l.b16 %v2130
      %v2182 = vunpack.c.l.b16 %v2131
      %v2183 = vunpack.c.l.b16 %v2132
      %v2184 = vunpack.c.l.b16 %v2133
      %v2185 = vpack.c.b16 %v2169, %v2168
      %v2186 = vpack.c.b16 %v2171, %v2170
      %v2187 = vpack.c.b16 %v2173, %v2172
      %v2188 = vpack.c.b16 %v2175, %v2174
      %v2189 = vpack.c.b16 %v2177, %v2176
      %v2190 = vpack.c.b16 %v2179, %v2178
      %v2191 = vpack.c.b16 %v2181, %v2180
      %v2192 = vpack.c.b16 %v2183, %v2182
      %v2193 = vpack.c.b16 %v2184, %v2184
      %v2195 = vshrl.u32 %v2185, 16
      %v2197 = vshll.u32 %v2185, 16
      %v2199 = vrot.slane %v2197, 1
      %v2200 = vor.u32 %v2195, %v2199
      %v2202 = vshll.u32 %v2186, 16
      %v2204 = vrot.slane %v2202, 1
      %v2205 = vsel %vm691, %v2200, %v2204
      %v2206 = vshrl.u32 %v2186, 16
      %v2208 = vor.u32 %v2206, %v2204
      %v2210 = vshll.u32 %v2187, 16
      %v2212 = vrot.slane %v2210, 1
      %v2213 = vsel %vm691, %v2208, %v2212
      %v2214 = vshrl.u32 %v2187, 16
      %v2216 = vor.u32 %v2214, %v2212
      %v2218 = vshll.u32 %v2188, 16
      %v2220 = vrot.slane %v2218, 1
      %v2221 = vsel %vm691, %v2216, %v2220
      %v2222 = vshrl.u32 %v2188, 16
      %v2224 = vor.u32 %v2222, %v2220
      %v2226 = vshll.u32 %v2189, 16
      %v2228 = vrot.slane %v2226, 1
      %v2229 = vsel %vm691, %v2224, %v2228
      %v2230 = vshrl.u32 %v2189, 16
      %v2232 = vor.u32 %v2230, %v2228
      %v2234 = vshll.u32 %v2190, 16
      %v2236 = vrot.slane %v2234, 1
      %v2237 = vsel %vm691, %v2232, %v2236
      %v2238 = vshrl.u32 %v2190, 16
      %v2240 = vor.u32 %v2238, %v2236
      %v2242 = vshll.u32 %v2191, 16
      %v2244 = vrot.slane %v2242, 1
      %v2245 = vsel %vm691, %v2240, %v2244
      %v2246 = vshrl.u32 %v2191, 16
      %v2248 = vor.u32 %v2246, %v2244
      %v2250 = vshll.u32 %v2192, 16
      %v2252 = vrot.slane %v2250, 1
      %v2253 = vsel %vm691, %v2248, %v2252
      %v2254 = vshrl.u32 %v2192, 16
      %v2256 = vor.u32 %v2254, %v2252
      %v2258 = vshll.u32 %v2193, 16
      %v2260 = vrot.slane %v2258, 1
      %v2261 = vsel %vm691, %v2256, %v2260
      %v2286 = vunpack.c.l.b16 %v2135
      %v2287 = vunpack.c.l.b16 %v2136
      %v2288 = vunpack.c.l.b16 %v2137
      %v2289 = vunpack.c.l.b16 %v2138
      %v2290 = vunpack.c.l.b16 %v2139
      %v2291 = vunpack.c.l.b16 %v2140
      %v2292 = vunpack.c.l.b16 %v2141
      %v2293 = vunpack.c.l.b16 %v2142
      %v2294 = vunpack.c.l.b16 %v2143
      %v2295 = vunpack.c.l.b16 %v2144
      %v2296 = vunpack.c.l.b16 %v2145
      %v2297 = vunpack.c.l.b16 %v2146
      %v2298 = vunpack.c.l.b16 %v2147
      %v2299 = vunpack.c.l.b16 %v2148
      %v2300 = vunpack.c.l.b16 %v2149
      %v2301 = vunpack.c.l.b16 %v2150
      %v2302 = vpack.c.b16 %v2287, %v2286
      %v2303 = vpack.c.b16 %v2289, %v2288
      %v2304 = vpack.c.b16 %v2291, %v2290
      %v2305 = vpack.c.b16 %v2293, %v2292
      %v2306 = vpack.c.b16 %v2295, %v2294
      %v2307 = vpack.c.b16 %v2297, %v2296
      %v2308 = vpack.c.b16 %v2299, %v2298
      %v2309 = vpack.c.b16 %v2301, %v2300
      %2318 = vmatprep.subr.bf16.mxu0 0
      %2319 = vmatpush1.bf16.msra.mxu0 %v2302
      %2320 = vmatprep.subr.bf16.mxu0 0
      %2321 = vmatpush1.bf16.msra.mxu0 %v2303
      %2322 = vmatprep.subr.bf16.mxu0 0
      %2323 = vmatpush1.bf16.msra.mxu0 %v2304
      %2324 = vmatprep.subr.bf16.mxu0 0
      %2325 = vmatpush1.bf16.msra.mxu0 %v2305
      %2326 = vmatprep.subr.bf16.mxu0 0
      %2327 = vmatpush1.bf16.msra.mxu0 %v2306
      %2328 = vmatprep.subr.bf16.mxu0 0
      %2329 = vmatpush1.bf16.msra.mxu0 %v2307
      %2330 = vmatprep.subr.bf16.mxu0 0
      %2331 = vmatpush1.bf16.msra.mxu0 %v2308
      %2332 = vmatprep.subr.bf16.mxu0 0
      %2333 = vmatpush1.bf16.msra.mxu0 %v2309
      %2334 = vmatprep.subr.bf16.mxu0 0
      %2335 = vmatpush1.bf16.msra.mxu0 0
      %2336 = vmatprep.subr.bf16.mxu0 0
      %2337 = vmatpush1.bf16.msra.mxu0 0
      %2338 = vmatprep.subr.bf16.mxu0 0
      %2339 = vmatpush1.bf16.msra.mxu0 0
      %2340 = vmatprep.subr.bf16.mxu0 0
      %2341 = vmatpush1.bf16.msra.mxu0 0
      %2342 = vmatprep.subr.bf16.mxu0 0
      %2343 = vmatpush1.bf16.msra.mxu0 0
      %2344 = vmatprep.subr.bf16.mxu0 0
      %2345 = vmatpush1.bf16.msra.mxu0 0
      %2346 = vmatprep.subr.bf16.mxu0 0
      %2347 = vmatpush1.bf16.msra.mxu0 0
      %2348 = vmatprep.subr.bf16.mxu0 0
      %2349 = vmatpush1.bf16.msra.mxu0 0
      %2350 = vmatprep.mubr.bf16.mxu0 0
      %2351 = vmatmul.mubr.bf16.gmra.mrb[0].mxu0 %v2205
      %v2352 = vpop.f32.mrb[0].mxu0
      %v2353 = vadd.f32 0.0, %v2352
      %v2354 = vpop.f32.mrb[0].mxu0
      %v2355 = vpop.f32.mrb[0].mxu0
      %v2356 = vpop.f32.mrb[0].mxu0
      %2357 = vmatprep.mubr.bf16.mxu0 0
      %2358 = vmatmul.mubr.bf16.gmra.mrb[0].mxu0 %v2213
      %v2359 = vpop.f32.mrb[0].mxu0
      %v2360 = vadd.f32 0.0, %v2359
      %v2361 = vpop.f32.mrb[0].mxu0
      %v2362 = vpop.f32.mrb[0].mxu0
      %v2363 = vpop.f32.mrb[0].mxu0
      %2364 = vmatprep.mubr.bf16.mxu0 0
      %2365 = vmatmul.mubr.bf16.gmra.mrb[0].mxu0 %v2221
      %v2366 = vpop.f32.mrb[0].mxu0
      %v2367 = vadd.f32 0.0, %v2366
      %v2368 = vpop.f32.mrb[0].mxu0
      %v2369 = vpop.f32.mrb[0].mxu0
      %v2370 = vpop.f32.mrb[0].mxu0
      %2371 = vmatprep.mubr.bf16.mxu0 0
      %2372 = vmatmul.mubr.bf16.gmra.mrb[0].mxu0 %v2229
      %v2373 = vpop.f32.mrb[0].mxu0
      %v2374 = vadd.f32 0.0, %v2373
      %v2375 = vpop.f32.mrb[0].mxu0
      %v2376 = vpop.f32.mrb[0].mxu0
      %v2377 = vpop.f32.mrb[0].mxu0
      %2378 = vmatprep.mubr.bf16.mxu0 0
      %2379 = vmatmul.mubr.bf16.gmra.mrb[0].mxu0 %v2237
      %v2380 = vpop.f32.mrb[0].mxu0
      %v2381 = vadd.f32 0.0, %v2380
      %v2382 = vpop.f32.mrb[0].mxu0
      %v2383 = vpop.f32.mrb[0].mxu0
      %v2384 = vpop.f32.mrb[0].mxu0
      %2385 = vmatprep.mubr.bf16.mxu0 0
      %2386 = vmatmul.mubr.bf16.gmra.mrb[0].mxu0 %v2245
      %v2387 = vpop.f32.mrb[0].mxu0
      %v2388 = vadd.f32 0.0, %v2387
      %v2389 = vpop.f32.mrb[0].mxu0
      %v2390 = vpop.f32.mrb[0].mxu0
      %v2391 = vpop.f32.mrb[0].mxu0
      %2392 = vmatprep.mubr.bf16.mxu0 0
      %2393 = vmatmul.mubr.bf16.gmra.mrb[0].mxu0 %v2253
      %v2394 = vpop.f32.mrb[0].mxu0
      %v2395 = vadd.f32 0.0, %v2394
      %v2396 = vpop.f32.mrb[0].mxu0
      %v2397 = vpop.f32.mrb[0].mxu0
      %v2398 = vpop.f32.mrb[0].mxu0
      %2399 = vmatprep.mubr.bf16.mxu0 0
      %2400 = vmatmul.mubr.bf16.gmra.mrb[0].mxu0 %v2261
      %v2401 = vpop.f32.mrb[0].mxu0
      %v2402 = vadd.f32 0.0, %v2401
      %v2403 = vpop.f32.mrb[0].mxu0
      %v2404 = vpop.f32.mrb[0].mxu0
      %v2405 = vpop.f32.mrb[0].mxu0
      %2406 = vdwg.mxu0
      %v2407 = vadd.f32 %v2109, %v2353
      %v2408 = vadd.f32 %v2110, %v2360
      %v2409 = vadd.f32 %v2111, %v2367
      %v2410 = vadd.f32 %v2112, %v2374
      %v2411 = vadd.f32 %v2113, %v2381
      %v2412 = vadd.f32 %v2114, %v2388
      %v2413 = vadd.f32 %v2115, %v2395
      %v2414 = vadd.f32 %v2116, %v2402
      %v2415 = vld [vmem:[%s2] sm:$0x1]
      %v2417 = vlaneseq
      %v2418 = vshrl.u32 %v2417, 7
      %v2419 = vsub.s32 0, %v2418
      %v2420 = vrot.slane %v2415, %v2419
      %v2422 = vadd.f32 %v2407, %v2420
      %v2423 = vadd.f32 %v2408, %v2420
      %v2424 = vadd.f32 %v2409, %v2420
      %v2425 = vadd.f32 %v2410, %v2420
      %v2426 = vadd.f32 %v2411, %v2420
      %v2427 = vadd.f32 %v2412, %v2420
      %v2428 = vadd.f32 %v2413, %v2420
      %v2429 = vadd.f32 %v2414, %v2420
      %v2430 = vmax.f32 %v2422, 0.0
      %v2431 = vmax.f32 %v2423, 0.0
      %v2432 = vmax.f32 %v2424, 0.0
      %v2433 = vmax.f32 %v2425, 0.0
      %v2434 = vmax.f32 %v2426, 0.0
      %v2435 = vmax.f32 %v2427, 0.0
      %v2436 = vmax.f32 %v2428, 0.0
      %v2437 = vmax.f32 %v2429, 0.0
      %v2438 = vpack.c.bf16 %v2430, %v2430
      %v2439 = vpack.c.bf16 %v2431, %v2431
      %v2440 = vpack.c.bf16 %v2432, %v2432
      %v2441 = vpack.c.bf16 %v2433, %v2433
      %v2442 = vpack.c.bf16 %v2434, %v2434
      %v2443 = vpack.c.bf16 %v2435, %v2435
      %v2444 = vpack.c.bf16 %v2436, %v2436
      %v2445 = vpack.c.bf16 %v2437, %v2437
      %2446 = vst [vmem:[%s175] sm:$0xf] %v2438
      %2447 = vst [vmem:[%s175 + $0x4] sm:$0xf] %v2439
      %2448 = vst [vmem:[%s175 + $0x8] sm:$0xf] %v2440
      %2449 = vst [vmem:[%s175 + $0xc] sm:$0xf] %v2441
      %2450 = vst [vmem:[%s175 + $0x10] sm:$0xf] %v2442
      %2451 = vst [vmem:[%s175 + $0x14] sm:$0xf] %v2443
      %2452 = vst [vmem:[%s175 + $0x18] sm:$0xf] %v2444
      %2453 = vst [vmem:[%s175 + $0x1c] sm:$0xf] %v2445
      %s2454 = smul.u32 8, %s14
      %p2455 = scmp.lt.s32.totalorder %s2454, 15
      %s2456 = scalar_select %p2455, %s2454, 15
      %s2457 = smul.addr %s2456, 4
      %s2458 = scalar_lea.vmem %s3, %s2457
      // Predicated region
      $region33: #{bottleneck_forward.4} parent=31 // pred_check
        %p2459 = pneg %p100
      $region34: #{bottleneck_forward.4} parent=31 // pred_check_branch
        %2461 = sbr.rel (%p2459) target = $region36
      $region35: #{bottleneck_forward.4} parent=31 // pred_region
        %s2462 = smul.u32 8, %s14
      $region36: #{bottleneck_forward.4} parent=31 // pred_fallthru
        _
    $region32: #{bottleneck_forward.4} parent=5 // pred_fallthru
      _
    %p2463 = scmp.le.s32.totalorder 2, %s9
    // Predicated region
    $region37: #{bottleneck_forward.4} parent=5 // pred_check
      %p2464 = pneg %p2463
    $region38: #{bottleneck_forward.4} parent=5 // pred_check_branch
      %2466 = sbr.rel (%p2464) target = $region40
    $region39: #{bottleneck_forward.4} parent=5 // pred_region
      %s2467 = ssub.s32 %s9, 2
      // Predicated region
      $region41: #{bottleneck_forward.4} parent=39 // pred_check
        %p2468 = pneg %p106
      $region42: #{bottleneck_forward.4} parent=39 // pred_check_branch
        %2470 = sbr.rel (%p2468) target = $region44
      $region43: #{bottleneck_forward.4} parent=39 // pred_region
        %s2471 = smul.u32 8, %s15
        %p2472 = scmp.lt.s32.totalorder %s2471, 15
        %s2473 = scalar_select %p2472, %s2471, 15
        %s2474 = smul.addr %s2473, 4
        %s2475 = scalar_lea.vmem %s3, %s2474
      $region44: #{bottleneck_forward.4} parent=39 // pred_fallthru
        _
    $region40: #{bottleneck_forward.4} parent=5 // pred_fallthru
      _
  $region6: #{bottleneck_forward.4} parent=0 // loop_footer
    %s13 = sadd.s32 1, %s9
  $region7: #{bottleneck_forward.4} parent=0 // loop_footer_branch
    %8 = sbr.rel target = $region3
  $region8: #{bottleneck_forward.4} parent=0 // loop_exit
    _

</llo_original>
